<compile_context>
chip_gen: v6e
topology: v6e:2x2x1
jax: 0.10.0
libtpu: 0.0.40
codegen_flags: <defaults>
</compile_context>

<pallas_src>
import jax
import jax.numpy as jnp
from jax.experimental import pallas as pl
from jax.experimental.pallas import tpu as pltpu


def _make_attention_kernel(Bb, Tt, Sp, Dp, St, Dc):
    n_s = Sp // St
    n_d = Dp // Dc

    def kernel(out_ref, ctx_ref, uh_ref, maskadd_ref, wqT_ref, bq_ref, v_ref,
               woTm_ref, woTo_ref, bo_ref, o_ref, attn_ref, score_ref):

        def energy_tile(b, wq_b, s0):
            # score[t, s] = sum_d v[d] * tanh(wq[t, d] + uh[s, d]); D chunked
            # so the live tanh slab stays (Tt, St, Dc), lane-dense in Dc.
            acc = jnp.zeros((Tt, St), jnp.float32)
            for di in range(n_d):
                d0 = di * Dc
                wq_c = wq_b[:, d0:d0 + Dc]                       # (Tt, Dc)
                uh_c = uh_ref[b, s0:s0 + St, d0:d0 + Dc]         # (St, Dc)
                v_c = v_ref[:, d0:d0 + Dc]                       # (1, Dc)
                x = jnp.tanh(wq_c[:, None, :] + uh_c[None, :, :])
                acc = acc + jnp.sum(x * v_c[None, :, :], axis=-1)
            # Additive mask: 0 kept, -1e30 masked or padded source position.
            return acc + maskadd_ref[b, :, s0:s0 + St]

        for b in range(Bb):
            out_b = out_ref[b]                                    # (Tt, Dp)

            # linear_query: pre-transposed weight, one MXU matmul per b.
            wq_b = jnp.dot(out_b, wqT_ref[...],
                           preferred_element_type=jnp.float32) + bq_ref[...]

            # Energy stage: S tiles written directly into a lane-dense score
            # scratch (no concatenate / lane relayouts).
            if n_s == 1:
                sc = energy_tile(b, wq_b, 0)
            else:
                for si in range(n_s):
                    score_ref[:, si * St:(si + 1) * St] = energy_tile(
                        b, wq_b, si * St)
                sc = score_ref[...]

            # Masked, numerically-stable softmax over source positions.
            m = jnp.max(sc, axis=-1, keepdims=True)
            e = jnp.exp(sc - m)
            attn_b = e * pl.reciprocal(jnp.sum(e, axis=-1, keepdims=True),
                                       approx=False)
            attn_ref[b] = attn_b

            # mix = attn @ context, then the output projection as two
            # accumulated matmuls (no [mix ; output] staging scratch).
            mix_b = jnp.dot(attn_b, ctx_ref[b],
                            preferred_element_type=jnp.float32)   # (Tt, Dp)
            o_ref[b] = (jnp.dot(mix_b, woTm_ref[...],
                                preferred_element_type=jnp.float32)
                        + jnp.dot(out_b, woTo_ref[...],
                                  preferred_element_type=jnp.float32)
                        + bo_ref[...])

    return kernel


def _round_up(x, m):
    return ((x + m - 1) // m) * m


def _largest_divisor_at_most(n, cap):
    cap = max(1, min(n, int(cap)))
    for d in range(cap, 0, -1):
        if n % d == 0:
            return d
    return 1


def _vmem_limit_bytes():
    """Scoped-VMEM limit sized to the actual generation (64 MiB v7x,
    128 MiB v5e/v6e), leaving headroom for compiler-internal scratch."""
    cap = 128 * 1024 * 1024
    try:
        cap = int(pltpu.get_tpu_info().vmem_capacity_bytes)
    except Exception:
        pass
    return max(32 * 1024 * 1024, min(cap - 16 * 1024 * 1024, 112 * 1024 * 1024))


def _pick_tiles(B, Tp, Sp, Dp, vmem_budget):
    """Lane-dense tiles (St, Dc multiples of 128), a bounded tanh slab, and a
    batch block sized against the real per-step VMEM footprint."""
    f32 = 4
    Dc = 128                                      # lane-dense D chunk
    slab_budget = 4 * 1024 * 1024                 # live (Tt, St, Dc) tanh slab

    # Tt: multiple of 8 dividing Tp, small enough that St can reach 128.
    tt_cap_units = max(1, slab_budget // (128 * Dc * f32) // 8)   # in sublane units
    Tt = 8 * _largest_divisor_at_most(Tp // 8, min(tt_cap_units, 16))

    # St: multiple of 128 dividing Sp, within the slab budget.
    st_cap = max(1, slab_budget // (Tt * Dc * f32) // 128)
    St = 128 * _largest_divisor_at_most(Sp // 128, st_cap)

    # Bb: largest divisor of B whose per-step footprint fits VMEM, keeping
    # Bb*Tt near the MXU-row sweet spot and >= 2 grid steps when possible.
    def step_bytes(bb):
        per_b = (2 * Tt * Dp        # output block (double-buffered)
                 + 2 * Sp * Dp      # context block
                 + 2 * Sp * Dp      # uh block
                 + 2 * Sp           # additive mask block
                 + 2 * Tt * Sp      # attn output block
                 + 2 * Tt * Dp)     # attended-output block
        fixed = (2 * (3 * Dp * Dp + 3 * Dp)   # weights / biases (double-buffered)
                 + Tt * Sp                     # score scratch
                 + 2 * Tt * St * Dc)           # tanh slab + headroom
        return (bb * per_b + fixed) * f32

    rows_cap = max(1, 256 // Tt)
    par_cap = B if (Tp // Tt) >= 2 or B < 2 else max(1, B // 2)
    Bb = 1
    for bb in range(min(B, rows_cap, par_cap), 0, -1):
        if B % bb == 0 and step_bytes(bb) <= vmem_budget:
            Bb = bb
            break
    return Bb, Tt, St, Dc


def attention_forward(output, context, mask, params):
    """output: (B,T,D) f32, context: (B,S,D) f32, mask: (B,S) f32 (1 = masked)."""
    B, T, D = output.shape
    _, S, _ = context.shape
    wq_w, bq, wc_w, v_w, wo_w, bo = params
    f32 = jnp.float32

    # Lane-dense padding: D, S to multiples of 128; T to a multiple of 8.
    Dp = _round_up(max(D, 1), 128)
    Sp = _round_up(max(S, 1), 128)
    Tp = _round_up(max(T, 1), 8)

    vmem_limit = _vmem_limit_bytes()
    Bb, Tt, St, Dc = _pick_tiles(B, Tp, Sp, Dp, vmem_limit - 8 * 1024 * 1024)

    # Zero-padded activations (exact: padded channels meet zero weights).
    outp = jnp.zeros((B, Tp, Dp), f32).at[:, :T, :D].set(output.astype(f32))
    ctxp = jnp.zeros((B, Sp, Dp), f32).at[:, :S, :D].set(context.astype(f32))

    # Pre-transposed, zero-padded weights (built once, outside the grid loop).
    wqT = jnp.zeros((Dp, Dp), f32).at[:D, :D].set(wq_w.T)
    bqp = jnp.zeros((1, Dp), f32).at[:, :D].set(bq)
    wcT = jnp.zeros((Dp, Dp), f32).at[:D, :D].set(wc_w.T)
    vp = jnp.zeros((1, Dp), f32).at[:, :D].set(v_w)
    woTm = jnp.zeros((Dp, Dp), f32).at[:D, :D].set(wo_w[:, :D].T)  # acts on mix
    woTo = jnp.zeros((Dp, Dp), f32).at[:D, :D].set(wo_w[:, D:].T)  # acts on output
    bop = jnp.zeros((1, Dp), f32).at[:, :D].set(bo)

    # linear_context hoisted out of the kernel (plain XLA batched matmul): no
    # cross-T-tile scratch dependency, so both grid axes are "parallel".
    uhp = jnp.matmul(ctxp, wcT)                                    # (B, Sp, Dp)

    # Additive mask: 0 kept, -1e30 masked; padded source positions are masked.
    mask_add = jnp.full((B, 1, Sp), -1e30, dtype=f32)
    mask_add = mask_add.at[:, 0, :S].set(
        jnp.where(mask > 0.5, f32(-1e30), f32(0.0)))

    kernel = _make_attention_kernel(Bb, Tt, Sp, Dp, St, Dc)
    const = lambda bi, ti: (0, 0)

    o_pad, attn_pad = pl.pallas_call(
        kernel,
        out_shape=(jax.ShapeDtypeStruct((B, Tp, Dp), f32),
                   jax.ShapeDtypeStruct((B, Tp, Sp), f32)),
        grid_spec=pltpu.PrefetchScalarGridSpec(
            num_scalar_prefetch=0,
            grid=(B // Bb, Tp // Tt),
            in_specs=[
                pl.BlockSpec((Bb, Tt, Dp), lambda bi, ti: (bi, ti, 0)),  # output
                pl.BlockSpec((Bb, Sp, Dp), lambda bi, ti: (bi, 0, 0)),   # context
                pl.BlockSpec((Bb, Sp, Dp), lambda bi, ti: (bi, 0, 0)),   # uh (hoisted)
                pl.BlockSpec((Bb, 1, Sp),  lambda bi, ti: (bi, 0, 0)),   # additive mask
                pl.BlockSpec((Dp, Dp),     const),                       # Wq^T
                pl.BlockSpec((1, Dp),      const),                       # bq
                pl.BlockSpec((1, Dp),      const),                       # v
                pl.BlockSpec((Dp, Dp),     const),                       # Wo^T (mix half)
                pl.BlockSpec((Dp, Dp),     const),                       # Wo^T (output half)
                pl.BlockSpec((1, Dp),      const),                       # bo
            ],
            out_specs=[
                pl.BlockSpec((Bb, Tt, Dp), lambda bi, ti: (bi, ti, 0)),  # attended out
                pl.BlockSpec((Bb, Tt, Sp), lambda bi, ti: (bi, ti, 0)),  # attn weights
            ],
            scratch_shapes=[
                pltpu.VMEM((Tt, Sp), f32),     # score scratch (lane-dense S)
            ],
        ),
        compiler_params=pltpu.CompilerParams(
            dimension_semantics=("parallel", "parallel"),
            vmem_limit_bytes=vmem_limit,
        ),
    )(outp, ctxp, uhp, mask_add, wqT, bqp, vp, woTm, woTo, bop)

    return o_pad[:, :T, :D], attn_pad[:, :T, :S]


def attention_ref(output, context, mask, params):
    """Pure-JAX reference of the same forward pass (for correctness check)."""
    wq_w, bq, wc_w, v_w, wo_w, bo = params
    wq = output @ wq_w.T + bq                               # (B,T,D)
    uh = context @ wc_w.T                                   # (B,S,D)
    wquh = jnp.tanh(wq[:, :, None, :] + uh[:, None, :, :])  # (B,T,S,D)
    score = jnp.einsum('btsd,d->bts', wquh, v_w[0])
    score = jnp.where(mask[:, None, :] > 0.5, -1e30, score)
    attn = jax.nn.softmax(score, axis=-1)
    mix = jnp.einsum('bts,bsd->btd', attn, context)
    combined = jnp.concatenate([mix, output], axis=-1)
    out = combined @ wo_w.T + bo
    return out, attn


def init_params(key, dim):
    """Deterministic synthetic parameters matching the torch module's shapes."""
    ks = jax.random.split(key, 6)
    scale = 1.0 / jnp.sqrt(dim)
    wq_w = jax.random.uniform(ks[0], (dim, dim), jnp.float32, -scale, scale)
    bq = jax.random.uniform(ks[1], (1, dim), jnp.float32, -scale, scale)
    wc_w = jax.random.uniform(ks[2], (dim, dim), jnp.float32, -scale, scale)
    v_w = jax.random.uniform(ks[3], (1, dim), jnp.float32, -scale, scale)
    wo_w = jax.random.uniform(ks[4], (dim, 2 * dim), jnp.float32, -scale, scale)
    bo = jax.random.uniform(ks[5], (1, dim), jnp.float32, -scale, scale)
    return (wq_w, bq, wc_w, v_w, wo_w, bo)


if __name__ == "__main__":
    B, T, S, D = 2, 8, 8, 32   # batch, output_len, input_len, dim
    key = jax.random.PRNGKey(0)
    k_out, k_ctx, k_par = jax.random.split(key, 3)

    output = jax.random.normal(k_out, (B, T, D), jnp.float32)
    context = jax.random.normal(k_ctx, (B, S, D), jnp.float32)
    # mask: 1.0 => position gets -inf before softmax (mask the last 2 source
    # positions of batch 1, none in batch 0)
    mask = jnp.zeros((B, S), jnp.float32).at[1, S - 2:].set(1.0)

    params = init_params(k_par, D)

    out, attn = attention_forward(output, context, mask, params)
    out = jax.block_until_ready(out)
    attn = jax.block_until_ready(attn)

    out_ref, attn_ref_ = attention_ref(output, context, mask, params)
    assert out.shape == (B, T, D) and attn.shape == (B, T, S)
    assert jnp.allclose(out, out_ref, atol=1e-4, rtol=1e-4)
    assert jnp.allclose(attn, attn_ref_, atol=1e-5, rtol=1e-5)

    print("KERNEL_OK")
</pallas_src>

<mosaic_0001>
module attributes {stable_mosaic.version = 11 : i64} {
  func.func @kernel(%arg0: i32, %arg1: i32, %arg2: memref<1x8x128xf32, #tpu.memory_space<vmem>>, %arg3: memref<1x128x128xf32, #tpu.memory_space<vmem>>, %arg4: memref<1x128x128xf32, #tpu.memory_space<vmem>>, %arg5: memref<1x1x128xf32, #tpu.memory_space<vmem>>, %arg6: memref<128x128xf32, #tpu.memory_space<vmem>>, %arg7: memref<1x128xf32, #tpu.memory_space<vmem>>, %arg8: memref<1x128xf32, #tpu.memory_space<vmem>>, %arg9: memref<128x128xf32, #tpu.memory_space<vmem>>, %arg10: memref<128x128xf32, #tpu.memory_space<vmem>>, %arg11: memref<1x128xf32, #tpu.memory_space<vmem>>, %arg12: memref<1x8x128xf32, #tpu.memory_space<vmem>>, %arg13: memref<1x8x128xf32, #tpu.memory_space<vmem>>, %arg14: memref<8x128xf32, #tpu.memory_space<vmem>>) attributes {dimension_semantics = [#tpu.dimension_semantics<parallel>, #tpu.dimension_semantics<parallel>], iteration_bounds = array<i64: 2, 1>, scalar_prefetch = 0 : i64, scratch_operands = 1 : i64, tpu.core_type = #tpu.core_type<tc>, window_params = [{transform_indices = @transform_0, window_bounds = array<i64: 1, 8, 128>}, {transform_indices = @transform_1, window_bounds = array<i64: 1, 128, 128>}, {transform_indices = @transform_2, window_bounds = array<i64: 1, 128, 128>}, {transform_indices = @transform_3, window_bounds = array<i64: 1, 1, 128>}, {pipeline_mode = #tpu.pipeline_mode<synchronous>, transform_indices = @transform_4, window_bounds = array<i64: 128, 128>}, {pipeline_mode = #tpu.pipeline_mode<synchronous>, transform_indices = @transform_5, window_bounds = array<i64: 1, 128>}, {pipeline_mode = #tpu.pipeline_mode<synchronous>, transform_indices = @transform_6, window_bounds = array<i64: 1, 128>}, {pipeline_mode = #tpu.pipeline_mode<synchronous>, transform_indices = @transform_7, window_bounds = array<i64: 128, 128>}, {pipeline_mode = #tpu.pipeline_mode<synchronous>, transform_indices = @transform_8, window_bounds = array<i64: 128, 128>}, {pipeline_mode = #tpu.pipeline_mode<synchronous>, transform_indices = @transform_9, window_bounds = array<i64: 1, 128>}, {transform_indices = @transform_10, window_bounds = array<i64: 1, 8, 128>}, {transform_indices = @transform_11, window_bounds = array<i64: 1, 8, 128>}]} {
    %c0 = arith.constant 0 : index
    %c0_0 = arith.constant 0 : index
    %c0_1 = arith.constant 0 : index
    %0 = vector.load %arg2[%c0, %c0_0, %c0_1] : memref<1x8x128xf32, #tpu.memory_space<vmem>>, vector<1x8x128xf32>
    %1 = vector.shape_cast %0 : vector<1x8x128xf32> to vector<8x128xf32>
    %c0_2 = arith.constant 0 : index
    %c0_3 = arith.constant 0 : index
    %2 = vector.load %arg6[%c0_2, %c0_3] : memref<128x128xf32, #tpu.memory_space<vmem>>, vector<128x128xf32>
    %cst = arith.constant dense<0.000000e+00> : vector<8x128xf32>
    %3 = tpu.matmul %1, %2, %cst {dimension_numbers = #tpu.dot_dimension_numbers<[1], [0], [0], [1], [0, 0, 1, 1], [], []>} : vector<8x128xf32>, vector<128x128xf32>, vector<8x128xf32> -> vector<8x128xf32>
    %c0_4 = arith.constant 0 : index
    %c0_5 = arith.constant 0 : index
    %4 = vector.load %arg7[%c0_4, %c0_5] : memref<1x128xf32, #tpu.memory_space<vmem>>, vector<1x128xf32>
    %5 = vector.broadcast %4 : vector<1x128xf32> to vector<8x128xf32>
    %6 = arith.addf %3, %5 : vector<8x128xf32>
    %cst_6 = arith.constant 0.000000e+00 : f32
    %7 = vector.broadcast %cst_6 : f32 to vector<8x128xf32>
    %c0_7 = arith.constant 0 : index
    %c0_8 = arith.constant 0 : index
    %c0_9 = arith.constant 0 : index
    %8 = vector.load %arg4[%c0_7, %c0_8, %c0_9] : memref<1x128x128xf32, #tpu.memory_space<vmem>>, vector<1x128x128xf32>
    %9 = vector.shape_cast %8 : vector<1x128x128xf32> to vector<128x128xf32>
    %c0_10 = arith.constant 0 : index
    %c0_11 = arith.constant 0 : index
    %10 = vector.load %arg8[%c0_10, %c0_11] : memref<1x128xf32, #tpu.memory_space<vmem>>, vector<1x128xf32>
    %11 = vector.shape_cast %6 : vector<8x128xf32> to vector<8x1x128xf32>
    %12 = vector.shape_cast %9 : vector<128x128xf32> to vector<1x128x128xf32>
    %13 = vector.broadcast %11 : vector<8x1x128xf32> to vector<8x128x128xf32>
    %14 = vector.broadcast %12 : vector<1x128x128xf32> to vector<8x128x128xf32>
    %15 = arith.addf %13, %14 : vector<8x128x128xf32>
    %16 = math.tanh %15 : vector<8x128x128xf32>
    %17 = vector.shape_cast %10 : vector<1x128xf32> to vector<1x1x128xf32>
    %18 = vector.broadcast %17 : vector<1x1x128xf32> to vector<8x128x128xf32>
    %19 = arith.mulf %16, %18 : vector<8x128x128xf32>
    %cst_12 = arith.constant dense<0.000000e+00> : vector<8x128xf32>
    %20 = vector.multi_reduction <add>, %19, %cst_12 [2] : vector<8x128x128xf32> to vector<8x128xf32>
    %21 = arith.addf %7, %20 : vector<8x128xf32>
    %c0_13 = arith.constant 0 : index
    %c0_14 = arith.constant 0 : index
    %c0_15 = arith.constant 0 : index
    %22 = vector.load %arg5[%c0_13, %c0_14, %c0_15] : memref<1x1x128xf32, #tpu.memory_space<vmem>>, vector<1x1x128xf32>
    %23 = vector.shape_cast %22 : vector<1x1x128xf32> to vector<1x128xf32>
    %24 = vector.broadcast %23 : vector<1x128xf32> to vector<8x128xf32>
    %25 = arith.addf %21, %24 : vector<8x128xf32>
    %cst_16 = arith.constant dense<0xFF800000> : vector<8xf32>
    %26 = vector.multi_reduction <maximumf>, %25, %cst_16 [1] : vector<8x128xf32> to vector<8xf32>
    %27 = vector.shape_cast %26 : vector<8xf32> to vector<8x1xf32>
    %28 = vector.broadcast %27 : vector<8x1xf32> to vector<8x128xf32>
    %29 = arith.subf %25, %28 : vector<8x128xf32>
    %30 = math.exp %29 : vector<8x128xf32>
    %cst_17 = arith.constant dense<0.000000e+00> : vector<8xf32>
    %31 = vector.multi_reduction <add>, %30, %cst_17 [1] : vector<8x128xf32> to vector<8xf32>
    %32 = vector.shape_cast %31 : vector<8xf32> to vector<8x1xf32>
    %33 = tpu.reciprocal %32 : vector<8x1xf32> -> vector<8x1xf32>
    %34 = vector.broadcast %33 : vector<8x1xf32> to vector<8x128xf32>
    %35 = arith.mulf %30, %34 : vector<8x128xf32>
    %c0_18 = arith.constant 0 : index
    %c0_19 = arith.constant 0 : index
    %c0_20 = arith.constant 0 : index
    %36 = vector.load %arg13[%c0_18, %c0_19, %c0_20] : memref<1x8x128xf32, #tpu.memory_space<vmem>>, vector<1x8x128xf32>
    %37 = vector.shape_cast %36 : vector<1x8x128xf32> to vector<8x128xf32>
    %38 = vector.shape_cast %35 : vector<8x128xf32> to vector<1x8x128xf32>
    tpu.vector_store %arg13[%c0_18, %c0_19, %c0_20], %38 {strides = array<i32>} : memref<1x8x128xf32, #tpu.memory_space<vmem>>, vector<1x8x128xf32>,
    %c0_21 = arith.constant 0 : index
    %c0_22 = arith.constant 0 : index
    %c0_23 = arith.constant 0 : index
    %39 = vector.load %arg3[%c0_21, %c0_22, %c0_23] : memref<1x128x128xf32, #tpu.memory_space<vmem>>, vector<1x128x128xf32>
    %40 = vector.shape_cast %39 : vector<1x128x128xf32> to vector<128x128xf32>
    %cst_24 = arith.constant dense<0.000000e+00> : vector<8x128xf32>
    %41 = tpu.matmul %35, %40, %cst_24 {dimension_numbers = #tpu.dot_dimension_numbers<[1], [0], [0], [1], [0, 0, 1, 1], [], []>} : vector<8x128xf32>, vector<128x128xf32>, vector<8x128xf32> -> vector<8x128xf32>
    %c0_25 = arith.constant 0 : index
    %c0_26 = arith.constant 0 : index
    %42 = vector.load %arg9[%c0_25, %c0_26] : memref<128x128xf32, #tpu.memory_space<vmem>>, vector<128x128xf32>
    %cst_27 = arith.constant dense<0.000000e+00> : vector<8x128xf32>
    %43 = tpu.matmul %41, %42, %cst_27 {dimension_numbers = #tpu.dot_dimension_numbers<[1], [0], [0], [1], [0, 0, 1, 1], [], []>} : vector<8x128xf32>, vector<128x128xf32>, vector<8x128xf32> -> vector<8x128xf32>
    %c0_28 = arith.constant 0 : index
    %c0_29 = arith.constant 0 : index
    %44 = vector.load %arg10[%c0_28, %c0_29] : memref<128x128xf32, #tpu.memory_space<vmem>>, vector<128x128xf32>
    %cst_30 = arith.constant dense<0.000000e+00> : vector<8x128xf32>
    %45 = tpu.matmul %1, %44, %cst_30 {dimension_numbers = #tpu.dot_dimension_numbers<[1], [0], [0], [1], [0, 0, 1, 1], [], []>} : vector<8x128xf32>, vector<128x128xf32>, vector<8x128xf32> -> vector<8x128xf32>
    %46 = arith.addf %43, %45 : vector<8x128xf32>
    %c0_31 = arith.constant 0 : index
    %c0_32 = arith.constant 0 : index
    %47 = vector.load %arg11[%c0_31, %c0_32] : memref<1x128xf32, #tpu.memory_space<vmem>>, vector<1x128xf32>
    %48 = vector.broadcast %47 : vector<1x128xf32> to vector<8x128xf32>
    %49 = arith.addf %46, %48 : vector<8x128xf32>
    %c0_33 = arith.constant 0 : index
    %c0_34 = arith.constant 0 : index
    %c0_35 = arith.constant 0 : index
    %50 = vector.load %arg12[%c0_33, %c0_34, %c0_35] : memref<1x8x128xf32, #tpu.memory_space<vmem>>, vector<1x8x128xf32>
    %51 = vector.shape_cast %50 : vector<1x8x128xf32> to vector<8x128xf32>
    %52 = vector.shape_cast %49 : vector<8x128xf32> to vector<1x8x128xf32>
    tpu.vector_store %arg12[%c0_33, %c0_34, %c0_35], %52 {strides = array<i32>} : memref<1x8x128xf32, #tpu.memory_space<vmem>>, vector<1x8x128xf32>,
    return
  }
  func.func @transform_0(%arg0: i32, %arg1: i32) -> (i32, i32, i32) {
    %c0_i32 = arith.constant 0 : i32
    %c0_i32_0 = arith.constant 0 : i32
    return %arg0, %arg1, %c0_i32 : i32, i32, i32
  }
  func.func @transform_1(%arg0: i32, %arg1: i32) -> (i32, i32, i32) {
    %c0_i32 = arith.constant 0 : i32
    %c0_i32_0 = arith.constant 0 : i32
    %c0_i32_1 = arith.constant 0 : i32
    return %arg0, %c0_i32, %c0_i32_0 : i32, i32, i32
  }
  func.func @transform_2(%arg0: i32, %arg1: i32) -> (i32, i32, i32) {
    %c0_i32 = arith.constant 0 : i32
    %c0_i32_0 = arith.constant 0 : i32
    %c0_i32_1 = arith.constant 0 : i32
    return %arg0, %c0_i32, %c0_i32_0 : i32, i32, i32
  }
  func.func @transform_3(%arg0: i32, %arg1: i32) -> (i32, i32, i32) {
    %c0_i32 = arith.constant 0 : i32
    %c0_i32_0 = arith.constant 0 : i32
    %c0_i32_1 = arith.constant 0 : i32
    return %arg0, %c0_i32, %c0_i32_0 : i32, i32, i32
  }
  func.func @transform_4(%arg0: i32, %arg1: i32) -> (i32, i32) {
    %c0_i32 = arith.constant 0 : i32
    %c0_i32_0 = arith.constant 0 : i32
    %c0_i32_1 = arith.constant 0 : i32
    return %c0_i32, %c0_i32_0 : i32, i32
  }
  func.func @transform_5(%arg0: i32, %arg1: i32) -> (i32, i32) {
    %c0_i32 = arith.constant 0 : i32
    %c0_i32_0 = arith.constant 0 : i32
    %c0_i32_1 = arith.constant 0 : i32
    return %c0_i32, %c0_i32_0 : i32, i32
  }
  func.func @transform_6(%arg0: i32, %arg1: i32) -> (i32, i32) {
    %c0_i32 = arith.constant 0 : i32
    %c0_i32_0 = arith.constant 0 : i32
    %c0_i32_1 = arith.constant 0 : i32
    return %c0_i32, %c0_i32_0 : i32, i32
  }
  func.func @transform_7(%arg0: i32, %arg1: i32) -> (i32, i32) {
    %c0_i32 = arith.constant 0 : i32
    %c0_i32_0 = arith.constant 0 : i32
    %c0_i32_1 = arith.constant 0 : i32
    return %c0_i32, %c0_i32_0 : i32, i32
  }
  func.func @transform_8(%arg0: i32, %arg1: i32) -> (i32, i32) {
    %c0_i32 = arith.constant 0 : i32
    %c0_i32_0 = arith.constant 0 : i32
    %c0_i32_1 = arith.constant 0 : i32
    return %c0_i32, %c0_i32_0 : i32, i32
  }
  func.func @transform_9(%arg0: i32, %arg1: i32) -> (i32, i32) {
    %c0_i32 = arith.constant 0 : i32
    %c0_i32_0 = arith.constant 0 : i32
    %c0_i32_1 = arith.constant 0 : i32
    return %c0_i32, %c0_i32_0 : i32, i32
  }
  func.func @transform_10(%arg0: i32, %arg1: i32) -> (i32, i32, i32) {
    %c0_i32 = arith.constant 0 : i32
    %c0_i32_0 = arith.constant 0 : i32
    return %arg0, %arg1, %c0_i32 : i32, i32, i32
  }
  func.func @transform_11(%arg0: i32, %arg1: i32) -> (i32, i32, i32) {
    %c0_i32 = arith.constant 0 : i32
    %c0_i32_0 = arith.constant 0 : i32
    return %arg0, %arg1, %c0_i32 : i32, i32, i32
  }
}

</mosaic_0001>

<llo_original>
// kernel: tpu_custom_call.1
$region0: #{tpu_custom_call.1}
  #allocation0 [shape = 'u32[]', space=smem, size = 0x4, offset = 0x4, fixed_abs, tag = 'smem constant byte address 0x4 - core index']
  #allocation1 [shape = 'u32[144,128]{1,0:T(1,128)}', space=vmem, size = 0x12000, scoped, tag = 'internal scratch']
  #allocation2 [shape = 'f32[8,128]{1,0:T(8,128)}', space=vmem, size = 0x1000, scoped, tag = 'scratch operand']
  %s0 = inlined_call_operand.hbm [shape: f32[2,8,128], index: 0, kind: input, shape index: {}]
  %s1 = inlined_call_operand.hbm [shape: f32[2,128,128], index: 1, kind: input, shape index: {}]
  %s2 = inlined_call_operand.hbm [shape: f32[2,128,128], index: 2, kind: input, shape index: {}]
  %s3 = inlined_call_operand.vmem [shape: f32[2,1,128], index: 3, kind: input, shape index: {}]
  %s4 = inlined_call_operand.hbm [shape: f32[128,128], index: 4, kind: input, shape index: {}]
  %s5 = inlined_call_operand.vmem [shape: f32[1,128], index: 5, kind: input, shape index: {}]
  %s6 = inlined_call_operand.vmem [shape: f32[1,128], index: 6, kind: input, shape index: {}]
  %s7 = inlined_call_operand.hbm [shape: f32[128,128], index: 7, kind: input, shape index: {}]
  %s8 = inlined_call_operand.hbm [shape: f32[128,128], index: 8, kind: input, shape index: {}]
  %s9 = inlined_call_operand.vmem [shape: f32[1,128], index: 9, kind: input, shape index: {}]
  %s10 = inlined_call_operand.hbm [shape: f32[2,8,128], index: 10, kind: output, shape index: {0}]
  %s11 = inlined_call_operand.hbm [shape: f32[2,8,128], index: 11, kind: output, shape index: {1}]
  %12 = xla_tuple %s10, %s11
  %s13 = sld [smem:[#allocation0]]
  $region105: #{tpu_custom_call.1} parent=0
    _
  %s15 = ssub.s32 1, %s13
  %s16 = scalar_select 0, %s15, %s13
  $region1: #{tpu_custom_call.1} parent=0
    #allocation3 [shape = 'u8[8192]{0}', space=vmem, size = 0x2000, scoped, tag = 'input window, operand 0']
    #allocation4 [shape = 's32[2]{0}', space=sflag, size = 0x8, scoped, tag = 'scoped memory for tpu_custom_call.1']
    #allocation5 [shape = 's32[2]{0}', space=sflag, size = 0x8, scoped, tag = 'scoped memory for tpu_custom_call.1']
    #allocation6 [shape = 'u8[131072]{0}', space=vmem, size = 0x20000, scoped, tag = 'input window, operand 1']
    #allocation7 [shape = 's32[2]{0}', space=sflag, size = 0x8, scoped, tag = 'scoped memory for tpu_custom_call.1']
    #allocation8 [shape = 'u8[131072]{0}', space=vmem, size = 0x20000, scoped, tag = 'input window, operand 2']
    #allocation9 [shape = 'u8[65536]{0}', space=vmem, size = 0x10000, scoped, tag = 'input window, operand 4, single buffered']
    #allocation10 [shape = 's32[1]{0}', space=sflag, size = 0x4, scoped, tag = 'scoped memory for tpu_custom_call.1']
    #allocation11 [shape = 'u8[65536]{0}', space=vmem, size = 0x10000, scoped, tag = 'input window, operand 7, single buffered']
    #allocation12 [shape = 'u8[65536]{0}', space=vmem, size = 0x10000, scoped, tag = 'input window, operand 8, single buffered']
    #allocation13 [shape = 's32[1]{0}', space=sflag, size = 0x4, scoped, tag = 'scoped memory for tpu_custom_call.1']
    #allocation14 [shape = 'u8[8192]{0}', space=vmem, size = 0x2000, scoped, tag = 'output window, operand 0']
    #allocation15 [shape = 'u8[8192]{0}', space=vmem, size = 0x2000, scoped, tag = 'output window, operand 1']
    #allocation16 [shape = 's32[2]{0}', space=sflag, size = 0x8, scoped, tag = 'scoped memory for tpu_custom_call.1']
    %17 = vsyncpa [#allocation4], 0
    %s18 = scalar_lea.sflag [#allocation4], 1
    %19 = vsyncpa %s18, 0
    %20 = vsyncpa [#allocation7], 0
    %s21 = scalar_lea.sflag [#allocation7], 1
    %22 = vsyncpa %s21, 0
    %23 = vsyncpa [#allocation10], 0
    %24 = vsyncpa [#allocation13], 0
    %25 = vsyncpa [#allocation5], 0
    %s26 = scalar_lea.sflag [#allocation5], 1
    %27 = vsyncpa %s26, 0
    %28 = vsyncpa [#allocation16], 0
    %s29 = scalar_lea.sflag [#allocation16], 1
    %30 = vsyncpa %s29, 0
    loop: start=0, step=1, limit=4
    $region2: #{tpu_custom_call.1} parent=1 // loop_pre_header
      _
    $region3: #{tpu_custom_call.1} parent=1 // loop_header
      %s32 = sphi 0, %s36
      %p33 = scmp.ge.s32.totalorder %s32, 4
      %s39 = sphi 0, %s51
      %s40 = sphi 0, %s47
      %s41 = sphi 0, %s39
      %s42 = sphi 0, %s40
      %s43 = sphi 0, %s41
      %s44 = sphi 0, %s42
      %s56 = sphi 0, %s58
      %s59 = sphi 0, %s56
      %s60 = sphi 0, %s59
      %s76 = sphi 0, %s60
      %s82 = sphi 0, %s84
      %s85 = sphi 0, %s82
      %s86 = sphi 0, %s85
      %s102 = sphi 0, %s86
      %s108 = sphi 0, %s110
      %s111 = sphi 0, %s108
      %s112 = sphi 0, %s111
      %s128 = sphi 0, %s112
      %s134 = sphi 0, %s136
      %s137 = sphi 0, %s134
      %s138 = sphi 0, %s137
      %s154 = sphi 0, %s138
      %s158 = sphi 0, %s158
      %s160 = sphi 0, %s158
      %s161 = sphi 0, %s160
      %s175 = sphi 0, %s161
      %s179 = sphi 0, %s179
      %s181 = sphi 0, %s179
      %s182 = sphi 0, %s181
      %s196 = sphi 0, %s182
      %s200 = sphi 0, %s200
      %s202 = sphi 0, %s200
      %s203 = sphi 0, %s202
      %s217 = sphi 0, %s203
      %s221 = sphi 0, %s221
      %s223 = sphi 0, %s221
      %s224 = sphi 0, %s223
      %s238 = sphi 0, %s224
      %s242 = sphi 0, %s242
      %s244 = sphi 0, %s242
      %s245 = sphi 0, %s244
      %s259 = sphi 0, %s245
      %s263 = sphi 0, %s263
      %s265 = sphi 0, %s263
      %s266 = sphi 0, %s265
      %s280 = sphi 0, %s266
      %s288 = sphi 0, %s290
      %s291 = sphi 0, %s288
      %s292 = sphi 0, %s291
      %s308 = sphi 0, %s292
      %s316 = sphi 0, %s318
      %s319 = sphi 0, %s316
      %s320 = sphi 0, %s319
      %s336 = sphi 0, %s320
    $region4: #{tpu_custom_call.1} parent=1 // loop_header_branch
      %35 = sbr.rel (%p33) target = $region8
    $region5: #{tpu_custom_call.1} parent=1 // loop_body
      %s37 = ssub.s32 %s32, 1
      %s38 = ssub.s32 %s32, 2
      %s45 = sadd.s32 1, %s40
      %p46 = scmp.ge.s32.totalorder %s45, 1
      %s47 = scalar_select %p46, 0, %s45
      %s48 = sadd.s32 1, %s39
      %s49 = scalar_select %p46, %s48, %s39
      %p50 = scmp.ge.s32.totalorder %s49, 2
      %s51 = scalar_select %p50, 0, %s49
      %s52 = ssub.s32 %s39, %s51
      %s53 = ssub.s32 %s40, %s47
      %s54 = sor.u32 %s52, %s53
      %p55 = scmp.eq.s32.totalorder %s54, 0
      %s57 = sadd.s32 %s56, 1
      %s58 = scalar_select %p55, %s56, %s57
      %p61 = pneg %p55
      %p62 = scmp.eq.s32.totalorder %s32, 1
      %p63 = por %p61, %p62
      %p64 = scmp.ne.s32.totalorder %s56, %s59
      %p65 = scmp.eq.s32.totalorder %s32, 0
      %p66 = por %p64, %p65
      %p67 = scmp.ne.s32.totalorder %s56, %s59
      %p68 = scmp.eq.s32.totalorder %s37, 1
      %p69 = por %p67, %p68
      %p70 = scmp.ne.s32.totalorder %s59, %s60
      %p71 = scmp.eq.s32.totalorder %s37, 0
      %p72 = por %p70, %p71
      %p73 = scmp.ne.s32.totalorder %s59, %s60
      %p74 = scmp.eq.s32.totalorder %s38, 1
      %p75 = por %p73, %p74
      %p77 = scmp.ne.s32.totalorder %s60, %s76
      %p78 = scmp.eq.s32.totalorder %s38, 0
      %p79 = por %p77, %p78
      %s80 = ssub.s32 %s39, %s51
      %p81 = scmp.eq.s32.totalorder %s80, 0
      %s83 = sadd.s32 %s82, 1
      %s84 = scalar_select %p81, %s82, %s83
      %p87 = pneg %p81
      %p88 = scmp.eq.s32.totalorder %s32, 1
      %p89 = por %p87, %p88
      %p90 = scmp.ne.s32.totalorder %s82, %s85
      %p91 = scmp.eq.s32.totalorder %s32, 0
      %p92 = por %p90, %p91
      %p93 = scmp.ne.s32.totalorder %s82, %s85
      %p94 = scmp.eq.s32.totalorder %s37, 1
      %p95 = por %p93, %p94
      %p96 = scmp.ne.s32.totalorder %s85, %s86
      %p97 = scmp.eq.s32.totalorder %s37, 0
      %p98 = por %p96, %p97
      %p99 = scmp.ne.s32.totalorder %s85, %s86
      %p100 = scmp.eq.s32.totalorder %s38, 1
      %p101 = por %p99, %p100
      %p103 = scmp.ne.s32.totalorder %s86, %s102
      %p104 = scmp.eq.s32.totalorder %s38, 0
      %p105 = por %p103, %p104
      %s106 = ssub.s32 %s39, %s51
      %p107 = scmp.eq.s32.totalorder %s106, 0
      %s109 = sadd.s32 %s108, 1
      %s110 = scalar_select %p107, %s108, %s109
      %p113 = pneg %p107
      %p114 = scmp.eq.s32.totalorder %s32, 1
      %p115 = por %p113, %p114
      %p116 = scmp.ne.s32.totalorder %s108, %s111
      %p117 = scmp.eq.s32.totalorder %s32, 0
      %p118 = por %p116, %p117
      %p119 = scmp.ne.s32.totalorder %s108, %s111
      %p120 = scmp.eq.s32.totalorder %s37, 1
      %p121 = por %p119, %p120
      %p122 = scmp.ne.s32.totalorder %s111, %s112
      %p123 = scmp.eq.s32.totalorder %s37, 0
      %p124 = por %p122, %p123
      %p125 = scmp.ne.s32.totalorder %s111, %s112
      %p126 = scmp.eq.s32.totalorder %s38, 1
      %p127 = por %p125, %p126
      %p129 = scmp.ne.s32.totalorder %s112, %s128
      %p130 = scmp.eq.s32.totalorder %s38, 0
      %p131 = por %p129, %p130
      %s132 = ssub.s32 %s39, %s51
      %p133 = scmp.eq.s32.totalorder %s132, 0
      %s135 = sadd.s32 %s134, 1
      %s136 = scalar_select %p133, %s134, %s135
      %p139 = pneg %p133
      %p140 = scmp.eq.s32.totalorder %s32, 1
      %p141 = por %p139, %p140
      %p142 = scmp.ne.s32.totalorder %s134, %s137
      %p143 = scmp.eq.s32.totalorder %s32, 0
      %p144 = por %p142, %p143
      %p145 = scmp.ne.s32.totalorder %s134, %s137
      %p146 = scmp.eq.s32.totalorder %s37, 1
      %p147 = por %p145, %p146
      %p148 = scmp.ne.s32.totalorder %s137, %s138
      %p149 = scmp.eq.s32.totalorder %s37, 0
      %p150 = por %p148, %p149
      %p151 = scmp.ne.s32.totalorder %s137, %s138
      %p152 = scmp.eq.s32.totalorder %s38, 1
      %p153 = por %p151, %p152
      %p155 = scmp.ne.s32.totalorder %s138, %s154
      %p156 = scmp.eq.s32.totalorder %s38, 0
      %p157 = por %p155, %p156
      %s159 = sadd.s32 %s158, 1
      %p162 = scmp.eq.s32.totalorder %s32, 1
      %p163 = scmp.ne.s32.totalorder %s158, %s160
      %p164 = scmp.eq.s32.totalorder %s32, 0
      %p165 = por %p163, %p164
      %p166 = scmp.ne.s32.totalorder %s158, %s160
      %p167 = scmp.eq.s32.totalorder %s37, 1
      %p168 = por %p166, %p167
      %p169 = scmp.ne.s32.totalorder %s160, %s161
      %p170 = scmp.eq.s32.totalorder %s37, 0
      %p171 = por %p169, %p170
      %p172 = scmp.ne.s32.totalorder %s160, %s161
      %p173 = scmp.eq.s32.totalorder %s38, 1
      %p174 = por %p172, %p173
      %p176 = scmp.ne.s32.totalorder %s161, %s175
      %p177 = scmp.eq.s32.totalorder %s38, 0
      %p178 = por %p176, %p177
      %s180 = sadd.s32 %s179, 1
      %p183 = scmp.eq.s32.totalorder %s32, 1
      %p184 = scmp.ne.s32.totalorder %s179, %s181
      %p185 = scmp.eq.s32.totalorder %s32, 0
      %p186 = por %p184, %p185
      %p187 = scmp.ne.s32.totalorder %s179, %s181
      %p188 = scmp.eq.s32.totalorder %s37, 1
      %p189 = por %p187, %p188
      %p190 = scmp.ne.s32.totalorder %s181, %s182
      %p191 = scmp.eq.s32.totalorder %s37, 0
      %p192 = por %p190, %p191
      %p193 = scmp.ne.s32.totalorder %s181, %s182
      %p194 = scmp.eq.s32.totalorder %s38, 1
      %p195 = por %p193, %p194
      %p197 = scmp.ne.s32.totalorder %s182, %s196
      %p198 = scmp.eq.s32.totalorder %s38, 0
      %p199 = por %p197, %p198
      %s201 = sadd.s32 %s200, 1
      %p204 = scmp.eq.s32.totalorder %s32, 1
      %p205 = scmp.ne.s32.totalorder %s200, %s202
      %p206 = scmp.eq.s32.totalorder %s32, 0
      %p207 = por %p205, %p206
      %p208 = scmp.ne.s32.totalorder %s200, %s202
      %p209 = scmp.eq.s32.totalorder %s37, 1
      %p210 = por %p208, %p209
      %p211 = scmp.ne.s32.totalorder %s202, %s203
      %p212 = scmp.eq.s32.totalorder %s37, 0
      %p213 = por %p211, %p212
      %p214 = scmp.ne.s32.totalorder %s202, %s203
      %p215 = scmp.eq.s32.totalorder %s38, 1
      %p216 = por %p214, %p215
      %p218 = scmp.ne.s32.totalorder %s203, %s217
      %p219 = scmp.eq.s32.totalorder %s38, 0
      %p220 = por %p218, %p219
      %s222 = sadd.s32 %s221, 1
      %p225 = scmp.eq.s32.totalorder %s32, 1
      %p226 = scmp.ne.s32.totalorder %s221, %s223
      %p227 = scmp.eq.s32.totalorder %s32, 0
      %p228 = por %p226, %p227
      %p229 = scmp.ne.s32.totalorder %s221, %s223
      %p230 = scmp.eq.s32.totalorder %s37, 1
      %p231 = por %p229, %p230
      %p232 = scmp.ne.s32.totalorder %s223, %s224
      %p233 = scmp.eq.s32.totalorder %s37, 0
      %p234 = por %p232, %p233
      %p235 = scmp.ne.s32.totalorder %s223, %s224
      %p236 = scmp.eq.s32.totalorder %s38, 1
      %p237 = por %p235, %p236
      %p239 = scmp.ne.s32.totalorder %s224, %s238
      %p240 = scmp.eq.s32.totalorder %s38, 0
      %p241 = por %p239, %p240
      %s243 = sadd.s32 %s242, 1
      %p246 = scmp.eq.s32.totalorder %s32, 1
      %p247 = scmp.ne.s32.totalorder %s242, %s244
      %p248 = scmp.eq.s32.totalorder %s32, 0
      %p249 = por %p247, %p248
      %p250 = scmp.ne.s32.totalorder %s242, %s244
      %p251 = scmp.eq.s32.totalorder %s37, 1
      %p252 = por %p250, %p251
      %p253 = scmp.ne.s32.totalorder %s244, %s245
      %p254 = scmp.eq.s32.totalorder %s37, 0
      %p255 = por %p253, %p254
      %p256 = scmp.ne.s32.totalorder %s244, %s245
      %p257 = scmp.eq.s32.totalorder %s38, 1
      %p258 = por %p256, %p257
      %p260 = scmp.ne.s32.totalorder %s245, %s259
      %p261 = scmp.eq.s32.totalorder %s38, 0
      %p262 = por %p260, %p261
      %s264 = sadd.s32 %s263, 1
      %p267 = scmp.eq.s32.totalorder %s32, 1
      %p268 = scmp.ne.s32.totalorder %s263, %s265
      %p269 = scmp.eq.s32.totalorder %s32, 0
      %p270 = por %p268, %p269
      %p271 = scmp.ne.s32.totalorder %s263, %s265
      %p272 = scmp.eq.s32.totalorder %s37, 1
      %p273 = por %p271, %p272
      %p274 = scmp.ne.s32.totalorder %s265, %s266
      %p275 = scmp.eq.s32.totalorder %s37, 0
      %p276 = por %p274, %p275
      %p277 = scmp.ne.s32.totalorder %s265, %s266
      %p278 = scmp.eq.s32.totalorder %s38, 1
      %p279 = por %p277, %p278
      %p281 = scmp.ne.s32.totalorder %s266, %s280
      %p282 = scmp.eq.s32.totalorder %s38, 0
      %p283 = por %p281, %p282
      %s284 = ssub.s32 %s39, %s51
      %s285 = ssub.s32 %s40, %s47
      %s286 = sor.u32 %s284, %s285
      %p287 = scmp.eq.s32.totalorder %s286, 0
      %s289 = sadd.s32 %s288, 1
      %s290 = scalar_select %p287, %s288, %s289
      %p293 = pneg %p287
      %p294 = scmp.eq.s32.totalorder %s32, 1
      %p295 = por %p293, %p294
      %p296 = scmp.ne.s32.totalorder %s288, %s291
      %p297 = scmp.eq.s32.totalorder %s32, 0
      %p298 = por %p296, %p297
      %p299 = scmp.ne.s32.totalorder %s288, %s291
      %p300 = scmp.eq.s32.totalorder %s37, 1
      %p301 = por %p299, %p300
      %p302 = scmp.ne.s32.totalorder %s291, %s292
      %p303 = scmp.eq.s32.totalorder %s37, 0
      %p304 = por %p302, %p303
      %p305 = scmp.ne.s32.totalorder %s291, %s292
      %p306 = scmp.eq.s32.totalorder %s38, 1
      %p307 = por %p305, %p306
      %p309 = scmp.ne.s32.totalorder %s292, %s308
      %p310 = scmp.eq.s32.totalorder %s38, 0
      %p311 = por %p309, %p310
      %s312 = ssub.s32 %s39, %s51
      %s313 = ssub.s32 %s40, %s47
      %s314 = sor.u32 %s312, %s313
      %p315 = scmp.eq.s32.totalorder %s314, 0
      %s317 = sadd.s32 %s316, 1
      %s318 = scalar_select %p315, %s316, %s317
      %p321 = pneg %p315
      %p322 = scmp.eq.s32.totalorder %s32, 1
      %p323 = por %p321, %p322
      %p324 = scmp.ne.s32.totalorder %s316, %s319
      %p325 = scmp.eq.s32.totalorder %s32, 0
      %p326 = por %p324, %p325
      %p327 = scmp.ne.s32.totalorder %s316, %s319
      %p328 = scmp.eq.s32.totalorder %s37, 1
      %p329 = por %p327, %p328
      %p330 = scmp.ne.s32.totalorder %s319, %s320
      %p331 = scmp.eq.s32.totalorder %s37, 0
      %p332 = por %p330, %p331
      %p333 = scmp.ne.s32.totalorder %s319, %s320
      %p334 = scmp.eq.s32.totalorder %s38, 1
      %p335 = por %p333, %p334
      %p337 = scmp.ne.s32.totalorder %s320, %s336
      %p338 = scmp.eq.s32.totalorder %s38, 0
      %p339 = por %p337, %p338
      %p340 = scmp.le.s32.totalorder 1, %s32
      %p341 = scmp.lt.s32.totalorder %s32, 3
      %p342 = pnand %p340, %p341
      %p343 = pneg %p342
      // Predicated region
      $region9: #{tpu_custom_call.1} parent=5 // pred_check
        _
      $region10: #{tpu_custom_call.1} parent=5 // pred_check_branch
        %345 = sbr.rel (%p342) target = $region12
      $region11: #{tpu_custom_call.1} parent=5 // pred_region
        %s346 = ssub.s32 %s32, 1
        // Predicated region
        $region13: #{tpu_custom_call.1} parent=11 // pred_check
          %p347 = pneg %p171
        $region14: #{tpu_custom_call.1} parent=11 // pred_check_branch
          %349 = sbr.rel (%p347) target = $region16
        $region15: #{tpu_custom_call.1} parent=11 // pred_region
          %s351 = ssub.s32 2048, 2048
          %352 = vsyncadd [#allocation10], %s351
          %s353 = sshll.u32 [#allocation9], 4
          %s354 = int_to_ptr.vmem [resolvable:$true] %s353
          %359 = dma.hbm_to_vmem [thread:$0]  %s4, 2048, %s354, [#allocation10], 128, 128, 8
        $region16: #{tpu_custom_call.1} parent=11 // pred_fallthru
          _
        // Predicated region
        $region17: #{tpu_custom_call.1} parent=11 // pred_check
          %p360 = pneg %p192
        $region18: #{tpu_custom_call.1} parent=11 // pred_check_branch
          %362 = sbr.rel (%p360) target = $region20
        $region19: #{tpu_custom_call.1} parent=11 // pred_region
          _
        $region20: #{tpu_custom_call.1} parent=11 // pred_fallthru
          _
        // Predicated region
        $region21: #{tpu_custom_call.1} parent=11 // pred_check
          %p363 = pneg %p213
        $region22: #{tpu_custom_call.1} parent=11 // pred_check_branch
          %365 = sbr.rel (%p363) target = $region24
        $region23: #{tpu_custom_call.1} parent=11 // pred_region
          _
        $region24: #{tpu_custom_call.1} parent=11 // pred_fallthru
          _
        // Predicated region
        $region25: #{tpu_custom_call.1} parent=11 // pred_check
          %p366 = pneg %p234
        $region26: #{tpu_custom_call.1} parent=11 // pred_check_branch
          %368 = sbr.rel (%p366) target = $region28
        $region27: #{tpu_custom_call.1} parent=11 // pred_region
          %s370 = ssub.s32 2048, 2048
          %371 = vsyncadd [#allocation10], %s370
          %s372 = sshll.u32 [#allocation11], 4
          %s373 = int_to_ptr.vmem [resolvable:$true] %s372
          %378 = dma.hbm_to_vmem [thread:$0]  %s7, 2048, %s373, [#allocation10], 128, 128, 8
        $region28: #{tpu_custom_call.1} parent=11 // pred_fallthru
          _
        // Predicated region
        $region29: #{tpu_custom_call.1} parent=11 // pred_check
          %p379 = pneg %p255
        $region30: #{tpu_custom_call.1} parent=11 // pred_check_branch
          %381 = sbr.rel (%p379) target = $region32
        $region31: #{tpu_custom_call.1} parent=11 // pred_region
          %s383 = ssub.s32 2048, 2048
          %384 = vsyncadd [#allocation13], %s383
          %s385 = sshll.u32 [#allocation12], 4
          %s386 = int_to_ptr.vmem [resolvable:$true] %s385
          %391 = dma.hbm_to_vmem [thread:$0]  %s8, 2048, %s386, [#allocation13], 128, 128, 8
        $region32: #{tpu_custom_call.1} parent=11 // pred_fallthru
          _
        // Predicated region
        $region33: #{tpu_custom_call.1} parent=11 // pred_check
          %p392 = pneg %p276
        $region34: #{tpu_custom_call.1} parent=11 // pred_check_branch
          %394 = sbr.rel (%p392) target = $region36
        $region35: #{tpu_custom_call.1} parent=11 // pred_region
          _
        $region36: #{tpu_custom_call.1} parent=11 // pred_fallthru
          _
      $region12: #{tpu_custom_call.1} parent=5 // pred_fallthru
        _
      %p395 = scmp.lt.s32.totalorder %s32, 2
      // Predicated region
      $region37: #{tpu_custom_call.1} parent=5 // pred_check
        %p396 = pneg %p395
      $region38: #{tpu_custom_call.1} parent=5 // pred_check_branch
        %398 = sbr.rel (%p396) target = $region40
      $region39: #{tpu_custom_call.1} parent=5 // pred_region
        // Predicated region
        $region41: #{tpu_custom_call.1} parent=39 // pred_check
          %p399 = pneg %p66
        $region42: #{tpu_custom_call.1} parent=39 // pred_check_branch
          %401 = sbr.rel (%p399) target = $region44
        $region43: #{tpu_custom_call.1} parent=39 // pred_region
          %s402 = sand.u32 %s56, 1
          %s403 = scalar_lea.sflag [#allocation4], %s402
          %s404 = sand.u32 %s56, 1
          %s405 = smul.addr %s404, 8
          %s406 = scalar_lea.vmem [#allocation3], %s405
          %s408 = ssub.s32 128, 128
          %409 = vsyncadd %s403, %s408
          %s410 = sadd.s32 %s40, %s39
          %s411 = smul.addr %s410, 128
          %s412 = scalar_lea.hbm %s0, %s411
          %s414 = sshll.u32 %s406, 4
          %s415 = int_to_ptr.vmem [resolvable:$true] %s414
          %417 = dma.hbm_to_vmem [thread:$0]  %s412, 128, %s415, %s403
        $region44: #{tpu_custom_call.1} parent=39 // pred_fallthru
          _
        // Predicated region
        $region45: #{tpu_custom_call.1} parent=39 // pred_check
          %p418 = pneg %p92
        $region46: #{tpu_custom_call.1} parent=39 // pred_check_branch
          %420 = sbr.rel (%p418) target = $region48
        $region47: #{tpu_custom_call.1} parent=39 // pred_region
          %s421 = sand.u32 %s32, 1
          %s422 = scalar_lea.sflag [#allocation7], %s421
          %s423 = sand.u32 %s82, 1
          %s424 = smul.addr %s423, 128
          %s425 = scalar_lea.vmem [#allocation6], %s424
          %s427 = ssub.s32 2048, 2048
          %428 = vsyncadd %s422, %s427
          %s429 = smul.addr %s39, 16
          %s430 = smul.addr %s429, 128
          %s431 = scalar_lea.hbm %s1, %s430
          %s432 = sshll.u32 %s425, 4
          %s433 = int_to_ptr.vmem [resolvable:$true] %s432
          %438 = dma.hbm_to_vmem [thread:$0]  %s431, 2048, %s433, %s422, 128, 128, 8
        $region48: #{tpu_custom_call.1} parent=39 // pred_fallthru
          _
        // Predicated region
        $region49: #{tpu_custom_call.1} parent=39 // pred_check
          %p439 = pneg %p118
        $region50: #{tpu_custom_call.1} parent=39 // pred_check_branch
          %441 = sbr.rel (%p439) target = $region52
        $region51: #{tpu_custom_call.1} parent=39 // pred_region
          %s442 = sand.u32 %s32, 1
          %s443 = scalar_lea.sflag [#allocation7], %s442
          %s444 = sand.u32 %s108, 1
          %s445 = smul.addr %s444, 128
          %s446 = scalar_lea.vmem [#allocation8], %s445
          %s448 = ssub.s32 2048, 2048
          %449 = vsyncadd %s443, %s448
          %s450 = smul.addr %s39, 16
          %s451 = smul.addr %s450, 128
          %s452 = scalar_lea.hbm %s2, %s451
          %s453 = sshll.u32 %s446, 4
          %s454 = int_to_ptr.vmem [resolvable:$true] %s453
          %459 = dma.hbm_to_vmem [thread:$0]  %s452, 2048, %s454, %s443, 128, 128, 8
        $region52: #{tpu_custom_call.1} parent=39 // pred_fallthru
          _
        // Predicated region
        $region53: #{tpu_custom_call.1} parent=39 // pred_check
          %p460 = pneg %p144
        $region54: #{tpu_custom_call.1} parent=39 // pred_check_branch
          %462 = sbr.rel (%p460) target = $region56
        $region55: #{tpu_custom_call.1} parent=39 // pred_region
          %p463 = scmp.lt.s32.totalorder %s39, 1
          %s464 = scalar_select %p463, %s39, 1
          %s465 = scalar_lea.vmem %s3, %s464
        $region56: #{tpu_custom_call.1} parent=39 // pred_fallthru
          _
      $region40: #{tpu_custom_call.1} parent=5 // pred_fallthru
        _
      %p466 = scmp.le.s32.totalorder 1, %s32
      %p467 = scmp.lt.s32.totalorder %s32, 3
      %p468 = pnand %p466, %p467
      %p469 = pneg %p468
      // Predicated region
      $region57: #{tpu_custom_call.1} parent=5 // pred_check
        _
      $region58: #{tpu_custom_call.1} parent=5 // pred_check_branch
        %471 = sbr.rel (%p468) target = $region60
      $region59: #{tpu_custom_call.1} parent=5 // pred_region
        %s472 = ssub.s32 %s32, 1
        %s473 = sand.u32 %s59, 1
        %s474 = scalar_lea.sflag [#allocation4], %s473
        %s475 = sand.u32 %s59, 1
        %s476 = smul.addr %s475, 8
        %s477 = scalar_lea.vmem [#allocation3], %s476
        // Predicated region
        $region61: #{tpu_custom_call.1} parent=59 // pred_check
          %p478 = pneg %p72
        $region62: #{tpu_custom_call.1} parent=59 // pred_check_branch
          %480 = sbr.rel (%p478) target = $region64
        $region63: #{tpu_custom_call.1} parent=59 // pred_region
          %481 = dma.done %s474, 128
        $region64: #{tpu_custom_call.1} parent=59 // pred_fallthru
          _
        %s482 = sand.u32 %s37, 1
        %s483 = scalar_lea.sflag [#allocation7], %s482
        %s484 = sand.u32 %s85, 1
        %s485 = smul.addr %s484, 128
        %s486 = scalar_lea.vmem [#allocation6], %s485
        // Predicated region
        $region65: #{tpu_custom_call.1} parent=59 // pred_check
          %p487 = pneg %p98
        $region66: #{tpu_custom_call.1} parent=59 // pred_check_branch
          %489 = sbr.rel (%p487) target = $region68
        $region67: #{tpu_custom_call.1} parent=59 // pred_region
          %490 = dma.done %s483, 2048
        $region68: #{tpu_custom_call.1} parent=59 // pred_fallthru
          _
        %s491 = sand.u32 %s37, 1
        %s492 = scalar_lea.sflag [#allocation7], %s491
        %s493 = sand.u32 %s111, 1
        %s494 = smul.addr %s493, 128
        %s495 = scalar_lea.vmem [#allocation8], %s494
        // Predicated region
        $region69: #{tpu_custom_call.1} parent=59 // pred_check
          %p496 = pneg %p124
        $region70: #{tpu_custom_call.1} parent=59 // pred_check_branch
          %498 = sbr.rel (%p496) target = $region72
        $region71: #{tpu_custom_call.1} parent=59 // pred_region
          %499 = dma.done %s492, 2048
        $region72: #{tpu_custom_call.1} parent=59 // pred_fallthru
          _
        // Predicated region
        $region73: #{tpu_custom_call.1} parent=59 // pred_check
          %p500 = pneg %p171
        $region74: #{tpu_custom_call.1} parent=59 // pred_check_branch
          %502 = sbr.rel (%p500) target = $region76
        $region75: #{tpu_custom_call.1} parent=59 // pred_region
          %503 = dma.done [#allocation10], 2048
        $region76: #{tpu_custom_call.1} parent=59 // pred_fallthru
          _
        // Predicated region
        $region77: #{tpu_custom_call.1} parent=59 // pred_check
          %p504 = pneg %p234
        $region78: #{tpu_custom_call.1} parent=59 // pred_check_branch
          %506 = sbr.rel (%p504) target = $region80
        $region79: #{tpu_custom_call.1} parent=59 // pred_region
          %507 = dma.done [#allocation10], 2048
        $region80: #{tpu_custom_call.1} parent=59 // pred_fallthru
          _
        // Predicated region
        $region81: #{tpu_custom_call.1} parent=59 // pred_check
          %p508 = pneg %p255
        $region82: #{tpu_custom_call.1} parent=59 // pred_check_branch
          %510 = sbr.rel (%p508) target = $region84
        $region83: #{tpu_custom_call.1} parent=59 // pred_region
          %511 = dma.done [#allocation13], 2048
        $region84: #{tpu_custom_call.1} parent=59 // pred_fallthru
          _
        %s512 = sand.u32 %s59, 1
        %s513 = scalar_lea.sflag [#allocation4], %s512
        %s514 = sand.u32 %s59, 1
        %s515 = smul.addr %s514, 8
        %s516 = scalar_lea.vmem [#allocation3], %s515
        %p517 = pneg %p72
        %p518 = pneg %p69
        %s519 = sand.u32 %s37, 1
        %s520 = scalar_lea.sflag [#allocation7], %s519
        %s521 = sand.u32 %s85, 1
        %s522 = smul.addr %s521, 128
        %s523 = scalar_lea.vmem [#allocation6], %s522
        %p524 = pneg %p98
        %p525 = pneg %p95
        %s526 = sand.u32 %s37, 1
        %s527 = scalar_lea.sflag [#allocation7], %s526
        %s528 = sand.u32 %s111, 1
        %s529 = smul.addr %s528, 128
        %s530 = scalar_lea.vmem [#allocation8], %s529
        %p531 = pneg %p124
        %p532 = pneg %p121
        %p533 = scmp.lt.s32.totalorder %s41, 1
        %s534 = scalar_select %p533, %s41, 1
        %s535 = scalar_lea.vmem %s3, %s534
        %p536 = pneg %p150
        %p537 = pneg %p147
        %p538 = pneg %p171
        %p539 = pneg %p168
        %p540 = pneg %p192
        %p541 = pneg %p189
        %p542 = pneg %p213
        %p543 = pneg %p210
        %p544 = pneg %p234
        %p545 = pneg %p231
        %p546 = pneg %p255
        %p547 = pneg %p252
        %p548 = pneg %p276
        %p549 = pneg %p273
        %p550 = pneg %p304
        %p551 = pneg %p301
        %s552 = sand.u32 %s291, 1
        %s553 = scalar_lea.sflag [#allocation5], %s552
        %s554 = sand.u32 %s291, 1
        %s555 = smul.addr %s554, 8
        %s556 = scalar_lea.vmem [#allocation14], %s555
        %p557 = pneg %p332
        %p558 = pneg %p329
        %s559 = sand.u32 %s319, 1
        %s560 = scalar_lea.sflag [#allocation16], %s559
        %s561 = sand.u32 %s319, 1
        %s562 = smul.addr %s561, 8
        %s563 = scalar_lea.vmem [#allocation15], %s562
        %p564 = scmp.lt.s32.totalorder %s41, 1
        %s565 = scalar_select %p564, %s41, 1
        %s566 = scalar_lea.vmem %s3, %s565
        %v567 = vld [vmem:[%s477] sm:$0xff]
        %v568 = vld [vmem:[#allocation9] sm:$0xff]
        %v569 = vld [vmem:[#allocation9 + $0x8] sm:$0xff]
        %v570 = vld [vmem:[#allocation9 + $0x10] sm:$0xff]
        %v571 = vld [vmem:[#allocation9 + $0x18] sm:$0xff]
        %v572 = vld [vmem:[#allocation9 + $0x20] sm:$0xff]
        %v573 = vld [vmem:[#allocation9 + $0x28] sm:$0xff]
        %v574 = vld [vmem:[#allocation9 + $0x30] sm:$0xff]
        %v575 = vld [vmem:[#allocation9 + $0x38] sm:$0xff]
        %v576 = vld [vmem:[#allocation9 + $0x40] sm:$0xff]
        %v577 = vld [vmem:[#allocation9 + $0x48] sm:$0xff]
        %v578 = vld [vmem:[#allocation9 + $0x50] sm:$0xff]
        %v579 = vld [vmem:[#allocation9 + $0x58] sm:$0xff]
        %v580 = vld [vmem:[#allocation9 + $0x60] sm:$0xff]
        %v581 = vld [vmem:[#allocation9 + $0x68] sm:$0xff]
        %v582 = vld [vmem:[#allocation9 + $0x70] sm:$0xff]
        %v583 = vld [vmem:[#allocation9 + $0x78] sm:$0xff]
        %v584 = vld [vmem:[%s5] sm:$0x1]
        %v586 = vlaneseq
        %v587 = vshrl.u32 %v586, 7
        %v588 = vsub.s32 0, %v587
        %v589 = vrot.slane %v584, %v588
        %591 = vmatprep.subr.mxu0 0.0
        %592 = vmatpush1.msra.mxu0 %v583
        %593 = vmatprep.subr.mxu0 0.0
        %594 = vmatpush1.msra.mxu0 %v582
        %595 = vmatprep.subr.mxu0 0.0
        %596 = vmatpush1.msra.mxu0 %v581
        %597 = vmatprep.subr.mxu0 0.0
        %598 = vmatpush1.msra.mxu0 %v580
        %599 = vmatprep.subr.mxu0 0.0
        %600 = vmatpush1.msra.mxu0 %v579
        %601 = vmatprep.subr.mxu0 0.0
        %602 = vmatpush1.msra.mxu0 %v578
        %603 = vmatprep.subr.mxu0 0.0
        %604 = vmatpush1.msra.mxu0 %v577
        %605 = vmatprep.subr.mxu0 0.0
        %606 = vmatpush1.msra.mxu0 %v576
        %607 = vmatprep.subr.mxu0 0.0
        %608 = vmatpush1.msra.mxu0 %v575
        %609 = vmatprep.subr.mxu0 0.0
        %610 = vmatpush1.msra.mxu0 %v574
        %611 = vmatprep.subr.mxu0 0.0
        %612 = vmatpush1.msra.mxu0 %v573
        %613 = vmatprep.subr.mxu0 0.0
        %614 = vmatpush1.msra.mxu0 %v572
        %615 = vmatprep.subr.mxu0 0.0
        %616 = vmatpush1.msra.mxu0 %v571
        %617 = vmatprep.subr.mxu0 0.0
        %618 = vmatpush1.msra.mxu0 %v570
        %619 = vmatprep.subr.mxu0 0.0
        %620 = vmatpush1.msra.mxu0 %v569
        %621 = vmatprep.subr.mxu0 0.0
        %622 = vmatpush1.msra.mxu0 %v568
        %623 = vmatprep.subr.mxu0 0.0
        %624 = vmatpush2.msra.mxu0 0.0
        %625 = vmatprep.subr.mxu0 0.0
        %626 = vmatpush2.msra.mxu0 0.0
        %627 = vmatprep.subr.mxu0 0.0
        %628 = vmatpush2.msra.mxu0 0.0
        %629 = vmatprep.subr.mxu0 0.0
        %630 = vmatpush2.msra.mxu0 0.0
        %631 = vmatprep.subr.mxu0 0.0
        %632 = vmatpush2.msra.mxu0 0.0
        %633 = vmatprep.subr.mxu0 0.0
        %634 = vmatpush2.msra.mxu0 0.0
        %635 = vmatprep.subr.mxu0 0.0
        %636 = vmatpush2.msra.mxu0 0.0
        %637 = vmatprep.subr.mxu0 0.0
        %638 = vmatpush2.msra.mxu0 0.0
        %639 = vmatprep.subr.mxu0 0.0
        %640 = vmatpush2.msra.mxu0 0.0
        %641 = vmatprep.subr.mxu0 0.0
        %642 = vmatpush2.msra.mxu0 0.0
        %643 = vmatprep.subr.mxu0 0.0
        %644 = vmatpush2.msra.mxu0 0.0
        %645 = vmatprep.subr.mxu0 0.0
        %646 = vmatpush2.msra.mxu0 0.0
        %647 = vmatprep.subr.mxu0 0.0
        %648 = vmatpush2.msra.mxu0 0.0
        %649 = vmatprep.subr.mxu0 0.0
        %650 = vmatpush2.msra.mxu0 0.0
        %651 = vmatprep.subr.mxu0 0.0
        %652 = vmatpush2.msra.mxu0 0.0
        %653 = vmatprep.subr.mxu0 0.0
        %654 = vmatpush2.msra.mxu0 0.0
        %655 = vmatprep.mubr.f32.mxu0 0.0
        %656 = vmatmul.mubr.f32.gmra.mxu0 %v567
        %v657 = vpop.f32.mrf.mxu0
        %v658 = vadd.f32 %v589, %v657
        %v659 = vpop.f32.mrf.mxu0
        %660 = vdwg.mxu0
        %v661 = vld [vmem:[%s495] sm:$0xff]
        %v662 = vld [vmem:[%s495 + $0x8] sm:$0xff]
        %v663 = vld [vmem:[%s495 + $0x10] sm:$0xff]
        %v664 = vld [vmem:[%s495 + $0x18] sm:$0xff]
        %v665 = vld [vmem:[%s495 + $0x20] sm:$0xff]
        %v666 = vld [vmem:[%s495 + $0x28] sm:$0xff]
        %v667 = vld [vmem:[%s495 + $0x30] sm:$0xff]
        %v668 = vld [vmem:[%s495 + $0x38] sm:$0xff]
        %v669 = vld [vmem:[%s495 + $0x40] sm:$0xff]
        %v670 = vld [vmem:[%s495 + $0x48] sm:$0xff]
        %v671 = vld [vmem:[%s495 + $0x50] sm:$0xff]
        %v672 = vld [vmem:[%s495 + $0x58] sm:$0xff]
        %v673 = vld [vmem:[%s495 + $0x60] sm:$0xff]
        %v674 = vld [vmem:[%s495 + $0x68] sm:$0xff]
        %v675 = vld [vmem:[%s495 + $0x70] sm:$0xff]
        %v676 = vld [vmem:[%s495 + $0x78] sm:$0xff]
        %v677 = vld [vmem:[%s6] sm:$0x1]
        %v679 = vcombine.high %v658, %v658
        %v681 = vunpack.c.l.s4 1966171168
        %v682 = vunpack.c.0.s8 %v681
        %v683 = vlaneseq
        %v684 = vshrl.u32 %v683, 7
        %v685 = vsub.s32 %v682, %v684
        %v686 = vrot.slane %v658, %v685
        %v688 = vunpack.c.l.s4 1966171168
        %v689 = vunpack.c.0.s8 %v688
        %v690 = vlaneseq
        %v691 = vshrl.u32 %v690, 7
        %v692 = vsub.s32 %v689, %v691
        %v693 = vrot.slane %v679, %v692
        %v694 = vcombine.high %v686, %v686
        %v695 = vcombine.high %v693, %v693
        %v697 = vunpack.c.l.s4 1966171168
        %v698 = vunpack.c.0.s8 %v697
        %v699 = vlaneseq
        %v700 = vshrl.u32 %v699, 7
        %v701 = vsub.s32 %v698, %v700
        %v702 = vrot.slane %v686, %v701
        %v704 = vunpack.c.l.s4 1966171168
        %v705 = vunpack.c.0.s8 %v704
        %v706 = vlaneseq
        %v707 = vshrl.u32 %v706, 7
        %v708 = vsub.s32 %v705, %v707
        %v709 = vrot.slane %v693, %v708
        %v711 = vunpack.c.l.s4 1966171168
        %v712 = vunpack.c.0.s8 %v711
        %v713 = vlaneseq
        %v714 = vshrl.u32 %v713, 7
        %v715 = vsub.s32 %v712, %v714
        %v716 = vrot.slane %v694, %v715
        %v718 = vunpack.c.l.s4 1966171168
        %v719 = vunpack.c.0.s8 %v718
        %v720 = vlaneseq
        %v721 = vshrl.u32 %v720, 7
        %v722 = vsub.s32 %v719, %v721
        %v723 = vrot.slane %v695, %v722
        %v724 = vcombine.high %v702, %v702
        %v725 = vcombine.high %v709, %v709
        %v726 = vcombine.high %v716, %v716
        %v727 = vcombine.high %v723, %v723
        %v728 = vlaneseq
        %v729 = vshrl.u32 %v728, 7
        %v730 = vsub.s32 0, %v729
        %v731 = vrot.slane %v702, %v730
        %v732 = vlaneseq
        %v733 = vshrl.u32 %v732, 7
        %v734 = vsub.s32 0, %v733
        %v735 = vrot.slane %v716, %v734
        %v736 = vlaneseq
        %v737 = vshrl.u32 %v736, 7
        %v738 = vsub.s32 0, %v737
        %v739 = vrot.slane %v724, %v738
        %v740 = vlaneseq
        %v741 = vshrl.u32 %v740, 7
        %v742 = vsub.s32 0, %v741
        %v743 = vrot.slane %v726, %v742
        %v744 = vlaneseq
        %v745 = vshrl.u32 %v744, 7
        %v746 = vsub.s32 0, %v745
        %v747 = vrot.slane %v709, %v746
        %v748 = vlaneseq
        %v749 = vshrl.u32 %v748, 7
        %v750 = vsub.s32 0, %v749
        %v751 = vrot.slane %v723, %v750
        %v752 = vlaneseq
        %v753 = vshrl.u32 %v752, 7
        %v754 = vsub.s32 0, %v753
        %v755 = vrot.slane %v725, %v754
        %v756 = vlaneseq
        %v757 = vshrl.u32 %v756, 7
        %v758 = vsub.s32 0, %v757
        %v759 = vrot.slane %v727, %v758
        %v768 = vadd.f32 %v731, %v661
        %v769 = vadd.f32 %v731, %v662
        %v770 = vadd.f32 %v731, %v663
        %v771 = vadd.f32 %v731, %v664
        %v772 = vadd.f32 %v731, %v665
        %v773 = vadd.f32 %v731, %v666
        %v774 = vadd.f32 %v731, %v667
        %v775 = vadd.f32 %v731, %v668
        %v776 = vadd.f32 %v731, %v669
        %v777 = vadd.f32 %v731, %v670
        %v778 = vadd.f32 %v731, %v671
        %v779 = vadd.f32 %v731, %v672
        %v780 = vadd.f32 %v731, %v673
        %v781 = vadd.f32 %v731, %v674
        %v782 = vadd.f32 %v731, %v675
        %v783 = vadd.f32 %v731, %v676
        %v784 = vadd.f32 %v735, %v661
        %v785 = vadd.f32 %v735, %v662
        %v786 = vadd.f32 %v735, %v663
        %v787 = vadd.f32 %v735, %v664
        %v788 = vadd.f32 %v735, %v665
        %v789 = vadd.f32 %v735, %v666
        %v790 = vadd.f32 %v735, %v667
        %v791 = vadd.f32 %v735, %v668
        %v792 = vadd.f32 %v735, %v669
        %v793 = vadd.f32 %v735, %v670
        %v794 = vadd.f32 %v735, %v671
        %v795 = vadd.f32 %v735, %v672
        %v796 = vadd.f32 %v735, %v673
        %v797 = vadd.f32 %v735, %v674
        %v798 = vadd.f32 %v735, %v675
        %v799 = vadd.f32 %v735, %v676
        %v800 = vadd.f32 %v739, %v661
        %v801 = vadd.f32 %v739, %v662
        %v802 = vadd.f32 %v739, %v663
        %v803 = vadd.f32 %v739, %v664
        %v804 = vadd.f32 %v739, %v665
        %v805 = vadd.f32 %v739, %v666
        %v806 = vadd.f32 %v739, %v667
        %v807 = vadd.f32 %v739, %v668
        %v808 = vadd.f32 %v739, %v669
        %v809 = vadd.f32 %v739, %v670
        %v810 = vadd.f32 %v739, %v671
        %v811 = vadd.f32 %v739, %v672
        %v812 = vadd.f32 %v739, %v673
        %v813 = vadd.f32 %v739, %v674
        %v814 = vadd.f32 %v739, %v675
        %v815 = vadd.f32 %v739, %v676
        %v816 = vadd.f32 %v743, %v661
        %v817 = vadd.f32 %v743, %v662
        %v818 = vadd.f32 %v743, %v663
        %v819 = vadd.f32 %v743, %v664
        %v820 = vadd.f32 %v743, %v665
        %v821 = vadd.f32 %v743, %v666
        %v822 = vadd.f32 %v743, %v667
        %v823 = vadd.f32 %v743, %v668
        %v824 = vadd.f32 %v743, %v669
        %v825 = vadd.f32 %v743, %v670
        %v826 = vadd.f32 %v743, %v671
        %v827 = vadd.f32 %v743, %v672
        %v828 = vadd.f32 %v743, %v673
        %v829 = vadd.f32 %v743, %v674
        %v830 = vadd.f32 %v743, %v675
        %v831 = vadd.f32 %v743, %v676
        %v832 = vadd.f32 %v747, %v661
        %v833 = vadd.f32 %v747, %v662
        %v834 = vadd.f32 %v747, %v663
        %v835 = vadd.f32 %v747, %v664
        %v836 = vadd.f32 %v747, %v665
        %v837 = vadd.f32 %v747, %v666
        %v838 = vadd.f32 %v747, %v667
        %v839 = vadd.f32 %v747, %v668
        %v840 = vadd.f32 %v747, %v669
        %v841 = vadd.f32 %v747, %v670
        %v842 = vadd.f32 %v747, %v671
        %v843 = vadd.f32 %v747, %v672
        %v844 = vadd.f32 %v747, %v673
        %v845 = vadd.f32 %v747, %v674
        %v846 = vadd.f32 %v747, %v675
        %v847 = vadd.f32 %v747, %v676
        %v848 = vadd.f32 %v751, %v661
        %v849 = vadd.f32 %v751, %v662
        %v850 = vadd.f32 %v751, %v663
        %v851 = vadd.f32 %v751, %v664
        %v852 = vadd.f32 %v751, %v665
        %v853 = vadd.f32 %v751, %v666
        %v854 = vadd.f32 %v751, %v667
        %v855 = vadd.f32 %v751, %v668
        %v856 = vadd.f32 %v751, %v669
        %v857 = vadd.f32 %v751, %v670
        %v858 = vadd.f32 %v751, %v671
        %v859 = vadd.f32 %v751, %v672
        %v860 = vadd.f32 %v751, %v673
        %v861 = vadd.f32 %v751, %v674
        %v862 = vadd.f32 %v751, %v675
        %v863 = vadd.f32 %v751, %v676
        %v864 = vadd.f32 %v755, %v661
        %v865 = vadd.f32 %v755, %v662
        %v866 = vadd.f32 %v755, %v663
        %v867 = vadd.f32 %v755, %v664
        %v868 = vadd.f32 %v755, %v665
        %v869 = vadd.f32 %v755, %v666
        %v870 = vadd.f32 %v755, %v667
        %v871 = vadd.f32 %v755, %v668
        %v872 = vadd.f32 %v755, %v669
        %v873 = vadd.f32 %v755, %v670
        %v874 = vadd.f32 %v755, %v671
        %v875 = vadd.f32 %v755, %v672
        %v876 = vadd.f32 %v755, %v673
        %v877 = vadd.f32 %v755, %v674
        %v878 = vadd.f32 %v755, %v675
        %v879 = vadd.f32 %v755, %v676
        %v880 = vadd.f32 %v759, %v661
        %v881 = vadd.f32 %v759, %v662
        %v882 = vadd.f32 %v759, %v663
        %v883 = vadd.f32 %v759, %v664
        %v884 = vadd.f32 %v759, %v665
        %v885 = vadd.f32 %v759, %v666
        %v886 = vadd.f32 %v759, %v667
        %v887 = vadd.f32 %v759, %v668
        %v888 = vadd.f32 %v759, %v669
        %v889 = vadd.f32 %v759, %v670
        %v890 = vadd.f32 %v759, %v671
        %v891 = vadd.f32 %v759, %v672
        %v892 = vadd.f32 %v759, %v673
        %v893 = vadd.f32 %v759, %v674
        %v894 = vadd.f32 %v759, %v675
        %v895 = vadd.f32 %v759, %v676
        %v896 = vtanh.pop %v768
        %v897 = vtanh.pop %v769
        %v898 = vtanh.pop %v770
        %v899 = vtanh.pop %v771
        %v900 = vtanh.pop %v772
        %v901 = vtanh.pop %v773
        %v902 = vtanh.pop %v774
        %v903 = vtanh.pop %v775
        %v904 = vtanh.pop %v776
        %v905 = vtanh.pop %v777
        %v906 = vtanh.pop %v778
        %v907 = vtanh.pop %v779
        %v908 = vtanh.pop %v780
        %v909 = vtanh.pop %v781
        %v910 = vtanh.pop %v782
        %v911 = vtanh.pop %v783
        %v912 = vtanh.pop %v784
        %v913 = vtanh.pop %v785
        %v914 = vtanh.pop %v786
        %v915 = vtanh.pop %v787
        %v916 = vtanh.pop %v788
        %v917 = vtanh.pop %v789
        %v918 = vtanh.pop %v790
        %v919 = vtanh.pop %v791
        %v920 = vtanh.pop %v792
        %v921 = vtanh.pop %v793
        %v922 = vtanh.pop %v794
        %v923 = vtanh.pop %v795
        %v924 = vtanh.pop %v796
        %v925 = vtanh.pop %v797
        %v926 = vtanh.pop %v798
        %v927 = vtanh.pop %v799
        %v928 = vtanh.pop %v800
        %v929 = vtanh.pop %v801
        %v930 = vtanh.pop %v802
        %v931 = vtanh.pop %v803
        %v932 = vtanh.pop %v804
        %v933 = vtanh.pop %v805
        %v934 = vtanh.pop %v806
        %v935 = vtanh.pop %v807
        %v936 = vtanh.pop %v808
        %v937 = vtanh.pop %v809
        %v938 = vtanh.pop %v810
        %v939 = vtanh.pop %v811
        %v940 = vtanh.pop %v812
        %v941 = vtanh.pop %v813
        %v942 = vtanh.pop %v814
        %v943 = vtanh.pop %v815
        %v944 = vtanh.pop %v816
        %v945 = vtanh.pop %v817
        %v946 = vtanh.pop %v818
        %v947 = vtanh.pop %v819
        %v948 = vtanh.pop %v820
        %v949 = vtanh.pop %v821
        %v950 = vtanh.pop %v822
        %v951 = vtanh.pop %v823
        %v952 = vtanh.pop %v824
        %v953 = vtanh.pop %v825
        %v954 = vtanh.pop %v826
        %v955 = vtanh.pop %v827
        %v956 = vtanh.pop %v828
        %v957 = vtanh.pop %v829
        %v958 = vtanh.pop %v830
        %v959 = vtanh.pop %v831
        %v960 = vtanh.pop %v832
        %v961 = vtanh.pop %v833
        %v962 = vtanh.pop %v834
        %v963 = vtanh.pop %v835
        %v964 = vtanh.pop %v836
        %v965 = vtanh.pop %v837
        %v966 = vtanh.pop %v838
        %v967 = vtanh.pop %v839
        %v968 = vtanh.pop %v840
        %v969 = vtanh.pop %v841
        %v970 = vtanh.pop %v842
        %v971 = vtanh.pop %v843
        %v972 = vtanh.pop %v844
        %v973 = vtanh.pop %v845
        %v974 = vtanh.pop %v846
        %v975 = vtanh.pop %v847
        %v976 = vtanh.pop %v848
        %v977 = vtanh.pop %v849
        %v978 = vtanh.pop %v850
        %v979 = vtanh.pop %v851
        %v980 = vtanh.pop %v852
        %v981 = vtanh.pop %v853
        %v982 = vtanh.pop %v854
        %v983 = vtanh.pop %v855
        %v984 = vtanh.pop %v856
        %v985 = vtanh.pop %v857
        %v986 = vtanh.pop %v858
        %v987 = vtanh.pop %v859
        %v988 = vtanh.pop %v860
        %v989 = vtanh.pop %v861
        %v990 = vtanh.pop %v862
        %v991 = vtanh.pop %v863
        %v992 = vtanh.pop %v864
        %v993 = vtanh.pop %v865
        %v994 = vtanh.pop %v866
        %v995 = vtanh.pop %v867
        %v996 = vtanh.pop %v868
        %v997 = vtanh.pop %v869
        %v998 = vtanh.pop %v870
        %v999 = vtanh.pop %v871
        %v1000 = vtanh.pop %v872
        %v1001 = vtanh.pop %v873
        %v1002 = vtanh.pop %v874
        %v1003 = vtanh.pop %v875
        %v1004 = vtanh.pop %v876
        %v1005 = vtanh.pop %v877
        %v1006 = vtanh.pop %v878
        %v1007 = vtanh.pop %v879
        %v1008 = vtanh.pop %v880
        %v1009 = vtanh.pop %v881
        %v1010 = vtanh.pop %v882
        %v1011 = vtanh.pop %v883
        %v1012 = vtanh.pop %v884
        %v1013 = vtanh.pop %v885
        %v1014 = vtanh.pop %v886
        %v1015 = vtanh.pop %v887
        %v1016 = vtanh.pop %v888
        %v1017 = vtanh.pop %v889
        %v1018 = vtanh.pop %v890
        %v1019 = vtanh.pop %v891
        %v1020 = vtanh.pop %v892
        %v1021 = vtanh.pop %v893
        %v1022 = vtanh.pop %v894
        %v1023 = vtanh.pop %v895
        %v1025 = vlaneseq
        %v1026 = vshrl.u32 %v1025, 7
        %v1027 = vsub.s32 0, %v1026
        %v1028 = vrot.slane %v677, %v1027
        %v1030 = vmul.f32 %v896, %v1028
        %v1031 = vmul.f32 %v897, %v1028
        %v1032 = vmul.f32 %v898, %v1028
        %v1033 = vmul.f32 %v899, %v1028
        %v1034 = vmul.f32 %v900, %v1028
        %v1035 = vmul.f32 %v901, %v1028
        %v1036 = vmul.f32 %v902, %v1028
        %v1037 = vmul.f32 %v903, %v1028
        %v1038 = vmul.f32 %v904, %v1028
        %v1039 = vmul.f32 %v905, %v1028
        %v1040 = vmul.f32 %v906, %v1028
        %v1041 = vmul.f32 %v907, %v1028
        %v1042 = vmul.f32 %v908, %v1028
        %v1043 = vmul.f32 %v909, %v1028
        %v1044 = vmul.f32 %v910, %v1028
        %v1045 = vmul.f32 %v911, %v1028
        %v1046 = vmul.f32 %v912, %v1028
        %v1047 = vmul.f32 %v913, %v1028
        %v1048 = vmul.f32 %v914, %v1028
        %v1049 = vmul.f32 %v915, %v1028
        %v1050 = vmul.f32 %v916, %v1028
        %v1051 = vmul.f32 %v917, %v1028
        %v1052 = vmul.f32 %v918, %v1028
        %v1053 = vmul.f32 %v919, %v1028
        %v1054 = vmul.f32 %v920, %v1028
        %v1055 = vmul.f32 %v921, %v1028
        %v1056 = vmul.f32 %v922, %v1028
        %v1057 = vmul.f32 %v923, %v1028
        %v1058 = vmul.f32 %v924, %v1028
        %v1059 = vmul.f32 %v925, %v1028
        %v1060 = vmul.f32 %v926, %v1028
        %v1061 = vmul.f32 %v927, %v1028
        %v1062 = vmul.f32 %v928, %v1028
        %v1063 = vmul.f32 %v929, %v1028
        %v1064 = vmul.f32 %v930, %v1028
        %v1065 = vmul.f32 %v931, %v1028
        %v1066 = vmul.f32 %v932, %v1028
        %v1067 = vmul.f32 %v933, %v1028
        %v1068 = vmul.f32 %v934, %v1028
        %v1069 = vmul.f32 %v935, %v1028
        %v1070 = vmul.f32 %v936, %v1028
        %v1071 = vmul.f32 %v937, %v1028
        %v1072 = vmul.f32 %v938, %v1028
        %v1073 = vmul.f32 %v939, %v1028
        %v1074 = vmul.f32 %v940, %v1028
        %v1075 = vmul.f32 %v941, %v1028
        %v1076 = vmul.f32 %v942, %v1028
        %v1077 = vmul.f32 %v943, %v1028
        %v1078 = vmul.f32 %v944, %v1028
        %v1079 = vmul.f32 %v945, %v1028
        %v1080 = vmul.f32 %v946, %v1028
        %v1081 = vmul.f32 %v947, %v1028
        %v1082 = vmul.f32 %v948, %v1028
        %v1083 = vmul.f32 %v949, %v1028
        %v1084 = vmul.f32 %v950, %v1028
        %v1085 = vmul.f32 %v951, %v1028
        %v1086 = vmul.f32 %v952, %v1028
        %v1087 = vmul.f32 %v953, %v1028
        %v1088 = vmul.f32 %v954, %v1028
        %v1089 = vmul.f32 %v955, %v1028
        %v1090 = vmul.f32 %v956, %v1028
        %v1091 = vmul.f32 %v957, %v1028
        %v1092 = vmul.f32 %v958, %v1028
        %v1093 = vmul.f32 %v959, %v1028
        %v1094 = vmul.f32 %v960, %v1028
        %v1095 = vmul.f32 %v961, %v1028
        %v1096 = vmul.f32 %v962, %v1028
        %v1097 = vmul.f32 %v963, %v1028
        %v1098 = vmul.f32 %v964, %v1028
        %v1099 = vmul.f32 %v965, %v1028
        %v1100 = vmul.f32 %v966, %v1028
        %v1101 = vmul.f32 %v967, %v1028
        %v1102 = vmul.f32 %v968, %v1028
        %v1103 = vmul.f32 %v969, %v1028
        %v1104 = vmul.f32 %v970, %v1028
        %v1105 = vmul.f32 %v971, %v1028
        %v1106 = vmul.f32 %v972, %v1028
        %v1107 = vmul.f32 %v973, %v1028
        %v1108 = vmul.f32 %v974, %v1028
        %v1109 = vmul.f32 %v975, %v1028
        %v1110 = vmul.f32 %v976, %v1028
        %v1111 = vmul.f32 %v977, %v1028
        %v1112 = vmul.f32 %v978, %v1028
        %v1113 = vmul.f32 %v979, %v1028
        %v1114 = vmul.f32 %v980, %v1028
        %v1115 = vmul.f32 %v981, %v1028
        %v1116 = vmul.f32 %v982, %v1028
        %v1117 = vmul.f32 %v983, %v1028
        %v1118 = vmul.f32 %v984, %v1028
        %v1119 = vmul.f32 %v985, %v1028
        %v1120 = vmul.f32 %v986, %v1028
        %v1121 = vmul.f32 %v987, %v1028
        %v1122 = vmul.f32 %v988, %v1028
        %v1123 = vmul.f32 %v989, %v1028
        %v1124 = vmul.f32 %v990, %v1028
        %v1125 = vmul.f32 %v991, %v1028
        %v1126 = vmul.f32 %v992, %v1028
        %v1127 = vmul.f32 %v993, %v1028
        %v1128 = vmul.f32 %v994, %v1028
        %v1129 = vmul.f32 %v995, %v1028
        %v1130 = vmul.f32 %v996, %v1028
        %v1131 = vmul.f32 %v997, %v1028
        %v1132 = vmul.f32 %v998, %v1028
        %v1133 = vmul.f32 %v999, %v1028
        %v1134 = vmul.f32 %v1000, %v1028
        %v1135 = vmul.f32 %v1001, %v1028
        %v1136 = vmul.f32 %v1002, %v1028
        %v1137 = vmul.f32 %v1003, %v1028
        %v1138 = vmul.f32 %v1004, %v1028
        %v1139 = vmul.f32 %v1005, %v1028
        %v1140 = vmul.f32 %v1006, %v1028
        %v1141 = vmul.f32 %v1007, %v1028
        %v1142 = vmul.f32 %v1008, %v1028
        %v1143 = vmul.f32 %v1009, %v1028
        %v1144 = vmul.f32 %v1010, %v1028
        %v1145 = vmul.f32 %v1011, %v1028
        %v1146 = vmul.f32 %v1012, %v1028
        %v1147 = vmul.f32 %v1013, %v1028
        %v1148 = vmul.f32 %v1014, %v1028
        %v1149 = vmul.f32 %v1015, %v1028
        %v1150 = vmul.f32 %v1016, %v1028
        %v1151 = vmul.f32 %v1017, %v1028
        %v1152 = vmul.f32 %v1018, %v1028
        %v1153 = vmul.f32 %v1019, %v1028
        %v1154 = vmul.f32 %v1020, %v1028
        %v1155 = vmul.f32 %v1021, %v1028
        %v1156 = vmul.f32 %v1022, %v1028
        %v1157 = vmul.f32 %v1023, %v1028
        %1158 = vadd.xlane.f32.xlu0 %v1030
        %v1159 = vpop.xlane.xlu0 %1158
        %1160 = vadd.xlane.f32.xlu0 %v1031
        %v1161 = vpop.xlane.xlu0 %1160
        %1162 = vadd.xlane.f32.xlu0 %v1032
        %v1163 = vpop.xlane.xlu0 %1162
        %1164 = vadd.xlane.f32.xlu0 %v1033
        %v1165 = vpop.xlane.xlu0 %1164
        %1166 = vadd.xlane.f32.xlu0 %v1034
        %v1167 = vpop.xlane.xlu0 %1166
        %1168 = vadd.xlane.f32.xlu0 %v1035
        %v1169 = vpop.xlane.xlu0 %1168
        %1170 = vadd.xlane.f32.xlu0 %v1036
        %v1171 = vpop.xlane.xlu0 %1170
        %1172 = vadd.xlane.f32.xlu0 %v1037
        %v1173 = vpop.xlane.xlu0 %1172
        %1174 = vadd.xlane.f32.xlu0 %v1038
        %v1175 = vpop.xlane.xlu0 %1174
        %1176 = vadd.xlane.f32.xlu0 %v1039
        %v1177 = vpop.xlane.xlu0 %1176
        %1178 = vadd.xlane.f32.xlu0 %v1040
        %v1179 = vpop.xlane.xlu0 %1178
        %1180 = vadd.xlane.f32.xlu0 %v1041
        %v1181 = vpop.xlane.xlu0 %1180
        %1182 = vadd.xlane.f32.xlu0 %v1042
        %v1183 = vpop.xlane.xlu0 %1182
        %1184 = vadd.xlane.f32.xlu0 %v1043
        %v1185 = vpop.xlane.xlu0 %1184
        %1186 = vadd.xlane.f32.xlu0 %v1044
        %v1187 = vpop.xlane.xlu0 %1186
        %1188 = vadd.xlane.f32.xlu0 %v1045
        %v1189 = vpop.xlane.xlu0 %1188
        %1190 = vadd.xlane.f32.xlu0 %v1046
        %v1191 = vpop.xlane.xlu0 %1190
        %1192 = vadd.xlane.f32.xlu0 %v1047
        %v1193 = vpop.xlane.xlu0 %1192
        %1194 = vadd.xlane.f32.xlu0 %v1048
        %v1195 = vpop.xlane.xlu0 %1194
        %1196 = vadd.xlane.f32.xlu0 %v1049
        %v1197 = vpop.xlane.xlu0 %1196
        %1198 = vadd.xlane.f32.xlu0 %v1050
        %v1199 = vpop.xlane.xlu0 %1198
        %1200 = vadd.xlane.f32.xlu0 %v1051
        %v1201 = vpop.xlane.xlu0 %1200
        %1202 = vadd.xlane.f32.xlu0 %v1052
        %v1203 = vpop.xlane.xlu0 %1202
        %1204 = vadd.xlane.f32.xlu0 %v1053
        %v1205 = vpop.xlane.xlu0 %1204
        %1206 = vadd.xlane.f32.xlu0 %v1054
        %v1207 = vpop.xlane.xlu0 %1206
        %1208 = vadd.xlane.f32.xlu0 %v1055
        %v1209 = vpop.xlane.xlu0 %1208
        %1210 = vadd.xlane.f32.xlu0 %v1056
        %v1211 = vpop.xlane.xlu0 %1210
        %1212 = vadd.xlane.f32.xlu0 %v1057
        %v1213 = vpop.xlane.xlu0 %1212
        %1214 = vadd.xlane.f32.xlu0 %v1058
        %v1215 = vpop.xlane.xlu0 %1214
        %1216 = vadd.xlane.f32.xlu0 %v1059
        %v1217 = vpop.xlane.xlu0 %1216
        %1218 = vadd.xlane.f32.xlu0 %v1060
        %v1219 = vpop.xlane.xlu0 %1218
        %1220 = vadd.xlane.f32.xlu0 %v1061
        %v1221 = vpop.xlane.xlu0 %1220
        %1222 = vadd.xlane.f32.xlu0 %v1062
        %v1223 = vpop.xlane.xlu0 %1222
        %1224 = vadd.xlane.f32.xlu0 %v1063
        %v1225 = vpop.xlane.xlu0 %1224
        %1226 = vadd.xlane.f32.xlu0 %v1064
        %v1227 = vpop.xlane.xlu0 %1226
        %1228 = vadd.xlane.f32.xlu0 %v1065
        %v1229 = vpop.xlane.xlu0 %1228
        %1230 = vadd.xlane.f32.xlu0 %v1066
        %v1231 = vpop.xlane.xlu0 %1230
        %1232 = vadd.xlane.f32.xlu0 %v1067
        %v1233 = vpop.xlane.xlu0 %1232
        %1234 = vadd.xlane.f32.xlu0 %v1068
        %v1235 = vpop.xlane.xlu0 %1234
        %1236 = vadd.xlane.f32.xlu0 %v1069
        %v1237 = vpop.xlane.xlu0 %1236
        %1238 = vadd.xlane.f32.xlu0 %v1070
        %v1239 = vpop.xlane.xlu0 %1238
        %1240 = vadd.xlane.f32.xlu0 %v1071
        %v1241 = vpop.xlane.xlu0 %1240
        %1242 = vadd.xlane.f32.xlu0 %v1072
        %v1243 = vpop.xlane.xlu0 %1242
        %1244 = vadd.xlane.f32.xlu0 %v1073
        %v1245 = vpop.xlane.xlu0 %1244
        %1246 = vadd.xlane.f32.xlu0 %v1074
        %v1247 = vpop.xlane.xlu0 %1246
        %1248 = vadd.xlane.f32.xlu0 %v1075
        %v1249 = vpop.xlane.xlu0 %1248
        %1250 = vadd.xlane.f32.xlu0 %v1076
        %v1251 = vpop.xlane.xlu0 %1250
        %1252 = vadd.xlane.f32.xlu0 %v1077
        %v1253 = vpop.xlane.xlu0 %1252
        %1254 = vadd.xlane.f32.xlu0 %v1078
        %v1255 = vpop.xlane.xlu0 %1254
        %1256 = vadd.xlane.f32.xlu0 %v1079
        %v1257 = vpop.xlane.xlu0 %1256
        %1258 = vadd.xlane.f32.xlu0 %v1080
        %v1259 = vpop.xlane.xlu0 %1258
        %1260 = vadd.xlane.f32.xlu0 %v1081
        %v1261 = vpop.xlane.xlu0 %1260
        %1262 = vadd.xlane.f32.xlu0 %v1082
        %v1263 = vpop.xlane.xlu0 %1262
        %1264 = vadd.xlane.f32.xlu0 %v1083
        %v1265 = vpop.xlane.xlu0 %1264
        %1266 = vadd.xlane.f32.xlu0 %v1084
        %v1267 = vpop.xlane.xlu0 %1266
        %1268 = vadd.xlane.f32.xlu0 %v1085
        %v1269 = vpop.xlane.xlu0 %1268
        %1270 = vadd.xlane.f32.xlu0 %v1086
        %v1271 = vpop.xlane.xlu0 %1270
        %1272 = vadd.xlane.f32.xlu0 %v1087
        %v1273 = vpop.xlane.xlu0 %1272
        %1274 = vadd.xlane.f32.xlu0 %v1088
        %v1275 = vpop.xlane.xlu0 %1274
        %1276 = vadd.xlane.f32.xlu0 %v1089
        %v1277 = vpop.xlane.xlu0 %1276
        %1278 = vadd.xlane.f32.xlu0 %v1090
        %v1279 = vpop.xlane.xlu0 %1278
        %1280 = vadd.xlane.f32.xlu0 %v1091
        %v1281 = vpop.xlane.xlu0 %1280
        %1282 = vadd.xlane.f32.xlu0 %v1092
        %v1283 = vpop.xlane.xlu0 %1282
        %1284 = vadd.xlane.f32.xlu0 %v1093
        %v1285 = vpop.xlane.xlu0 %1284
        %1286 = vadd.xlane.f32.xlu0 %v1094
        %v1287 = vpop.xlane.xlu0 %1286
        %1288 = vadd.xlane.f32.xlu0 %v1095
        %v1289 = vpop.xlane.xlu0 %1288
        %1290 = vadd.xlane.f32.xlu0 %v1096
        %v1291 = vpop.xlane.xlu0 %1290
        %1292 = vadd.xlane.f32.xlu0 %v1097
        %v1293 = vpop.xlane.xlu0 %1292
        %1294 = vadd.xlane.f32.xlu0 %v1098
        %v1295 = vpop.xlane.xlu0 %1294
        %1296 = vadd.xlane.f32.xlu0 %v1099
        %v1297 = vpop.xlane.xlu0 %1296
        %1298 = vadd.xlane.f32.xlu0 %v1100
        %v1299 = vpop.xlane.xlu0 %1298
        %1300 = vadd.xlane.f32.xlu0 %v1101
        %v1301 = vpop.xlane.xlu0 %1300
        %1302 = vadd.xlane.f32.xlu0 %v1102
        %v1303 = vpop.xlane.xlu0 %1302
        %1304 = vadd.xlane.f32.xlu0 %v1103
        %v1305 = vpop.xlane.xlu0 %1304
        %1306 = vadd.xlane.f32.xlu0 %v1104
        %v1307 = vpop.xlane.xlu0 %1306
        %1308 = vadd.xlane.f32.xlu0 %v1105
        %v1309 = vpop.xlane.xlu0 %1308
        %1310 = vadd.xlane.f32.xlu0 %v1106
        %v1311 = vpop.xlane.xlu0 %1310
        %1312 = vadd.xlane.f32.xlu0 %v1107
        %v1313 = vpop.xlane.xlu0 %1312
        %1314 = vadd.xlane.f32.xlu0 %v1108
        %v1315 = vpop.xlane.xlu0 %1314
        %1316 = vadd.xlane.f32.xlu0 %v1109
        %v1317 = vpop.xlane.xlu0 %1316
        %1318 = vadd.xlane.f32.xlu0 %v1110
        %v1319 = vpop.xlane.xlu0 %1318
        %1320 = vadd.xlane.f32.xlu0 %v1111
        %v1321 = vpop.xlane.xlu0 %1320
        %1322 = vadd.xlane.f32.xlu0 %v1112
        %v1323 = vpop.xlane.xlu0 %1322
        %1324 = vadd.xlane.f32.xlu0 %v1113
        %v1325 = vpop.xlane.xlu0 %1324
        %1326 = vadd.xlane.f32.xlu0 %v1114
        %v1327 = vpop.xlane.xlu0 %1326
        %1328 = vadd.xlane.f32.xlu0 %v1115
        %v1329 = vpop.xlane.xlu0 %1328
        %1330 = vadd.xlane.f32.xlu0 %v1116
        %v1331 = vpop.xlane.xlu0 %1330
        %1332 = vadd.xlane.f32.xlu0 %v1117
        %v1333 = vpop.xlane.xlu0 %1332
        %1334 = vadd.xlane.f32.xlu0 %v1118
        %v1335 = vpop.xlane.xlu0 %1334
        %1336 = vadd.xlane.f32.xlu0 %v1119
        %v1337 = vpop.xlane.xlu0 %1336
        %1338 = vadd.xlane.f32.xlu0 %v1120
        %v1339 = vpop.xlane.xlu0 %1338
        %1340 = vadd.xlane.f32.xlu0 %v1121
        %v1341 = vpop.xlane.xlu0 %1340
        %1342 = vadd.xlane.f32.xlu0 %v1122
        %v1343 = vpop.xlane.xlu0 %1342
        %1344 = vadd.xlane.f32.xlu0 %v1123
        %v1345 = vpop.xlane.xlu0 %1344
        %1346 = vadd.xlane.f32.xlu0 %v1124
        %v1347 = vpop.xlane.xlu0 %1346
        %1348 = vadd.xlane.f32.xlu0 %v1125
        %v1349 = vpop.xlane.xlu0 %1348
        %1350 = vadd.xlane.f32.xlu0 %v1126
        %v1351 = vpop.xlane.xlu0 %1350
        %1352 = vadd.xlane.f32.xlu0 %v1127
        %v1353 = vpop.xlane.xlu0 %1352
        %1354 = vadd.xlane.f32.xlu0 %v1128
        %v1355 = vpop.xlane.xlu0 %1354
        %1356 = vadd.xlane.f32.xlu0 %v1129
        %v1357 = vpop.xlane.xlu0 %1356
        %1358 = vadd.xlane.f32.xlu0 %v1130
        %v1359 = vpop.xlane.xlu0 %1358
        %1360 = vadd.xlane.f32.xlu0 %v1131
        %v1361 = vpop.xlane.xlu0 %1360
        %1362 = vadd.xlane.f32.xlu0 %v1132
        %v1363 = vpop.xlane.xlu0 %1362
        %1364 = vadd.xlane.f32.xlu0 %v1133
        %v1365 = vpop.xlane.xlu0 %1364
        %1366 = vadd.xlane.f32.xlu0 %v1134
        %v1367 = vpop.xlane.xlu0 %1366
        %1368 = vadd.xlane.f32.xlu0 %v1135
        %v1369 = vpop.xlane.xlu0 %1368
        %1370 = vadd.xlane.f32.xlu0 %v1136
        %v1371 = vpop.xlane.xlu0 %1370
        %1372 = vadd.xlane.f32.xlu0 %v1137
        %v1373 = vpop.xlane.xlu0 %1372
        %1374 = vadd.xlane.f32.xlu0 %v1138
        %v1375 = vpop.xlane.xlu0 %1374
        %1376 = vadd.xlane.f32.xlu0 %v1139
        %v1377 = vpop.xlane.xlu0 %1376
        %1378 = vadd.xlane.f32.xlu0 %v1140
        %v1379 = vpop.xlane.xlu0 %1378
        %1380 = vadd.xlane.f32.xlu0 %v1141
        %v1381 = vpop.xlane.xlu0 %1380
        %1382 = vadd.xlane.f32.xlu0 %v1142
        %v1383 = vpop.xlane.xlu0 %1382
        %1384 = vadd.xlane.f32.xlu0 %v1143
        %v1385 = vpop.xlane.xlu0 %1384
        %1386 = vadd.xlane.f32.xlu0 %v1144
        %v1387 = vpop.xlane.xlu0 %1386
        %1388 = vadd.xlane.f32.xlu0 %v1145
        %v1389 = vpop.xlane.xlu0 %1388
        %1390 = vadd.xlane.f32.xlu0 %v1146
        %v1391 = vpop.xlane.xlu0 %1390
        %1392 = vadd.xlane.f32.xlu0 %v1147
        %v1393 = vpop.xlane.xlu0 %1392
        %1394 = vadd.xlane.f32.xlu0 %v1148
        %v1395 = vpop.xlane.xlu0 %1394
        %1396 = vadd.xlane.f32.xlu0 %v1149
        %v1397 = vpop.xlane.xlu0 %1396
        %1398 = vadd.xlane.f32.xlu0 %v1150
        %v1399 = vpop.xlane.xlu0 %1398
        %1400 = vadd.xlane.f32.xlu0 %v1151
        %v1401 = vpop.xlane.xlu0 %1400
        %1402 = vadd.xlane.f32.xlu0 %v1152
        %v1403 = vpop.xlane.xlu0 %1402
        %1404 = vadd.xlane.f32.xlu0 %v1153
        %v1405 = vpop.xlane.xlu0 %1404
        %1406 = vadd.xlane.f32.xlu0 %v1154
        %v1407 = vpop.xlane.xlu0 %1406
        %1408 = vadd.xlane.f32.xlu0 %v1155
        %v1409 = vpop.xlane.xlu0 %1408
        %1410 = vadd.xlane.f32.xlu0 %v1156
        %v1411 = vpop.xlane.xlu0 %1410
        %1412 = vadd.xlane.f32.xlu0 %v1157
        %v1413 = vpop.xlane.xlu0 %1412
        %v1414 = vadd.f32 %v1159, 0.0
        %v1415 = vadd.f32 %v1161, 0.0
        %v1416 = vadd.f32 %v1163, 0.0
        %v1417 = vadd.f32 %v1165, 0.0
        %v1418 = vadd.f32 %v1167, 0.0
        %v1419 = vadd.f32 %v1169, 0.0
        %v1420 = vadd.f32 %v1171, 0.0
        %v1421 = vadd.f32 %v1173, 0.0
        %v1422 = vadd.f32 %v1175, 0.0
        %v1423 = vadd.f32 %v1177, 0.0
        %v1424 = vadd.f32 %v1179, 0.0
        %v1425 = vadd.f32 %v1181, 0.0
        %v1426 = vadd.f32 %v1183, 0.0
        %v1427 = vadd.f32 %v1185, 0.0
        %v1428 = vadd.f32 %v1187, 0.0
        %v1429 = vadd.f32 %v1189, 0.0
        %v1430 = vadd.f32 %v1191, 0.0
        %v1431 = vadd.f32 %v1193, 0.0
        %v1432 = vadd.f32 %v1195, 0.0
        %v1433 = vadd.f32 %v1197, 0.0
        %v1434 = vadd.f32 %v1199, 0.0
        %v1435 = vadd.f32 %v1201, 0.0
        %v1436 = vadd.f32 %v1203, 0.0
        %v1437 = vadd.f32 %v1205, 0.0
        %v1438 = vadd.f32 %v1207, 0.0
        %v1439 = vadd.f32 %v1209, 0.0
        %v1440 = vadd.f32 %v1211, 0.0
        %v1441 = vadd.f32 %v1213, 0.0
        %v1442 = vadd.f32 %v1215, 0.0
        %v1443 = vadd.f32 %v1217, 0.0
        %v1444 = vadd.f32 %v1219, 0.0
        %v1445 = vadd.f32 %v1221, 0.0
        %v1446 = vadd.f32 %v1223, 0.0
        %v1447 = vadd.f32 %v1225, 0.0
        %v1448 = vadd.f32 %v1227, 0.0
        %v1449 = vadd.f32 %v1229, 0.0
        %v1450 = vadd.f32 %v1231, 0.0
        %v1451 = vadd.f32 %v1233, 0.0
        %v1452 = vadd.f32 %v1235, 0.0
        %v1453 = vadd.f32 %v1237, 0.0
        %v1454 = vadd.f32 %v1239, 0.0
        %v1455 = vadd.f32 %v1241, 0.0
        %v1456 = vadd.f32 %v1243, 0.0
        %v1457 = vadd.f32 %v1245, 0.0
        %v1458 = vadd.f32 %v1247, 0.0
        %v1459 = vadd.f32 %v1249, 0.0
        %v1460 = vadd.f32 %v1251, 0.0
        %v1461 = vadd.f32 %v1253, 0.0
        %v1462 = vadd.f32 %v1255, 0.0
        %v1463 = vadd.f32 %v1257, 0.0
        %v1464 = vadd.f32 %v1259, 0.0
        %v1465 = vadd.f32 %v1261, 0.0
        %v1466 = vadd.f32 %v1263, 0.0
        %v1467 = vadd.f32 %v1265, 0.0
        %v1468 = vadd.f32 %v1267, 0.0
        %v1469 = vadd.f32 %v1269, 0.0
        %v1470 = vadd.f32 %v1271, 0.0
        %v1471 = vadd.f32 %v1273, 0.0
        %v1472 = vadd.f32 %v1275, 0.0
        %v1473 = vadd.f32 %v1277, 0.0
        %v1474 = vadd.f32 %v1279, 0.0
        %v1475 = vadd.f32 %v1281, 0.0
        %v1476 = vadd.f32 %v1283, 0.0
        %v1477 = vadd.f32 %v1285, 0.0
        %v1478 = vadd.f32 %v1287, 0.0
        %v1479 = vadd.f32 %v1289, 0.0
        %v1480 = vadd.f32 %v1291, 0.0
        %v1481 = vadd.f32 %v1293, 0.0
        %v1482 = vadd.f32 %v1295, 0.0
        %v1483 = vadd.f32 %v1297, 0.0
        %v1484 = vadd.f32 %v1299, 0.0
        %v1485 = vadd.f32 %v1301, 0.0
        %v1486 = vadd.f32 %v1303, 0.0
        %v1487 = vadd.f32 %v1305, 0.0
        %v1488 = vadd.f32 %v1307, 0.0
        %v1489 = vadd.f32 %v1309, 0.0
        %v1490 = vadd.f32 %v1311, 0.0
        %v1491 = vadd.f32 %v1313, 0.0
        %v1492 = vadd.f32 %v1315, 0.0
        %v1493 = vadd.f32 %v1317, 0.0
        %v1494 = vadd.f32 %v1319, 0.0
        %v1495 = vadd.f32 %v1321, 0.0
        %v1496 = vadd.f32 %v1323, 0.0
        %v1497 = vadd.f32 %v1325, 0.0
        %v1498 = vadd.f32 %v1327, 0.0
        %v1499 = vadd.f32 %v1329, 0.0
        %v1500 = vadd.f32 %v1331, 0.0
        %v1501 = vadd.f32 %v1333, 0.0
        %v1502 = vadd.f32 %v1335, 0.0
        %v1503 = vadd.f32 %v1337, 0.0
        %v1504 = vadd.f32 %v1339, 0.0
        %v1505 = vadd.f32 %v1341, 0.0
        %v1506 = vadd.f32 %v1343, 0.0
        %v1507 = vadd.f32 %v1345, 0.0
        %v1508 = vadd.f32 %v1347, 0.0
        %v1509 = vadd.f32 %v1349, 0.0
        %v1510 = vadd.f32 %v1351, 0.0
        %v1511 = vadd.f32 %v1353, 0.0
        %v1512 = vadd.f32 %v1355, 0.0
        %v1513 = vadd.f32 %v1357, 0.0
        %v1514 = vadd.f32 %v1359, 0.0
        %v1515 = vadd.f32 %v1361, 0.0
        %v1516 = vadd.f32 %v1363, 0.0
        %v1517 = vadd.f32 %v1365, 0.0
        %v1518 = vadd.f32 %v1367, 0.0
        %v1519 = vadd.f32 %v1369, 0.0
        %v1520 = vadd.f32 %v1371, 0.0
        %v1521 = vadd.f32 %v1373, 0.0
        %v1522 = vadd.f32 %v1375, 0.0
        %v1523 = vadd.f32 %v1377, 0.0
        %v1524 = vadd.f32 %v1379, 0.0
        %v1525 = vadd.f32 %v1381, 0.0
        %v1526 = vadd.f32 %v1383, 0.0
        %v1527 = vadd.f32 %v1385, 0.0
        %v1528 = vadd.f32 %v1387, 0.0
        %v1529 = vadd.f32 %v1389, 0.0
        %v1530 = vadd.f32 %v1391, 0.0
        %v1531 = vadd.f32 %v1393, 0.0
        %v1532 = vadd.f32 %v1395, 0.0
        %v1533 = vadd.f32 %v1397, 0.0
        %v1534 = vadd.f32 %v1399, 0.0
        %v1535 = vadd.f32 %v1401, 0.0
        %v1536 = vadd.f32 %v1403, 0.0
        %v1537 = vadd.f32 %v1405, 0.0
        %v1538 = vadd.f32 %v1407, 0.0
        %v1539 = vadd.f32 %v1409, 0.0
        %v1540 = vadd.f32 %v1411, 0.0
        %v1541 = vadd.f32 %v1413, 0.0
        %v1542 = vld [vmem:[%s566] sm:$0x1]
        %v1544 = vlaneseq
        %v1545 = vshrl.u32 %v1544, 7
        %v1546 = vsub.s32 0, %v1545
        %v1547 = vrot.slane %v1542, %v1546
        %1549 = vbcast.lane.b32.xlu0 %v1547, 256
        %v1550 = vpop.permute.xlu0 %1549
        %s1552 = sor.u32 256, 8
        %1553 = vbcast.lane.b32.xlu0 %v1547, %s1552
        %v1554 = vpop.permute.xlu0 %1553
        %s1556 = sor.u32 256, 16
        %1557 = vbcast.lane.b32.xlu0 %v1547, %s1556
        %v1558 = vpop.permute.xlu0 %1557
        %s1560 = sor.u32 256, 24
        %1561 = vbcast.lane.b32.xlu0 %v1547, %s1560
        %v1562 = vpop.permute.xlu0 %1561
        %s1564 = sor.u32 256, 32
        %1565 = vbcast.lane.b32.xlu0 %v1547, %s1564
        %v1566 = vpop.permute.xlu0 %1565
        %s1568 = sor.u32 256, 40
        %1569 = vbcast.lane.b32.xlu0 %v1547, %s1568
        %v1570 = vpop.permute.xlu0 %1569
        %s1572 = sor.u32 256, 48
        %1573 = vbcast.lane.b32.xlu0 %v1547, %s1572
        %v1574 = vpop.permute.xlu0 %1573
        %s1576 = sor.u32 256, 56
        %1577 = vbcast.lane.b32.xlu0 %v1547, %s1576
        %v1578 = vpop.permute.xlu0 %1577
        %s1580 = sor.u32 256, 64
        %1581 = vbcast.lane.b32.xlu0 %v1547, %s1580
        %v1582 = vpop.permute.xlu0 %1581
        %s1584 = sor.u32 256, 72
        %1585 = vbcast.lane.b32.xlu0 %v1547, %s1584
        %v1586 = vpop.permute.xlu0 %1585
        %s1588 = sor.u32 256, 80
        %1589 = vbcast.lane.b32.xlu0 %v1547, %s1588
        %v1590 = vpop.permute.xlu0 %1589
        %s1592 = sor.u32 256, 88
        %1593 = vbcast.lane.b32.xlu0 %v1547, %s1592
        %v1594 = vpop.permute.xlu0 %1593
        %s1596 = sor.u32 256, 96
        %1597 = vbcast.lane.b32.xlu0 %v1547, %s1596
        %v1598 = vpop.permute.xlu0 %1597
        %s1600 = sor.u32 256, 104
        %1601 = vbcast.lane.b32.xlu0 %v1547, %s1600
        %v1602 = vpop.permute.xlu0 %1601
        %s1604 = sor.u32 256, 112
        %1605 = vbcast.lane.b32.xlu0 %v1547, %s1604
        %v1606 = vpop.permute.xlu0 %1605
        %s1608 = sor.u32 256, 120
        %1609 = vbcast.lane.b32.xlu0 %v1547, %s1608
        %v1610 = vpop.permute.xlu0 %1609
        %v1627 = vadd.f32 %v1414, %v1550
        %v1628 = vadd.f32 %v1415, %v1554
        %v1629 = vadd.f32 %v1416, %v1558
        %v1630 = vadd.f32 %v1417, %v1562
        %v1631 = vadd.f32 %v1418, %v1566
        %v1632 = vadd.f32 %v1419, %v1570
        %v1633 = vadd.f32 %v1420, %v1574
        %v1634 = vadd.f32 %v1421, %v1578
        %v1635 = vadd.f32 %v1422, %v1582
        %v1636 = vadd.f32 %v1423, %v1586
        %v1637 = vadd.f32 %v1424, %v1590
        %v1638 = vadd.f32 %v1425, %v1594
        %v1639 = vadd.f32 %v1426, %v1598
        %v1640 = vadd.f32 %v1427, %v1602
        %v1641 = vadd.f32 %v1428, %v1606
        %v1642 = vadd.f32 %v1429, %v1610
        %v1643 = vadd.f32 %v1430, %v1550
        %v1644 = vadd.f32 %v1431, %v1554
        %v1645 = vadd.f32 %v1432, %v1558
        %v1646 = vadd.f32 %v1433, %v1562
        %v1647 = vadd.f32 %v1434, %v1566
        %v1648 = vadd.f32 %v1435, %v1570
        %v1649 = vadd.f32 %v1436, %v1574
        %v1650 = vadd.f32 %v1437, %v1578
        %v1651 = vadd.f32 %v1438, %v1582
        %v1652 = vadd.f32 %v1439, %v1586
        %v1653 = vadd.f32 %v1440, %v1590
        %v1654 = vadd.f32 %v1441, %v1594
        %v1655 = vadd.f32 %v1442, %v1598
        %v1656 = vadd.f32 %v1443, %v1602
        %v1657 = vadd.f32 %v1444, %v1606
        %v1658 = vadd.f32 %v1445, %v1610
        %v1659 = vadd.f32 %v1446, %v1550
        %v1660 = vadd.f32 %v1447, %v1554
        %v1661 = vadd.f32 %v1448, %v1558
        %v1662 = vadd.f32 %v1449, %v1562
        %v1663 = vadd.f32 %v1450, %v1566
        %v1664 = vadd.f32 %v1451, %v1570
        %v1665 = vadd.f32 %v1452, %v1574
        %v1666 = vadd.f32 %v1453, %v1578
        %v1667 = vadd.f32 %v1454, %v1582
        %v1668 = vadd.f32 %v1455, %v1586
        %v1669 = vadd.f32 %v1456, %v1590
        %v1670 = vadd.f32 %v1457, %v1594
        %v1671 = vadd.f32 %v1458, %v1598
        %v1672 = vadd.f32 %v1459, %v1602
        %v1673 = vadd.f32 %v1460, %v1606
        %v1674 = vadd.f32 %v1461, %v1610
        %v1675 = vadd.f32 %v1462, %v1550
        %v1676 = vadd.f32 %v1463, %v1554
        %v1677 = vadd.f32 %v1464, %v1558
        %v1678 = vadd.f32 %v1465, %v1562
        %v1679 = vadd.f32 %v1466, %v1566
        %v1680 = vadd.f32 %v1467, %v1570
        %v1681 = vadd.f32 %v1468, %v1574
        %v1682 = vadd.f32 %v1469, %v1578
        %v1683 = vadd.f32 %v1470, %v1582
        %v1684 = vadd.f32 %v1471, %v1586
        %v1685 = vadd.f32 %v1472, %v1590
        %v1686 = vadd.f32 %v1473, %v1594
        %v1687 = vadd.f32 %v1474, %v1598
        %v1688 = vadd.f32 %v1475, %v1602
        %v1689 = vadd.f32 %v1476, %v1606
        %v1690 = vadd.f32 %v1477, %v1610
        %v1691 = vadd.f32 %v1478, %v1550
        %v1692 = vadd.f32 %v1479, %v1554
        %v1693 = vadd.f32 %v1480, %v1558
        %v1694 = vadd.f32 %v1481, %v1562
        %v1695 = vadd.f32 %v1482, %v1566
        %v1696 = vadd.f32 %v1483, %v1570
        %v1697 = vadd.f32 %v1484, %v1574
        %v1698 = vadd.f32 %v1485, %v1578
        %v1699 = vadd.f32 %v1486, %v1582
        %v1700 = vadd.f32 %v1487, %v1586
        %v1701 = vadd.f32 %v1488, %v1590
        %v1702 = vadd.f32 %v1489, %v1594
        %v1703 = vadd.f32 %v1490, %v1598
        %v1704 = vadd.f32 %v1491, %v1602
        %v1705 = vadd.f32 %v1492, %v1606
        %v1706 = vadd.f32 %v1493, %v1610
        %v1707 = vadd.f32 %v1494, %v1550
        %v1708 = vadd.f32 %v1495, %v1554
        %v1709 = vadd.f32 %v1496, %v1558
        %v1710 = vadd.f32 %v1497, %v1562
        %v1711 = vadd.f32 %v1498, %v1566
        %v1712 = vadd.f32 %v1499, %v1570
        %v1713 = vadd.f32 %v1500, %v1574
        %v1714 = vadd.f32 %v1501, %v1578
        %v1715 = vadd.f32 %v1502, %v1582
        %v1716 = vadd.f32 %v1503, %v1586
        %v1717 = vadd.f32 %v1504, %v1590
        %v1718 = vadd.f32 %v1505, %v1594
        %v1719 = vadd.f32 %v1506, %v1598
        %v1720 = vadd.f32 %v1507, %v1602
        %v1721 = vadd.f32 %v1508, %v1606
        %v1722 = vadd.f32 %v1509, %v1610
        %v1723 = vadd.f32 %v1510, %v1550
        %v1724 = vadd.f32 %v1511, %v1554
        %v1725 = vadd.f32 %v1512, %v1558
        %v1726 = vadd.f32 %v1513, %v1562
        %v1727 = vadd.f32 %v1514, %v1566
        %v1728 = vadd.f32 %v1515, %v1570
        %v1729 = vadd.f32 %v1516, %v1574
        %v1730 = vadd.f32 %v1517, %v1578
        %v1731 = vadd.f32 %v1518, %v1582
        %v1732 = vadd.f32 %v1519, %v1586
        %v1733 = vadd.f32 %v1520, %v1590
        %v1734 = vadd.f32 %v1521, %v1594
        %v1735 = vadd.f32 %v1522, %v1598
        %v1736 = vadd.f32 %v1523, %v1602
        %v1737 = vadd.f32 %v1524, %v1606
        %v1738 = vadd.f32 %v1525, %v1610
        %v1739 = vadd.f32 %v1526, %v1550
        %v1740 = vadd.f32 %v1527, %v1554
        %v1741 = vadd.f32 %v1528, %v1558
        %v1742 = vadd.f32 %v1529, %v1562
        %v1743 = vadd.f32 %v1530, %v1566
        %v1744 = vadd.f32 %v1531, %v1570
        %v1745 = vadd.f32 %v1532, %v1574
        %v1746 = vadd.f32 %v1533, %v1578
        %v1747 = vadd.f32 %v1534, %v1582
        %v1748 = vadd.f32 %v1535, %v1586
        %v1749 = vadd.f32 %v1536, %v1590
        %v1750 = vadd.f32 %v1537, %v1594
        %v1751 = vadd.f32 %v1538, %v1598
        %v1752 = vadd.f32 %v1539, %v1602
        %v1753 = vadd.f32 %v1540, %v1606
        %v1754 = vadd.f32 %v1541, %v1610
        %1883 = vset.pattern.permute.xlu0 0
        %1884 = vperm.xlu0 %1883, %v1627
        %v1885 = vpop.permute.xlu0 %1884
        %1886 = vset.pattern.permute.xlu0 0
        %1887 = vperm.xlu0 %1886, %v1628
        %v1888 = vpop.permute.xlu0 %1887
        %1889 = vset.pattern.permute.xlu0 0
        %1890 = vperm.xlu0 %1889, %v1629
        %v1891 = vpop.permute.xlu0 %1890
        %1892 = vset.pattern.permute.xlu0 0
        %1893 = vperm.xlu0 %1892, %v1630
        %v1894 = vpop.permute.xlu0 %1893
        %1895 = vset.pattern.permute.xlu0 0
        %1896 = vperm.xlu0 %1895, %v1631
        %v1897 = vpop.permute.xlu0 %1896
        %1898 = vset.pattern.permute.xlu0 0
        %1899 = vperm.xlu0 %1898, %v1632
        %v1900 = vpop.permute.xlu0 %1899
        %1901 = vset.pattern.permute.xlu0 0
        %1902 = vperm.xlu0 %1901, %v1633
        %v1903 = vpop.permute.xlu0 %1902
        %1904 = vset.pattern.permute.xlu0 0
        %1905 = vperm.xlu0 %1904, %v1634
        %v1906 = vpop.permute.xlu0 %1905
        %1907 = vset.pattern.permute.xlu0 0
        %1908 = vperm.xlu0 %1907, %v1635
        %v1909 = vpop.permute.xlu0 %1908
        %1910 = vset.pattern.permute.xlu0 0
        %1911 = vperm.xlu0 %1910, %v1636
        %v1912 = vpop.permute.xlu0 %1911
        %1913 = vset.pattern.permute.xlu0 0
        %1914 = vperm.xlu0 %1913, %v1637
        %v1915 = vpop.permute.xlu0 %1914
        %1916 = vset.pattern.permute.xlu0 0
        %1917 = vperm.xlu0 %1916, %v1638
        %v1918 = vpop.permute.xlu0 %1917
        %1919 = vset.pattern.permute.xlu0 0
        %1920 = vperm.xlu0 %1919, %v1639
        %v1921 = vpop.permute.xlu0 %1920
        %1922 = vset.pattern.permute.xlu0 0
        %1923 = vperm.xlu0 %1922, %v1640
        %v1924 = vpop.permute.xlu0 %1923
        %1925 = vset.pattern.permute.xlu0 0
        %1926 = vperm.xlu0 %1925, %v1641
        %v1927 = vpop.permute.xlu0 %1926
        %1928 = vset.pattern.permute.xlu0 0
        %1929 = vperm.xlu0 %1928, %v1642
        %v1930 = vpop.permute.xlu0 %1929
        %1931 = vset.pattern.permute.xlu0 0
        %1932 = vperm.xlu0 %1931, %v1643
        %v1933 = vpop.permute.xlu0 %1932
        %1934 = vset.pattern.permute.xlu0 0
        %1935 = vperm.xlu0 %1934, %v1644
        %v1936 = vpop.permute.xlu0 %1935
        %1937 = vset.pattern.permute.xlu0 0
        %1938 = vperm.xlu0 %1937, %v1645
        %v1939 = vpop.permute.xlu0 %1938
        %1940 = vset.pattern.permute.xlu0 0
        %1941 = vperm.xlu0 %1940, %v1646
        %v1942 = vpop.permute.xlu0 %1941
        %1943 = vset.pattern.permute.xlu0 0
        %1944 = vperm.xlu0 %1943, %v1647
        %v1945 = vpop.permute.xlu0 %1944
        %1946 = vset.pattern.permute.xlu0 0
        %1947 = vperm.xlu0 %1946, %v1648
        %v1948 = vpop.permute.xlu0 %1947
        %1949 = vset.pattern.permute.xlu0 0
        %1950 = vperm.xlu0 %1949, %v1649
        %v1951 = vpop.permute.xlu0 %1950
        %1952 = vset.pattern.permute.xlu0 0
        %1953 = vperm.xlu0 %1952, %v1650
        %v1954 = vpop.permute.xlu0 %1953
        %1955 = vset.pattern.permute.xlu0 0
        %1956 = vperm.xlu0 %1955, %v1651
        %v1957 = vpop.permute.xlu0 %1956
        %1958 = vset.pattern.permute.xlu0 0
        %1959 = vperm.xlu0 %1958, %v1652
        %v1960 = vpop.permute.xlu0 %1959
        %1961 = vset.pattern.permute.xlu0 0
        %1962 = vperm.xlu0 %1961, %v1653
        %v1963 = vpop.permute.xlu0 %1962
        %1964 = vset.pattern.permute.xlu0 0
        %1965 = vperm.xlu0 %1964, %v1654
        %v1966 = vpop.permute.xlu0 %1965
        %1967 = vset.pattern.permute.xlu0 0
        %1968 = vperm.xlu0 %1967, %v1655
        %v1969 = vpop.permute.xlu0 %1968
        %1970 = vset.pattern.permute.xlu0 0
        %1971 = vperm.xlu0 %1970, %v1656
        %v1972 = vpop.permute.xlu0 %1971
        %1973 = vset.pattern.permute.xlu0 0
        %1974 = vperm.xlu0 %1973, %v1657
        %v1975 = vpop.permute.xlu0 %1974
        %1976 = vset.pattern.permute.xlu0 0
        %1977 = vperm.xlu0 %1976, %v1658
        %v1978 = vpop.permute.xlu0 %1977
        %1979 = vset.pattern.permute.xlu0 0
        %1980 = vperm.xlu0 %1979, %v1659
        %v1981 = vpop.permute.xlu0 %1980
        %1982 = vset.pattern.permute.xlu0 0
        %1983 = vperm.xlu0 %1982, %v1660
        %v1984 = vpop.permute.xlu0 %1983
        %1985 = vset.pattern.permute.xlu0 0
        %1986 = vperm.xlu0 %1985, %v1661
        %v1987 = vpop.permute.xlu0 %1986
        %1988 = vset.pattern.permute.xlu0 0
        %1989 = vperm.xlu0 %1988, %v1662
        %v1990 = vpop.permute.xlu0 %1989
        %1991 = vset.pattern.permute.xlu0 0
        %1992 = vperm.xlu0 %1991, %v1663
        %v1993 = vpop.permute.xlu0 %1992
        %1994 = vset.pattern.permute.xlu0 0
        %1995 = vperm.xlu0 %1994, %v1664
        %v1996 = vpop.permute.xlu0 %1995
        %1997 = vset.pattern.permute.xlu0 0
        %1998 = vperm.xlu0 %1997, %v1665
        %v1999 = vpop.permute.xlu0 %1998
        %2000 = vset.pattern.permute.xlu0 0
        %2001 = vperm.xlu0 %2000, %v1666
        %v2002 = vpop.permute.xlu0 %2001
        %2003 = vset.pattern.permute.xlu0 0
        %2004 = vperm.xlu0 %2003, %v1667
        %v2005 = vpop.permute.xlu0 %2004
        %2006 = vset.pattern.permute.xlu0 0
        %2007 = vperm.xlu0 %2006, %v1668
        %v2008 = vpop.permute.xlu0 %2007
        %2009 = vset.pattern.permute.xlu0 0
        %2010 = vperm.xlu0 %2009, %v1669
        %v2011 = vpop.permute.xlu0 %2010
        %2012 = vset.pattern.permute.xlu0 0
        %2013 = vperm.xlu0 %2012, %v1670
        %v2014 = vpop.permute.xlu0 %2013
        %2015 = vset.pattern.permute.xlu0 0
        %2016 = vperm.xlu0 %2015, %v1671
        %v2017 = vpop.permute.xlu0 %2016
        %2018 = vset.pattern.permute.xlu0 0
        %2019 = vperm.xlu0 %2018, %v1672
        %v2020 = vpop.permute.xlu0 %2019
        %2021 = vset.pattern.permute.xlu0 0
        %2022 = vperm.xlu0 %2021, %v1673
        %v2023 = vpop.permute.xlu0 %2022
        %2024 = vset.pattern.permute.xlu0 0
        %2025 = vperm.xlu0 %2024, %v1674
        %v2026 = vpop.permute.xlu0 %2025
        %2027 = vset.pattern.permute.xlu0 0
        %2028 = vperm.xlu0 %2027, %v1675
        %v2029 = vpop.permute.xlu0 %2028
        %2030 = vset.pattern.permute.xlu0 0
        %2031 = vperm.xlu0 %2030, %v1676
        %v2032 = vpop.permute.xlu0 %2031
        %2033 = vset.pattern.permute.xlu0 0
        %2034 = vperm.xlu0 %2033, %v1677
        %v2035 = vpop.permute.xlu0 %2034
        %2036 = vset.pattern.permute.xlu0 0
        %2037 = vperm.xlu0 %2036, %v1678
        %v2038 = vpop.permute.xlu0 %2037
        %2039 = vset.pattern.permute.xlu0 0
        %2040 = vperm.xlu0 %2039, %v1679
        %v2041 = vpop.permute.xlu0 %2040
        %2042 = vset.pattern.permute.xlu0 0
        %2043 = vperm.xlu0 %2042, %v1680
        %v2044 = vpop.permute.xlu0 %2043
        %2045 = vset.pattern.permute.xlu0 0
        %2046 = vperm.xlu0 %2045, %v1681
        %v2047 = vpop.permute.xlu0 %2046
        %2048 = vset.pattern.permute.xlu0 0
        %2049 = vperm.xlu0 %2048, %v1682
        %v2050 = vpop.permute.xlu0 %2049
        %2051 = vset.pattern.permute.xlu0 0
        %2052 = vperm.xlu0 %2051, %v1683
        %v2053 = vpop.permute.xlu0 %2052
        %2054 = vset.pattern.permute.xlu0 0
        %2055 = vperm.xlu0 %2054, %v1684
        %v2056 = vpop.permute.xlu0 %2055
        %2057 = vset.pattern.permute.xlu0 0
        %2058 = vperm.xlu0 %2057, %v1685
        %v2059 = vpop.permute.xlu0 %2058
        %2060 = vset.pattern.permute.xlu0 0
        %2061 = vperm.xlu0 %2060, %v1686
        %v2062 = vpop.permute.xlu0 %2061
        %2063 = vset.pattern.permute.xlu0 0
        %2064 = vperm.xlu0 %2063, %v1687
        %v2065 = vpop.permute.xlu0 %2064
        %2066 = vset.pattern.permute.xlu0 0
        %2067 = vperm.xlu0 %2066, %v1688
        %v2068 = vpop.permute.xlu0 %2067
        %2069 = vset.pattern.permute.xlu0 0
        %2070 = vperm.xlu0 %2069, %v1689
        %v2071 = vpop.permute.xlu0 %2070
        %2072 = vset.pattern.permute.xlu0 0
        %2073 = vperm.xlu0 %2072, %v1690
        %v2074 = vpop.permute.xlu0 %2073
        %2075 = vset.pattern.permute.xlu0 0
        %2076 = vperm.xlu0 %2075, %v1691
        %v2077 = vpop.permute.xlu0 %2076
        %2078 = vset.pattern.permute.xlu0 0
        %2079 = vperm.xlu0 %2078, %v1692
        %v2080 = vpop.permute.xlu0 %2079
        %2081 = vset.pattern.permute.xlu0 0
        %2082 = vperm.xlu0 %2081, %v1693
        %v2083 = vpop.permute.xlu0 %2082
        %2084 = vset.pattern.permute.xlu0 0
        %2085 = vperm.xlu0 %2084, %v1694
        %v2086 = vpop.permute.xlu0 %2085
        %2087 = vset.pattern.permute.xlu0 0
        %2088 = vperm.xlu0 %2087, %v1695
        %v2089 = vpop.permute.xlu0 %2088
        %2090 = vset.pattern.permute.xlu0 0
        %2091 = vperm.xlu0 %2090, %v1696
        %v2092 = vpop.permute.xlu0 %2091
        %2093 = vset.pattern.permute.xlu0 0
        %2094 = vperm.xlu0 %2093, %v1697
        %v2095 = vpop.permute.xlu0 %2094
        %2096 = vset.pattern.permute.xlu0 0
        %2097 = vperm.xlu0 %2096, %v1698
        %v2098 = vpop.permute.xlu0 %2097
        %2099 = vset.pattern.permute.xlu0 0
        %2100 = vperm.xlu0 %2099, %v1699
        %v2101 = vpop.permute.xlu0 %2100
        %2102 = vset.pattern.permute.xlu0 0
        %2103 = vperm.xlu0 %2102, %v1700
        %v2104 = vpop.permute.xlu0 %2103
        %2105 = vset.pattern.permute.xlu0 0
        %2106 = vperm.xlu0 %2105, %v1701
        %v2107 = vpop.permute.xlu0 %2106
        %2108 = vset.pattern.permute.xlu0 0
        %2109 = vperm.xlu0 %2108, %v1702
        %v2110 = vpop.permute.xlu0 %2109
        %2111 = vset.pattern.permute.xlu0 0
        %2112 = vperm.xlu0 %2111, %v1703
        %v2113 = vpop.permute.xlu0 %2112
        %2114 = vset.pattern.permute.xlu0 0
        %2115 = vperm.xlu0 %2114, %v1704
        %v2116 = vpop.permute.xlu0 %2115
        %2117 = vset.pattern.permute.xlu0 0
        %2118 = vperm.xlu0 %2117, %v1705
        %v2119 = vpop.permute.xlu0 %2118
        %2120 = vset.pattern.permute.xlu0 0
        %2121 = vperm.xlu0 %2120, %v1706
        %v2122 = vpop.permute.xlu0 %2121
        %2123 = vset.pattern.permute.xlu0 0
        %2124 = vperm.xlu0 %2123, %v1707
        %v2125 = vpop.permute.xlu0 %2124
        %2126 = vset.pattern.permute.xlu0 0
        %2127 = vperm.xlu0 %2126, %v1708
        %v2128 = vpop.permute.xlu0 %2127
        %2129 = vset.pattern.permute.xlu0 0
        %2130 = vperm.xlu0 %2129, %v1709
        %v2131 = vpop.permute.xlu0 %2130
        %2132 = vset.pattern.permute.xlu0 0
        %2133 = vperm.xlu0 %2132, %v1710
        %v2134 = vpop.permute.xlu0 %2133
        %2135 = vset.pattern.permute.xlu0 0
        %2136 = vperm.xlu0 %2135, %v1711
        %v2137 = vpop.permute.xlu0 %2136
        %2138 = vset.pattern.permute.xlu0 0
        %2139 = vperm.xlu0 %2138, %v1712
        %v2140 = vpop.permute.xlu0 %2139
        %2141 = vset.pattern.permute.xlu0 0
        %2142 = vperm.xlu0 %2141, %v1713
        %v2143 = vpop.permute.xlu0 %2142
        %2144 = vset.pattern.permute.xlu0 0
        %2145 = vperm.xlu0 %2144, %v1714
        %v2146 = vpop.permute.xlu0 %2145
        %2147 = vset.pattern.permute.xlu0 0
        %2148 = vperm.xlu0 %2147, %v1715
        %v2149 = vpop.permute.xlu0 %2148
        %2150 = vset.pattern.permute.xlu0 0
        %2151 = vperm.xlu0 %2150, %v1716
        %v2152 = vpop.permute.xlu0 %2151
        %2153 = vset.pattern.permute.xlu0 0
        %2154 = vperm.xlu0 %2153, %v1717
        %v2155 = vpop.permute.xlu0 %2154
        %2156 = vset.pattern.permute.xlu0 0
        %2157 = vperm.xlu0 %2156, %v1718
        %v2158 = vpop.permute.xlu0 %2157
        %2159 = vset.pattern.permute.xlu0 0
        %2160 = vperm.xlu0 %2159, %v1719
        %v2161 = vpop.permute.xlu0 %2160
        %2162 = vset.pattern.permute.xlu0 0
        %2163 = vperm.xlu0 %2162, %v1720
        %v2164 = vpop.permute.xlu0 %2163
        %2165 = vset.pattern.permute.xlu0 0
        %2166 = vperm.xlu0 %2165, %v1721
        %v2167 = vpop.permute.xlu0 %2166
        %2168 = vset.pattern.permute.xlu0 0
        %2169 = vperm.xlu0 %2168, %v1722
        %v2170 = vpop.permute.xlu0 %2169
        %2171 = vset.pattern.permute.xlu0 0
        %2172 = vperm.xlu0 %2171, %v1723
        %v2173 = vpop.permute.xlu0 %2172
        %2174 = vset.pattern.permute.xlu0 0
        %2175 = vperm.xlu0 %2174, %v1724
        %v2176 = vpop.permute.xlu0 %2175
        %2177 = vset.pattern.permute.xlu0 0
        %2178 = vperm.xlu0 %2177, %v1725
        %v2179 = vpop.permute.xlu0 %2178
        %2180 = vset.pattern.permute.xlu0 0
        %2181 = vperm.xlu0 %2180, %v1726
        %v2182 = vpop.permute.xlu0 %2181
        %2183 = vset.pattern.permute.xlu0 0
        %2184 = vperm.xlu0 %2183, %v1727
        %v2185 = vpop.permute.xlu0 %2184
        %2186 = vset.pattern.permute.xlu0 0
        %2187 = vperm.xlu0 %2186, %v1728
        %v2188 = vpop.permute.xlu0 %2187
        %2189 = vset.pattern.permute.xlu0 0
        %2190 = vperm.xlu0 %2189, %v1729
        %v2191 = vpop.permute.xlu0 %2190
        %2192 = vset.pattern.permute.xlu0 0
        %2193 = vperm.xlu0 %2192, %v1730
        %v2194 = vpop.permute.xlu0 %2193
        %2195 = vset.pattern.permute.xlu0 0
        %2196 = vperm.xlu0 %2195, %v1731
        %v2197 = vpop.permute.xlu0 %2196
        %2198 = vset.pattern.permute.xlu0 0
        %2199 = vperm.xlu0 %2198, %v1732
        %v2200 = vpop.permute.xlu0 %2199
        %2201 = vset.pattern.permute.xlu0 0
        %2202 = vperm.xlu0 %2201, %v1733
        %v2203 = vpop.permute.xlu0 %2202
        %2204 = vset.pattern.permute.xlu0 0
        %2205 = vperm.xlu0 %2204, %v1734
        %v2206 = vpop.permute.xlu0 %2205
        %2207 = vset.pattern.permute.xlu0 0
        %2208 = vperm.xlu0 %2207, %v1735
        %v2209 = vpop.permute.xlu0 %2208
        %2210 = vset.pattern.permute.xlu0 0
        %2211 = vperm.xlu0 %2210, %v1736
        %v2212 = vpop.permute.xlu0 %2211
        %2213 = vset.pattern.permute.xlu0 0
        %2214 = vperm.xlu0 %2213, %v1737
        %v2215 = vpop.permute.xlu0 %2214
        %2216 = vset.pattern.permute.xlu0 0
        %2217 = vperm.xlu0 %2216, %v1738
        %v2218 = vpop.permute.xlu0 %2217
        %2219 = vset.pattern.permute.xlu0 0
        %2220 = vperm.xlu0 %2219, %v1739
        %v2221 = vpop.permute.xlu0 %2220
        %2222 = vset.pattern.permute.xlu0 0
        %2223 = vperm.xlu0 %2222, %v1740
        %v2224 = vpop.permute.xlu0 %2223
        %2225 = vset.pattern.permute.xlu0 0
        %2226 = vperm.xlu0 %2225, %v1741
        %v2227 = vpop.permute.xlu0 %2226
        %2228 = vset.pattern.permute.xlu0 0
        %2229 = vperm.xlu0 %2228, %v1742
        %v2230 = vpop.permute.xlu0 %2229
        %2231 = vset.pattern.permute.xlu0 0
        %2232 = vperm.xlu0 %2231, %v1743
        %v2233 = vpop.permute.xlu0 %2232
        %2234 = vset.pattern.permute.xlu0 0
        %2235 = vperm.xlu0 %2234, %v1744
        %v2236 = vpop.permute.xlu0 %2235
        %2237 = vset.pattern.permute.xlu0 0
        %2238 = vperm.xlu0 %2237, %v1745
        %v2239 = vpop.permute.xlu0 %2238
        %2240 = vset.pattern.permute.xlu0 0
        %2241 = vperm.xlu0 %2240, %v1746
        %v2242 = vpop.permute.xlu0 %2241
        %2243 = vset.pattern.permute.xlu0 0
        %2244 = vperm.xlu0 %2243, %v1747
        %v2245 = vpop.permute.xlu0 %2244
        %2246 = vset.pattern.permute.xlu0 0
        %2247 = vperm.xlu0 %2246, %v1748
        %v2248 = vpop.permute.xlu0 %2247
        %2249 = vset.pattern.permute.xlu0 0
        %2250 = vperm.xlu0 %2249, %v1749
        %v2251 = vpop.permute.xlu0 %2250
        %2252 = vset.pattern.permute.xlu0 0
        %2253 = vperm.xlu0 %2252, %v1750
        %v2254 = vpop.permute.xlu0 %2253
        %2255 = vset.pattern.permute.xlu0 0
        %2256 = vperm.xlu0 %2255, %v1751
        %v2257 = vpop.permute.xlu0 %2256
        %2258 = vset.pattern.permute.xlu0 0
        %2259 = vperm.xlu0 %2258, %v1752
        %v2260 = vpop.permute.xlu0 %2259
        %2261 = vset.pattern.permute.xlu0 0
        %2262 = vperm.xlu0 %2261, %v1753
        %v2263 = vpop.permute.xlu0 %2262
        %2264 = vset.pattern.permute.xlu0 0
        %2265 = vperm.xlu0 %2264, %v1754
        %v2266 = vpop.permute.xlu0 %2265
        %v2267 = vlaneseq
        %v2268 = vand.u32 %v2267, 127
        %v2269 = vlaneseq
        %v2270 = vshrl.u32 %v2269, 7
        %v2271 = vsub.s32 %v2268, %v2270
        %v2272 = vrot.slane %v1885, %v2271
        %v2273 = vadd.s32 %v2268, 4294967288
        %v2274 = vlaneseq
        %v2275 = vshrl.u32 %v2274, 7
        %v2276 = vsub.s32 %v2273, %v2275
        %v2277 = vrot.slane %v1888, %v2276
        %vm2278 = vcmask 130112
        %v2279 = vsel %vm2278, %v2277, %v2272
        %v2280 = vadd.s32 %v2268, 4294967280
        %v2281 = vlaneseq
        %v2282 = vshrl.u32 %v2281, 7
        %v2283 = vsub.s32 %v2280, %v2282
        %v2284 = vrot.slane %v1891, %v2283
        %vm2285 = vcmask 195712
        %v2286 = vsel %vm2285, %v2284, %v2279
        %v2287 = vadd.s32 %v2268, 4294967272
        %v2288 = vlaneseq
        %v2289 = vshrl.u32 %v2288, 7
        %v2290 = vsub.s32 %v2287, %v2289
        %v2291 = vrot.slane %v1894, %v2290
        %vm2292 = vcmask 261312
        %v2293 = vsel %vm2292, %v2291, %v2286
        %v2294 = vadd.s32 %v2268, 4294967264
        %v2295 = vlaneseq
        %v2296 = vshrl.u32 %v2295, 7
        %v2297 = vsub.s32 %v2294, %v2296
        %v2298 = vrot.slane %v1897, %v2297
        %vm2299 = vcmask 326912
        %v2300 = vsel %vm2299, %v2298, %v2293
        %v2301 = vadd.s32 %v2268, 4294967256
        %v2302 = vlaneseq
        %v2303 = vshrl.u32 %v2302, 7
        %v2304 = vsub.s32 %v2301, %v2303
        %v2305 = vrot.slane %v1900, %v2304
        %vm2306 = vcmask 392512
        %v2307 = vsel %vm2306, %v2305, %v2300
        %v2308 = vadd.s32 %v2268, 4294967248
        %v2309 = vlaneseq
        %v2310 = vshrl.u32 %v2309, 7
        %v2311 = vsub.s32 %v2308, %v2310
        %v2312 = vrot.slane %v1903, %v2311
        %vm2313 = vcmask 458112
        %v2314 = vsel %vm2313, %v2312, %v2307
        %v2315 = vadd.s32 %v2268, 4294967240
        %v2316 = vlaneseq
        %v2317 = vshrl.u32 %v2316, 7
        %v2318 = vsub.s32 %v2315, %v2317
        %v2319 = vrot.slane %v1906, %v2318
        %vm2320 = vcmask 523712
        %v2321 = vsel %vm2320, %v2319, %v2314
        %v2322 = vadd.s32 %v2268, 4294967232
        %v2323 = vlaneseq
        %v2324 = vshrl.u32 %v2323, 7
        %v2325 = vsub.s32 %v2322, %v2324
        %v2326 = vrot.slane %v1909, %v2325
        %vm2327 = vcmask 589312
        %v2328 = vsel %vm2327, %v2326, %v2321
        %v2329 = vadd.s32 %v2268, 4294967224
        %v2330 = vlaneseq
        %v2331 = vshrl.u32 %v2330, 7
        %v2332 = vsub.s32 %v2329, %v2331
        %v2333 = vrot.slane %v1912, %v2332
        %vm2334 = vcmask 654912
        %v2335 = vsel %vm2334, %v2333, %v2328
        %v2336 = vadd.s32 %v2268, 4294967216
        %v2337 = vlaneseq
        %v2338 = vshrl.u32 %v2337, 7
        %v2339 = vsub.s32 %v2336, %v2338
        %v2340 = vrot.slane %v1915, %v2339
        %vm2341 = vcmask 720512
        %v2342 = vsel %vm2341, %v2340, %v2335
        %v2343 = vadd.s32 %v2268, 4294967208
        %v2344 = vlaneseq
        %v2345 = vshrl.u32 %v2344, 7
        %v2346 = vsub.s32 %v2343, %v2345
        %v2347 = vrot.slane %v1918, %v2346
        %vm2348 = vcmask 786112
        %v2349 = vsel %vm2348, %v2347, %v2342
        %v2350 = vadd.s32 %v2268, 4294967200
        %v2351 = vlaneseq
        %v2352 = vshrl.u32 %v2351, 7
        %v2353 = vsub.s32 %v2350, %v2352
        %v2354 = vrot.slane %v1921, %v2353
        %vm2355 = vcmask 851712
        %v2356 = vsel %vm2355, %v2354, %v2349
        %v2357 = vadd.s32 %v2268, 4294967192
        %v2358 = vlaneseq
        %v2359 = vshrl.u32 %v2358, 7
        %v2360 = vsub.s32 %v2357, %v2359
        %v2361 = vrot.slane %v1924, %v2360
        %vm2362 = vcmask 917312
        %v2363 = vsel %vm2362, %v2361, %v2356
        %v2364 = vadd.s32 %v2268, 4294967184
        %v2365 = vlaneseq
        %v2366 = vshrl.u32 %v2365, 7
        %v2367 = vsub.s32 %v2364, %v2366
        %v2368 = vrot.slane %v1927, %v2367
        %vm2369 = vcmask 982912
        %v2370 = vsel %vm2369, %v2368, %v2363
        %v2371 = vadd.s32 %v2268, 4294967176
        %v2372 = vlaneseq
        %v2373 = vshrl.u32 %v2372, 7
        %v2374 = vsub.s32 %v2371, %v2373
        %v2375 = vrot.slane %v1930, %v2374
        %vm2376 = vcmask 1048512
        %v2377 = vsel %vm2376, %v2375, %v2370
        %v2378 = vlaneseq
        %v2379 = vshrl.u32 %v2378, 7
        %v2380 = vsub.s32 %v2268, %v2379
        %v2381 = vrot.slane %v1933, %v2380
        %v2382 = vlaneseq
        %v2383 = vshrl.u32 %v2382, 7
        %v2384 = vsub.s32 %v2273, %v2383
        %v2385 = vrot.slane %v1936, %v2384
        %v2386 = vsel %vm2278, %v2385, %v2381
        %v2387 = vlaneseq
        %v2388 = vshrl.u32 %v2387, 7
        %v2389 = vsub.s32 %v2280, %v2388
        %v2390 = vrot.slane %v1939, %v2389
        %v2391 = vsel %vm2285, %v2390, %v2386
        %v2392 = vlaneseq
        %v2393 = vshrl.u32 %v2392, 7
        %v2394 = vsub.s32 %v2287, %v2393
        %v2395 = vrot.slane %v1942, %v2394
        %v2396 = vsel %vm2292, %v2395, %v2391
        %v2397 = vlaneseq
        %v2398 = vshrl.u32 %v2397, 7
        %v2399 = vsub.s32 %v2294, %v2398
        %v2400 = vrot.slane %v1945, %v2399
        %v2401 = vsel %vm2299, %v2400, %v2396
        %v2402 = vlaneseq
        %v2403 = vshrl.u32 %v2402, 7
        %v2404 = vsub.s32 %v2301, %v2403
        %v2405 = vrot.slane %v1948, %v2404
        %v2406 = vsel %vm2306, %v2405, %v2401
        %v2407 = vlaneseq
        %v2408 = vshrl.u32 %v2407, 7
        %v2409 = vsub.s32 %v2308, %v2408
        %v2410 = vrot.slane %v1951, %v2409
        %v2411 = vsel %vm2313, %v2410, %v2406
        %v2412 = vlaneseq
        %v2413 = vshrl.u32 %v2412, 7
        %v2414 = vsub.s32 %v2315, %v2413
        %v2415 = vrot.slane %v1954, %v2414
        %v2416 = vsel %vm2320, %v2415, %v2411
        %v2417 = vlaneseq
        %v2418 = vshrl.u32 %v2417, 7
        %v2419 = vsub.s32 %v2322, %v2418
        %v2420 = vrot.slane %v1957, %v2419
        %v2421 = vsel %vm2327, %v2420, %v2416
        %v2422 = vlaneseq
        %v2423 = vshrl.u32 %v2422, 7
        %v2424 = vsub.s32 %v2329, %v2423
        %v2425 = vrot.slane %v1960, %v2424
        %v2426 = vsel %vm2334, %v2425, %v2421
        %v2427 = vlaneseq
        %v2428 = vshrl.u32 %v2427, 7
        %v2429 = vsub.s32 %v2336, %v2428
        %v2430 = vrot.slane %v1963, %v2429
        %v2431 = vsel %vm2341, %v2430, %v2426
        %v2432 = vlaneseq
        %v2433 = vshrl.u32 %v2432, 7
        %v2434 = vsub.s32 %v2343, %v2433
        %v2435 = vrot.slane %v1966, %v2434
        %v2436 = vsel %vm2348, %v2435, %v2431
        %v2437 = vlaneseq
        %v2438 = vshrl.u32 %v2437, 7
        %v2439 = vsub.s32 %v2350, %v2438
        %v2440 = vrot.slane %v1969, %v2439
        %v2441 = vsel %vm2355, %v2440, %v2436
        %v2442 = vlaneseq
        %v2443 = vshrl.u32 %v2442, 7
        %v2444 = vsub.s32 %v2357, %v2443
        %v2445 = vrot.slane %v1972, %v2444
        %v2446 = vsel %vm2362, %v2445, %v2441
        %v2447 = vlaneseq
        %v2448 = vshrl.u32 %v2447, 7
        %v2449 = vsub.s32 %v2364, %v2448
        %v2450 = vrot.slane %v1975, %v2449
        %v2451 = vsel %vm2369, %v2450, %v2446
        %v2452 = vlaneseq
        %v2453 = vshrl.u32 %v2452, 7
        %v2454 = vsub.s32 %v2371, %v2453
        %v2455 = vrot.slane %v1978, %v2454
        %v2456 = vsel %vm2376, %v2455, %v2451
        %v2457 = vlaneseq
        %v2458 = vshrl.u32 %v2457, 7
        %v2459 = vsub.s32 %v2268, %v2458
        %v2460 = vrot.slane %v1981, %v2459
        %v2461 = vlaneseq
        %v2462 = vshrl.u32 %v2461, 7
        %v2463 = vsub.s32 %v2273, %v2462
        %v2464 = vrot.slane %v1984, %v2463
        %v2465 = vsel %vm2278, %v2464, %v2460
        %v2466 = vlaneseq
        %v2467 = vshrl.u32 %v2466, 7
        %v2468 = vsub.s32 %v2280, %v2467
        %v2469 = vrot.slane %v1987, %v2468
        %v2470 = vsel %vm2285, %v2469, %v2465
        %v2471 = vlaneseq
        %v2472 = vshrl.u32 %v2471, 7
        %v2473 = vsub.s32 %v2287, %v2472
        %v2474 = vrot.slane %v1990, %v2473
        %v2475 = vsel %vm2292, %v2474, %v2470
        %v2476 = vlaneseq
        %v2477 = vshrl.u32 %v2476, 7
        %v2478 = vsub.s32 %v2294, %v2477
        %v2479 = vrot.slane %v1993, %v2478
        %v2480 = vsel %vm2299, %v2479, %v2475
        %v2481 = vlaneseq
        %v2482 = vshrl.u32 %v2481, 7
        %v2483 = vsub.s32 %v2301, %v2482
        %v2484 = vrot.slane %v1996, %v2483
        %v2485 = vsel %vm2306, %v2484, %v2480
        %v2486 = vlaneseq
        %v2487 = vshrl.u32 %v2486, 7
        %v2488 = vsub.s32 %v2308, %v2487
        %v2489 = vrot.slane %v1999, %v2488
        %v2490 = vsel %vm2313, %v2489, %v2485
        %v2491 = vlaneseq
        %v2492 = vshrl.u32 %v2491, 7
        %v2493 = vsub.s32 %v2315, %v2492
        %v2494 = vrot.slane %v2002, %v2493
        %v2495 = vsel %vm2320, %v2494, %v2490
        %v2496 = vlaneseq
        %v2497 = vshrl.u32 %v2496, 7
        %v2498 = vsub.s32 %v2322, %v2497
        %v2499 = vrot.slane %v2005, %v2498
        %v2500 = vsel %vm2327, %v2499, %v2495
        %v2501 = vlaneseq
        %v2502 = vshrl.u32 %v2501, 7
        %v2503 = vsub.s32 %v2329, %v2502
        %v2504 = vrot.slane %v2008, %v2503
        %v2505 = vsel %vm2334, %v2504, %v2500
        %v2506 = vlaneseq
        %v2507 = vshrl.u32 %v2506, 7
        %v2508 = vsub.s32 %v2336, %v2507
        %v2509 = vrot.slane %v2011, %v2508
        %v2510 = vsel %vm2341, %v2509, %v2505
        %v2511 = vlaneseq
        %v2512 = vshrl.u32 %v2511, 7
        %v2513 = vsub.s32 %v2343, %v2512
        %v2514 = vrot.slane %v2014, %v2513
        %v2515 = vsel %vm2348, %v2514, %v2510
        %v2516 = vlaneseq
        %v2517 = vshrl.u32 %v2516, 7
        %v2518 = vsub.s32 %v2350, %v2517
        %v2519 = vrot.slane %v2017, %v2518
        %v2520 = vsel %vm2355, %v2519, %v2515
        %v2521 = vlaneseq
        %v2522 = vshrl.u32 %v2521, 7
        %v2523 = vsub.s32 %v2357, %v2522
        %v2524 = vrot.slane %v2020, %v2523
        %v2525 = vsel %vm2362, %v2524, %v2520
        %v2526 = vlaneseq
        %v2527 = vshrl.u32 %v2526, 7
        %v2528 = vsub.s32 %v2364, %v2527
        %v2529 = vrot.slane %v2023, %v2528
        %v2530 = vsel %vm2369, %v2529, %v2525
        %v2531 = vlaneseq
        %v2532 = vshrl.u32 %v2531, 7
        %v2533 = vsub.s32 %v2371, %v2532
        %v2534 = vrot.slane %v2026, %v2533
        %v2535 = vsel %vm2376, %v2534, %v2530
        %v2536 = vlaneseq
        %v2537 = vshrl.u32 %v2536, 7
        %v2538 = vsub.s32 %v2268, %v2537
        %v2539 = vrot.slane %v2029, %v2538
        %v2540 = vlaneseq
        %v2541 = vshrl.u32 %v2540, 7
        %v2542 = vsub.s32 %v2273, %v2541
        %v2543 = vrot.slane %v2032, %v2542
        %v2544 = vsel %vm2278, %v2543, %v2539
        %v2545 = vlaneseq
        %v2546 = vshrl.u32 %v2545, 7
        %v2547 = vsub.s32 %v2280, %v2546
        %v2548 = vrot.slane %v2035, %v2547
        %v2549 = vsel %vm2285, %v2548, %v2544
        %v2550 = vlaneseq
        %v2551 = vshrl.u32 %v2550, 7
        %v2552 = vsub.s32 %v2287, %v2551
        %v2553 = vrot.slane %v2038, %v2552
        %v2554 = vsel %vm2292, %v2553, %v2549
        %v2555 = vlaneseq
        %v2556 = vshrl.u32 %v2555, 7
        %v2557 = vsub.s32 %v2294, %v2556
        %v2558 = vrot.slane %v2041, %v2557
        %v2559 = vsel %vm2299, %v2558, %v2554
        %v2560 = vlaneseq
        %v2561 = vshrl.u32 %v2560, 7
        %v2562 = vsub.s32 %v2301, %v2561
        %v2563 = vrot.slane %v2044, %v2562
        %v2564 = vsel %vm2306, %v2563, %v2559
        %v2565 = vlaneseq
        %v2566 = vshrl.u32 %v2565, 7
        %v2567 = vsub.s32 %v2308, %v2566
        %v2568 = vrot.slane %v2047, %v2567
        %v2569 = vsel %vm2313, %v2568, %v2564
        %v2570 = vlaneseq
        %v2571 = vshrl.u32 %v2570, 7
        %v2572 = vsub.s32 %v2315, %v2571
        %v2573 = vrot.slane %v2050, %v2572
        %v2574 = vsel %vm2320, %v2573, %v2569
        %v2575 = vlaneseq
        %v2576 = vshrl.u32 %v2575, 7
        %v2577 = vsub.s32 %v2322, %v2576
        %v2578 = vrot.slane %v2053, %v2577
        %v2579 = vsel %vm2327, %v2578, %v2574
        %v2580 = vlaneseq
        %v2581 = vshrl.u32 %v2580, 7
        %v2582 = vsub.s32 %v2329, %v2581
        %v2583 = vrot.slane %v2056, %v2582
        %v2584 = vsel %vm2334, %v2583, %v2579
        %v2585 = vlaneseq
        %v2586 = vshrl.u32 %v2585, 7
        %v2587 = vsub.s32 %v2336, %v2586
        %v2588 = vrot.slane %v2059, %v2587
        %v2589 = vsel %vm2341, %v2588, %v2584
        %v2590 = vlaneseq
        %v2591 = vshrl.u32 %v2590, 7
        %v2592 = vsub.s32 %v2343, %v2591
        %v2593 = vrot.slane %v2062, %v2592
        %v2594 = vsel %vm2348, %v2593, %v2589
        %v2595 = vlaneseq
        %v2596 = vshrl.u32 %v2595, 7
        %v2597 = vsub.s32 %v2350, %v2596
        %v2598 = vrot.slane %v2065, %v2597
        %v2599 = vsel %vm2355, %v2598, %v2594
        %v2600 = vlaneseq
        %v2601 = vshrl.u32 %v2600, 7
        %v2602 = vsub.s32 %v2357, %v2601
        %v2603 = vrot.slane %v2068, %v2602
        %v2604 = vsel %vm2362, %v2603, %v2599
        %v2605 = vlaneseq
        %v2606 = vshrl.u32 %v2605, 7
        %v2607 = vsub.s32 %v2364, %v2606
        %v2608 = vrot.slane %v2071, %v2607
        %v2609 = vsel %vm2369, %v2608, %v2604
        %v2610 = vlaneseq
        %v2611 = vshrl.u32 %v2610, 7
        %v2612 = vsub.s32 %v2371, %v2611
        %v2613 = vrot.slane %v2074, %v2612
        %v2614 = vsel %vm2376, %v2613, %v2609
        %v2615 = vlaneseq
        %v2616 = vshrl.u32 %v2615, 7
        %v2617 = vsub.s32 %v2268, %v2616
        %v2618 = vrot.slane %v2077, %v2617
        %v2619 = vlaneseq
        %v2620 = vshrl.u32 %v2619, 7
        %v2621 = vsub.s32 %v2273, %v2620
        %v2622 = vrot.slane %v2080, %v2621
        %v2623 = vsel %vm2278, %v2622, %v2618
        %v2624 = vlaneseq
        %v2625 = vshrl.u32 %v2624, 7
        %v2626 = vsub.s32 %v2280, %v2625
        %v2627 = vrot.slane %v2083, %v2626
        %v2628 = vsel %vm2285, %v2627, %v2623
        %v2629 = vlaneseq
        %v2630 = vshrl.u32 %v2629, 7
        %v2631 = vsub.s32 %v2287, %v2630
        %v2632 = vrot.slane %v2086, %v2631
        %v2633 = vsel %vm2292, %v2632, %v2628
        %v2634 = vlaneseq
        %v2635 = vshrl.u32 %v2634, 7
        %v2636 = vsub.s32 %v2294, %v2635
        %v2637 = vrot.slane %v2089, %v2636
        %v2638 = vsel %vm2299, %v2637, %v2633
        %v2639 = vlaneseq
        %v2640 = vshrl.u32 %v2639, 7
        %v2641 = vsub.s32 %v2301, %v2640
        %v2642 = vrot.slane %v2092, %v2641
        %v2643 = vsel %vm2306, %v2642, %v2638
        %v2644 = vlaneseq
        %v2645 = vshrl.u32 %v2644, 7
        %v2646 = vsub.s32 %v2308, %v2645
        %v2647 = vrot.slane %v2095, %v2646
        %v2648 = vsel %vm2313, %v2647, %v2643
        %v2649 = vlaneseq
        %v2650 = vshrl.u32 %v2649, 7
        %v2651 = vsub.s32 %v2315, %v2650
        %v2652 = vrot.slane %v2098, %v2651
        %v2653 = vsel %vm2320, %v2652, %v2648
        %v2654 = vlaneseq
        %v2655 = vshrl.u32 %v2654, 7
        %v2656 = vsub.s32 %v2322, %v2655
        %v2657 = vrot.slane %v2101, %v2656
        %v2658 = vsel %vm2327, %v2657, %v2653
        %v2659 = vlaneseq
        %v2660 = vshrl.u32 %v2659, 7
        %v2661 = vsub.s32 %v2329, %v2660
        %v2662 = vrot.slane %v2104, %v2661
        %v2663 = vsel %vm2334, %v2662, %v2658
        %v2664 = vlaneseq
        %v2665 = vshrl.u32 %v2664, 7
        %v2666 = vsub.s32 %v2336, %v2665
        %v2667 = vrot.slane %v2107, %v2666
        %v2668 = vsel %vm2341, %v2667, %v2663
        %v2669 = vlaneseq
        %v2670 = vshrl.u32 %v2669, 7
        %v2671 = vsub.s32 %v2343, %v2670
        %v2672 = vrot.slane %v2110, %v2671
        %v2673 = vsel %vm2348, %v2672, %v2668
        %v2674 = vlaneseq
        %v2675 = vshrl.u32 %v2674, 7
        %v2676 = vsub.s32 %v2350, %v2675
        %v2677 = vrot.slane %v2113, %v2676
        %v2678 = vsel %vm2355, %v2677, %v2673
        %v2679 = vlaneseq
        %v2680 = vshrl.u32 %v2679, 7
        %v2681 = vsub.s32 %v2357, %v2680
        %v2682 = vrot.slane %v2116, %v2681
        %v2683 = vsel %vm2362, %v2682, %v2678
        %v2684 = vlaneseq
        %v2685 = vshrl.u32 %v2684, 7
        %v2686 = vsub.s32 %v2364, %v2685
        %v2687 = vrot.slane %v2119, %v2686
        %v2688 = vsel %vm2369, %v2687, %v2683
        %v2689 = vlaneseq
        %v2690 = vshrl.u32 %v2689, 7
        %v2691 = vsub.s32 %v2371, %v2690
        %v2692 = vrot.slane %v2122, %v2691
        %v2693 = vsel %vm2376, %v2692, %v2688
        %v2694 = vlaneseq
        %v2695 = vshrl.u32 %v2694, 7
        %v2696 = vsub.s32 %v2268, %v2695
        %v2697 = vrot.slane %v2125, %v2696
        %v2698 = vlaneseq
        %v2699 = vshrl.u32 %v2698, 7
        %v2700 = vsub.s32 %v2273, %v2699
        %v2701 = vrot.slane %v2128, %v2700
        %v2702 = vsel %vm2278, %v2701, %v2697
        %v2703 = vlaneseq
        %v2704 = vshrl.u32 %v2703, 7
        %v2705 = vsub.s32 %v2280, %v2704
        %v2706 = vrot.slane %v2131, %v2705
        %v2707 = vsel %vm2285, %v2706, %v2702
        %v2708 = vlaneseq
        %v2709 = vshrl.u32 %v2708, 7
        %v2710 = vsub.s32 %v2287, %v2709
        %v2711 = vrot.slane %v2134, %v2710
        %v2712 = vsel %vm2292, %v2711, %v2707
        %v2713 = vlaneseq
        %v2714 = vshrl.u32 %v2713, 7
        %v2715 = vsub.s32 %v2294, %v2714
        %v2716 = vrot.slane %v2137, %v2715
        %v2717 = vsel %vm2299, %v2716, %v2712
        %v2718 = vlaneseq
        %v2719 = vshrl.u32 %v2718, 7
        %v2720 = vsub.s32 %v2301, %v2719
        %v2721 = vrot.slane %v2140, %v2720
        %v2722 = vsel %vm2306, %v2721, %v2717
        %v2723 = vlaneseq
        %v2724 = vshrl.u32 %v2723, 7
        %v2725 = vsub.s32 %v2308, %v2724
        %v2726 = vrot.slane %v2143, %v2725
        %v2727 = vsel %vm2313, %v2726, %v2722
        %v2728 = vlaneseq
        %v2729 = vshrl.u32 %v2728, 7
        %v2730 = vsub.s32 %v2315, %v2729
        %v2731 = vrot.slane %v2146, %v2730
        %v2732 = vsel %vm2320, %v2731, %v2727
        %v2733 = vlaneseq
        %v2734 = vshrl.u32 %v2733, 7
        %v2735 = vsub.s32 %v2322, %v2734
        %v2736 = vrot.slane %v2149, %v2735
        %v2737 = vsel %vm2327, %v2736, %v2732
        %v2738 = vlaneseq
        %v2739 = vshrl.u32 %v2738, 7
        %v2740 = vsub.s32 %v2329, %v2739
        %v2741 = vrot.slane %v2152, %v2740
        %v2742 = vsel %vm2334, %v2741, %v2737
        %v2743 = vlaneseq
        %v2744 = vshrl.u32 %v2743, 7
        %v2745 = vsub.s32 %v2336, %v2744
        %v2746 = vrot.slane %v2155, %v2745
        %v2747 = vsel %vm2341, %v2746, %v2742
        %v2748 = vlaneseq
        %v2749 = vshrl.u32 %v2748, 7
        %v2750 = vsub.s32 %v2343, %v2749
        %v2751 = vrot.slane %v2158, %v2750
        %v2752 = vsel %vm2348, %v2751, %v2747
        %v2753 = vlaneseq
        %v2754 = vshrl.u32 %v2753, 7
        %v2755 = vsub.s32 %v2350, %v2754
        %v2756 = vrot.slane %v2161, %v2755
        %v2757 = vsel %vm2355, %v2756, %v2752
        %v2758 = vlaneseq
        %v2759 = vshrl.u32 %v2758, 7
        %v2760 = vsub.s32 %v2357, %v2759
        %v2761 = vrot.slane %v2164, %v2760
        %v2762 = vsel %vm2362, %v2761, %v2757
        %v2763 = vlaneseq
        %v2764 = vshrl.u32 %v2763, 7
        %v2765 = vsub.s32 %v2364, %v2764
        %v2766 = vrot.slane %v2167, %v2765
        %v2767 = vsel %vm2369, %v2766, %v2762
        %v2768 = vlaneseq
        %v2769 = vshrl.u32 %v2768, 7
        %v2770 = vsub.s32 %v2371, %v2769
        %v2771 = vrot.slane %v2170, %v2770
        %v2772 = vsel %vm2376, %v2771, %v2767
        %v2773 = vlaneseq
        %v2774 = vshrl.u32 %v2773, 7
        %v2775 = vsub.s32 %v2268, %v2774
        %v2776 = vrot.slane %v2173, %v2775
        %v2777 = vlaneseq
        %v2778 = vshrl.u32 %v2777, 7
        %v2779 = vsub.s32 %v2273, %v2778
        %v2780 = vrot.slane %v2176, %v2779
        %v2781 = vsel %vm2278, %v2780, %v2776
        %v2782 = vlaneseq
        %v2783 = vshrl.u32 %v2782, 7
        %v2784 = vsub.s32 %v2280, %v2783
        %v2785 = vrot.slane %v2179, %v2784
        %v2786 = vsel %vm2285, %v2785, %v2781
        %v2787 = vlaneseq
        %v2788 = vshrl.u32 %v2787, 7
        %v2789 = vsub.s32 %v2287, %v2788
        %v2790 = vrot.slane %v2182, %v2789
        %v2791 = vsel %vm2292, %v2790, %v2786
        %v2792 = vlaneseq
        %v2793 = vshrl.u32 %v2792, 7
        %v2794 = vsub.s32 %v2294, %v2793
        %v2795 = vrot.slane %v2185, %v2794
        %v2796 = vsel %vm2299, %v2795, %v2791
        %v2797 = vlaneseq
        %v2798 = vshrl.u32 %v2797, 7
        %v2799 = vsub.s32 %v2301, %v2798
        %v2800 = vrot.slane %v2188, %v2799
        %v2801 = vsel %vm2306, %v2800, %v2796
        %v2802 = vlaneseq
        %v2803 = vshrl.u32 %v2802, 7
        %v2804 = vsub.s32 %v2308, %v2803
        %v2805 = vrot.slane %v2191, %v2804
        %v2806 = vsel %vm2313, %v2805, %v2801
        %v2807 = vlaneseq
        %v2808 = vshrl.u32 %v2807, 7
        %v2809 = vsub.s32 %v2315, %v2808
        %v2810 = vrot.slane %v2194, %v2809
        %v2811 = vsel %vm2320, %v2810, %v2806
        %v2812 = vlaneseq
        %v2813 = vshrl.u32 %v2812, 7
        %v2814 = vsub.s32 %v2322, %v2813
        %v2815 = vrot.slane %v2197, %v2814
        %v2816 = vsel %vm2327, %v2815, %v2811
        %v2817 = vlaneseq
        %v2818 = vshrl.u32 %v2817, 7
        %v2819 = vsub.s32 %v2329, %v2818
        %v2820 = vrot.slane %v2200, %v2819
        %v2821 = vsel %vm2334, %v2820, %v2816
        %v2822 = vlaneseq
        %v2823 = vshrl.u32 %v2822, 7
        %v2824 = vsub.s32 %v2336, %v2823
        %v2825 = vrot.slane %v2203, %v2824
        %v2826 = vsel %vm2341, %v2825, %v2821
        %v2827 = vlaneseq
        %v2828 = vshrl.u32 %v2827, 7
        %v2829 = vsub.s32 %v2343, %v2828
        %v2830 = vrot.slane %v2206, %v2829
        %v2831 = vsel %vm2348, %v2830, %v2826
        %v2832 = vlaneseq
        %v2833 = vshrl.u32 %v2832, 7
        %v2834 = vsub.s32 %v2350, %v2833
        %v2835 = vrot.slane %v2209, %v2834
        %v2836 = vsel %vm2355, %v2835, %v2831
        %v2837 = vlaneseq
        %v2838 = vshrl.u32 %v2837, 7
        %v2839 = vsub.s32 %v2357, %v2838
        %v2840 = vrot.slane %v2212, %v2839
        %v2841 = vsel %vm2362, %v2840, %v2836
        %v2842 = vlaneseq
        %v2843 = vshrl.u32 %v2842, 7
        %v2844 = vsub.s32 %v2364, %v2843
        %v2845 = vrot.slane %v2215, %v2844
        %v2846 = vsel %vm2369, %v2845, %v2841
        %v2847 = vlaneseq
        %v2848 = vshrl.u32 %v2847, 7
        %v2849 = vsub.s32 %v2371, %v2848
        %v2850 = vrot.slane %v2218, %v2849
        %v2851 = vsel %vm2376, %v2850, %v2846
        %v2852 = vlaneseq
        %v2853 = vshrl.u32 %v2852, 7
        %v2854 = vsub.s32 %v2268, %v2853
        %v2855 = vrot.slane %v2221, %v2854
        %v2856 = vlaneseq
        %v2857 = vshrl.u32 %v2856, 7
        %v2858 = vsub.s32 %v2273, %v2857
        %v2859 = vrot.slane %v2224, %v2858
        %v2860 = vsel %vm2278, %v2859, %v2855
        %v2861 = vlaneseq
        %v2862 = vshrl.u32 %v2861, 7
        %v2863 = vsub.s32 %v2280, %v2862
        %v2864 = vrot.slane %v2227, %v2863
        %v2865 = vsel %vm2285, %v2864, %v2860
        %v2866 = vlaneseq
        %v2867 = vshrl.u32 %v2866, 7
        %v2868 = vsub.s32 %v2287, %v2867
        %v2869 = vrot.slane %v2230, %v2868
        %v2870 = vsel %vm2292, %v2869, %v2865
        %v2871 = vlaneseq
        %v2872 = vshrl.u32 %v2871, 7
        %v2873 = vsub.s32 %v2294, %v2872
        %v2874 = vrot.slane %v2233, %v2873
        %v2875 = vsel %vm2299, %v2874, %v2870
        %v2876 = vlaneseq
        %v2877 = vshrl.u32 %v2876, 7
        %v2878 = vsub.s32 %v2301, %v2877
        %v2879 = vrot.slane %v2236, %v2878
        %v2880 = vsel %vm2306, %v2879, %v2875
        %v2881 = vlaneseq
        %v2882 = vshrl.u32 %v2881, 7
        %v2883 = vsub.s32 %v2308, %v2882
        %v2884 = vrot.slane %v2239, %v2883
        %v2885 = vsel %vm2313, %v2884, %v2880
        %v2886 = vlaneseq
        %v2887 = vshrl.u32 %v2886, 7
        %v2888 = vsub.s32 %v2315, %v2887
        %v2889 = vrot.slane %v2242, %v2888
        %v2890 = vsel %vm2320, %v2889, %v2885
        %v2891 = vlaneseq
        %v2892 = vshrl.u32 %v2891, 7
        %v2893 = vsub.s32 %v2322, %v2892
        %v2894 = vrot.slane %v2245, %v2893
        %v2895 = vsel %vm2327, %v2894, %v2890
        %v2896 = vlaneseq
        %v2897 = vshrl.u32 %v2896, 7
        %v2898 = vsub.s32 %v2329, %v2897
        %v2899 = vrot.slane %v2248, %v2898
        %v2900 = vsel %vm2334, %v2899, %v2895
        %v2901 = vlaneseq
        %v2902 = vshrl.u32 %v2901, 7
        %v2903 = vsub.s32 %v2336, %v2902
        %v2904 = vrot.slane %v2251, %v2903
        %v2905 = vsel %vm2341, %v2904, %v2900
        %v2906 = vlaneseq
        %v2907 = vshrl.u32 %v2906, 7
        %v2908 = vsub.s32 %v2343, %v2907
        %v2909 = vrot.slane %v2254, %v2908
        %v2910 = vsel %vm2348, %v2909, %v2905
        %v2911 = vlaneseq
        %v2912 = vshrl.u32 %v2911, 7
        %v2913 = vsub.s32 %v2350, %v2912
        %v2914 = vrot.slane %v2257, %v2913
        %v2915 = vsel %vm2355, %v2914, %v2910
        %v2916 = vlaneseq
        %v2917 = vshrl.u32 %v2916, 7
        %v2918 = vsub.s32 %v2357, %v2917
        %v2919 = vrot.slane %v2260, %v2918
        %v2920 = vsel %vm2362, %v2919, %v2915
        %v2921 = vlaneseq
        %v2922 = vshrl.u32 %v2921, 7
        %v2923 = vsub.s32 %v2364, %v2922
        %v2924 = vrot.slane %v2263, %v2923
        %v2925 = vsel %vm2369, %v2924, %v2920
        %v2926 = vlaneseq
        %v2927 = vshrl.u32 %v2926, 7
        %v2928 = vsub.s32 %v2371, %v2927
        %v2929 = vrot.slane %v2266, %v2928
        %v2930 = vsel %vm2376, %v2929, %v2925
        %vm2931 = vcmask 1041409
        %v2932 = vsel %vm2931, %v2456, %v2377
        %vm2933 = vcmask 1042434
        %v2934 = vsel %vm2933, %v2535, %v2932
        %vm2935 = vcmask 1043459
        %v2936 = vsel %vm2935, %v2614, %v2934
        %vm2937 = vcmask 1044484
        %v2938 = vsel %vm2937, %v2693, %v2936
        %vm2939 = vcmask 1045509
        %v2940 = vsel %vm2939, %v2772, %v2938
        %vm2941 = vcmask 1046534
        %v2942 = vsel %vm2941, %v2851, %v2940
        %vm2943 = vcmask 1047559
        %v2944 = vsel %vm2943, %v2930, %v2942
        %2946 = vmax.xlane.f32.xlu0 %v2944
        %v2947 = vpop.xlane.xlu0 %2946
        %v2949 = vlaneseq
        %v2950 = vshrl.u32 %v2949, 7
        %v2951 = vsub.s32 0, %v2950
        %v2952 = vrot.slane %v2947, %v2951
        %v2953 = vlaneseq
        %v2954 = vshrl.u32 %v2953, 7
        %v2955 = vsub.s32 1, %v2954
        %v2956 = vrot.slane %v2947, %v2955
        %v2957 = vlaneseq
        %v2958 = vshrl.u32 %v2957, 7
        %v2959 = vsub.s32 2, %v2958
        %v2960 = vrot.slane %v2947, %v2959
        %v2961 = vlaneseq
        %v2962 = vshrl.u32 %v2961, 7
        %v2963 = vsub.s32 3, %v2962
        %v2964 = vrot.slane %v2947, %v2963
        %v2965 = vlaneseq
        %v2966 = vshrl.u32 %v2965, 7
        %v2967 = vsub.s32 4, %v2966
        %v2968 = vrot.slane %v2947, %v2967
        %v2969 = vlaneseq
        %v2970 = vshrl.u32 %v2969, 7
        %v2971 = vsub.s32 5, %v2970
        %v2972 = vrot.slane %v2947, %v2971
        %v2973 = vlaneseq
        %v2974 = vshrl.u32 %v2973, 7
        %v2975 = vsub.s32 6, %v2974
        %v2976 = vrot.slane %v2947, %v2975
        %v2977 = vlaneseq
        %v2978 = vshrl.u32 %v2977, 7
        %v2979 = vsub.s32 7, %v2978
        %v2980 = vrot.slane %v2947, %v2979
        %v2989 = vsub.f32 %v1627, %v2952
        %v2990 = vsub.f32 %v1628, %v2952
        %v2991 = vsub.f32 %v1629, %v2952
        %v2992 = vsub.f32 %v1630, %v2952
        %v2993 = vsub.f32 %v1631, %v2952
        %v2994 = vsub.f32 %v1632, %v2952
        %v2995 = vsub.f32 %v1633, %v2952
        %v2996 = vsub.f32 %v1634, %v2952
        %v2997 = vsub.f32 %v1635, %v2952
        %v2998 = vsub.f32 %v1636, %v2952
        %v2999 = vsub.f32 %v1637, %v2952
        %v3000 = vsub.f32 %v1638, %v2952
        %v3001 = vsub.f32 %v1639, %v2952
        %v3002 = vsub.f32 %v1640, %v2952
        %v3003 = vsub.f32 %v1641, %v2952
        %v3004 = vsub.f32 %v1642, %v2952
        %v3005 = vsub.f32 %v1643, %v2956
        %v3006 = vsub.f32 %v1644, %v2956
        %v3007 = vsub.f32 %v1645, %v2956
        %v3008 = vsub.f32 %v1646, %v2956
        %v3009 = vsub.f32 %v1647, %v2956
        %v3010 = vsub.f32 %v1648, %v2956
        %v3011 = vsub.f32 %v1649, %v2956
        %v3012 = vsub.f32 %v1650, %v2956
        %v3013 = vsub.f32 %v1651, %v2956
        %v3014 = vsub.f32 %v1652, %v2956
        %v3015 = vsub.f32 %v1653, %v2956
        %v3016 = vsub.f32 %v1654, %v2956
        %v3017 = vsub.f32 %v1655, %v2956
        %v3018 = vsub.f32 %v1656, %v2956
        %v3019 = vsub.f32 %v1657, %v2956
        %v3020 = vsub.f32 %v1658, %v2956
        %v3021 = vsub.f32 %v1659, %v2960
        %v3022 = vsub.f32 %v1660, %v2960
        %v3023 = vsub.f32 %v1661, %v2960
        %v3024 = vsub.f32 %v1662, %v2960
        %v3025 = vsub.f32 %v1663, %v2960
        %v3026 = vsub.f32 %v1664, %v2960
        %v3027 = vsub.f32 %v1665, %v2960
        %v3028 = vsub.f32 %v1666, %v2960
        %v3029 = vsub.f32 %v1667, %v2960
        %v3030 = vsub.f32 %v1668, %v2960
        %v3031 = vsub.f32 %v1669, %v2960
        %v3032 = vsub.f32 %v1670, %v2960
        %v3033 = vsub.f32 %v1671, %v2960
        %v3034 = vsub.f32 %v1672, %v2960
        %v3035 = vsub.f32 %v1673, %v2960
        %v3036 = vsub.f32 %v1674, %v2960
        %v3037 = vsub.f32 %v1675, %v2964
        %v3038 = vsub.f32 %v1676, %v2964
        %v3039 = vsub.f32 %v1677, %v2964
        %v3040 = vsub.f32 %v1678, %v2964
        %v3041 = vsub.f32 %v1679, %v2964
        %v3042 = vsub.f32 %v1680, %v2964
        %v3043 = vsub.f32 %v1681, %v2964
        %v3044 = vsub.f32 %v1682, %v2964
        %v3045 = vsub.f32 %v1683, %v2964
        %v3046 = vsub.f32 %v1684, %v2964
        %v3047 = vsub.f32 %v1685, %v2964
        %v3048 = vsub.f32 %v1686, %v2964
        %v3049 = vsub.f32 %v1687, %v2964
        %v3050 = vsub.f32 %v1688, %v2964
        %v3051 = vsub.f32 %v1689, %v2964
        %v3052 = vsub.f32 %v1690, %v2964
        %v3053 = vsub.f32 %v1691, %v2968
        %v3054 = vsub.f32 %v1692, %v2968
        %v3055 = vsub.f32 %v1693, %v2968
        %v3056 = vsub.f32 %v1694, %v2968
        %v3057 = vsub.f32 %v1695, %v2968
        %v3058 = vsub.f32 %v1696, %v2968
        %v3059 = vsub.f32 %v1697, %v2968
        %v3060 = vsub.f32 %v1698, %v2968
        %v3061 = vsub.f32 %v1699, %v2968
        %v3062 = vsub.f32 %v1700, %v2968
        %v3063 = vsub.f32 %v1701, %v2968
        %v3064 = vsub.f32 %v1702, %v2968
        %v3065 = vsub.f32 %v1703, %v2968
        %v3066 = vsub.f32 %v1704, %v2968
        %v3067 = vsub.f32 %v1705, %v2968
        %v3068 = vsub.f32 %v1706, %v2968
        %v3069 = vsub.f32 %v1707, %v2972
        %v3070 = vsub.f32 %v1708, %v2972
        %v3071 = vsub.f32 %v1709, %v2972
        %v3072 = vsub.f32 %v1710, %v2972
        %v3073 = vsub.f32 %v1711, %v2972
        %v3074 = vsub.f32 %v1712, %v2972
        %v3075 = vsub.f32 %v1713, %v2972
        %v3076 = vsub.f32 %v1714, %v2972
        %v3077 = vsub.f32 %v1715, %v2972
        %v3078 = vsub.f32 %v1716, %v2972
        %v3079 = vsub.f32 %v1717, %v2972
        %v3080 = vsub.f32 %v1718, %v2972
        %v3081 = vsub.f32 %v1719, %v2972
        %v3082 = vsub.f32 %v1720, %v2972
        %v3083 = vsub.f32 %v1721, %v2972
        %v3084 = vsub.f32 %v1722, %v2972
        %v3085 = vsub.f32 %v1723, %v2976
        %v3086 = vsub.f32 %v1724, %v2976
        %v3087 = vsub.f32 %v1725, %v2976
        %v3088 = vsub.f32 %v1726, %v2976
        %v3089 = vsub.f32 %v1727, %v2976
        %v3090 = vsub.f32 %v1728, %v2976
        %v3091 = vsub.f32 %v1729, %v2976
        %v3092 = vsub.f32 %v1730, %v2976
        %v3093 = vsub.f32 %v1731, %v2976
        %v3094 = vsub.f32 %v1732, %v2976
        %v3095 = vsub.f32 %v1733, %v2976
        %v3096 = vsub.f32 %v1734, %v2976
        %v3097 = vsub.f32 %v1735, %v2976
        %v3098 = vsub.f32 %v1736, %v2976
        %v3099 = vsub.f32 %v1737, %v2976
        %v3100 = vsub.f32 %v1738, %v2976
        %v3101 = vsub.f32 %v1739, %v2980
        %v3102 = vsub.f32 %v1740, %v2980
        %v3103 = vsub.f32 %v1741, %v2980
        %v3104 = vsub.f32 %v1742, %v2980
        %v3105 = vsub.f32 %v1743, %v2980
        %v3106 = vsub.f32 %v1744, %v2980
        %v3107 = vsub.f32 %v1745, %v2980
        %v3108 = vsub.f32 %v1746, %v2980
        %v3109 = vsub.f32 %v1747, %v2980
        %v3110 = vsub.f32 %v1748, %v2980
        %v3111 = vsub.f32 %v1749, %v2980
        %v3112 = vsub.f32 %v1750, %v2980
        %v3113 = vsub.f32 %v1751, %v2980
        %v3114 = vsub.f32 %v1752, %v2980
        %v3115 = vsub.f32 %v1753, %v2980
        %v3116 = vsub.f32 %v1754, %v2980
        %v3117 = vmul.f32 %v2989, 1.442695
        %v3118 = vpow.pop %v3117
        %v3119 = vmul.f32 %v2990, 1.442695
        %v3120 = vpow.pop %v3119
        %v3121 = vmul.f32 %v2991, 1.442695
        %v3122 = vpow.pop %v3121
        %v3123 = vmul.f32 %v2992, 1.442695
        %v3124 = vpow.pop %v3123
        %v3125 = vmul.f32 %v2993, 1.442695
        %v3126 = vpow.pop %v3125
        %v3127 = vmul.f32 %v2994, 1.442695
        %v3128 = vpow.pop %v3127
        %v3129 = vmul.f32 %v2995, 1.442695
        %v3130 = vpow.pop %v3129
        %v3131 = vmul.f32 %v2996, 1.442695
        %v3132 = vpow.pop %v3131
        %v3133 = vmul.f32 %v2997, 1.442695
        %v3134 = vpow.pop %v3133
        %v3135 = vmul.f32 %v2998, 1.442695
        %v3136 = vpow.pop %v3135
        %v3137 = vmul.f32 %v2999, 1.442695
        %v3138 = vpow.pop %v3137
        %v3139 = vmul.f32 %v3000, 1.442695
        %v3140 = vpow.pop %v3139
        %v3141 = vmul.f32 %v3001, 1.442695
        %v3142 = vpow.pop %v3141
        %v3143 = vmul.f32 %v3002, 1.442695
        %v3144 = vpow.pop %v3143
        %v3145 = vmul.f32 %v3003, 1.442695
        %v3146 = vpow.pop %v3145
        %v3147 = vmul.f32 %v3004, 1.442695
        %v3148 = vpow.pop %v3147
        %v3149 = vmul.f32 %v3005, 1.442695
        %v3150 = vpow.pop %v3149
        %v3151 = vmul.f32 %v3006, 1.442695
        %v3152 = vpow.pop %v3151
        %v3153 = vmul.f32 %v3007, 1.442695
        %v3154 = vpow.pop %v3153
        %v3155 = vmul.f32 %v3008, 1.442695
        %v3156 = vpow.pop %v3155
        %v3157 = vmul.f32 %v3009, 1.442695
        %v3158 = vpow.pop %v3157
        %v3159 = vmul.f32 %v3010, 1.442695
        %v3160 = vpow.pop %v3159
        %v3161 = vmul.f32 %v3011, 1.442695
        %v3162 = vpow.pop %v3161
        %v3163 = vmul.f32 %v3012, 1.442695
        %v3164 = vpow.pop %v3163
        %v3165 = vmul.f32 %v3013, 1.442695
        %v3166 = vpow.pop %v3165
        %v3167 = vmul.f32 %v3014, 1.442695
        %v3168 = vpow.pop %v3167
        %v3169 = vmul.f32 %v3015, 1.442695
        %v3170 = vpow.pop %v3169
        %v3171 = vmul.f32 %v3016, 1.442695
        %v3172 = vpow.pop %v3171
        %v3173 = vmul.f32 %v3017, 1.442695
        %v3174 = vpow.pop %v3173
        %v3175 = vmul.f32 %v3018, 1.442695
        %v3176 = vpow.pop %v3175
        %v3177 = vmul.f32 %v3019, 1.442695
        %v3178 = vpow.pop %v3177
        %v3179 = vmul.f32 %v3020, 1.442695
        %v3180 = vpow.pop %v3179
        %v3181 = vmul.f32 %v3021, 1.442695
        %v3182 = vpow.pop %v3181
        %v3183 = vmul.f32 %v3022, 1.442695
        %v3184 = vpow.pop %v3183
        %v3185 = vmul.f32 %v3023, 1.442695
        %v3186 = vpow.pop %v3185
        %v3187 = vmul.f32 %v3024, 1.442695
        %v3188 = vpow.pop %v3187
        %v3189 = vmul.f32 %v3025, 1.442695
        %v3190 = vpow.pop %v3189
        %v3191 = vmul.f32 %v3026, 1.442695
        %v3192 = vpow.pop %v3191
        %v3193 = vmul.f32 %v3027, 1.442695
        %v3194 = vpow.pop %v3193
        %v3195 = vmul.f32 %v3028, 1.442695
        %v3196 = vpow.pop %v3195
        %v3197 = vmul.f32 %v3029, 1.442695
        %v3198 = vpow.pop %v3197
        %v3199 = vmul.f32 %v3030, 1.442695
        %v3200 = vpow.pop %v3199
        %v3201 = vmul.f32 %v3031, 1.442695
        %v3202 = vpow.pop %v3201
        %v3203 = vmul.f32 %v3032, 1.442695
        %v3204 = vpow.pop %v3203
        %v3205 = vmul.f32 %v3033, 1.442695
        %v3206 = vpow.pop %v3205
        %v3207 = vmul.f32 %v3034, 1.442695
        %v3208 = vpow.pop %v3207
        %v3209 = vmul.f32 %v3035, 1.442695
        %v3210 = vpow.pop %v3209
        %v3211 = vmul.f32 %v3036, 1.442695
        %v3212 = vpow.pop %v3211
        %v3213 = vmul.f32 %v3037, 1.442695
        %v3214 = vpow.pop %v3213
        %v3215 = vmul.f32 %v3038, 1.442695
        %v3216 = vpow.pop %v3215
        %v3217 = vmul.f32 %v3039, 1.442695
        %v3218 = vpow.pop %v3217
        %v3219 = vmul.f32 %v3040, 1.442695
        %v3220 = vpow.pop %v3219
        %v3221 = vmul.f32 %v3041, 1.442695
        %v3222 = vpow.pop %v3221
        %v3223 = vmul.f32 %v3042, 1.442695
        %v3224 = vpow.pop %v3223
        %v3225 = vmul.f32 %v3043, 1.442695
        %v3226 = vpow.pop %v3225
        %v3227 = vmul.f32 %v3044, 1.442695
        %v3228 = vpow.pop %v3227
        %v3229 = vmul.f32 %v3045, 1.442695
        %v3230 = vpow.pop %v3229
        %v3231 = vmul.f32 %v3046, 1.442695
        %v3232 = vpow.pop %v3231
        %v3233 = vmul.f32 %v3047, 1.442695
        %v3234 = vpow.pop %v3233
        %v3235 = vmul.f32 %v3048, 1.442695
        %v3236 = vpow.pop %v3235
        %v3237 = vmul.f32 %v3049, 1.442695
        %v3238 = vpow.pop %v3237
        %v3239 = vmul.f32 %v3050, 1.442695
        %v3240 = vpow.pop %v3239
        %v3241 = vmul.f32 %v3051, 1.442695
        %v3242 = vpow.pop %v3241
        %v3243 = vmul.f32 %v3052, 1.442695
        %v3244 = vpow.pop %v3243
        %v3245 = vmul.f32 %v3053, 1.442695
        %v3246 = vpow.pop %v3245
        %v3247 = vmul.f32 %v3054, 1.442695
        %v3248 = vpow.pop %v3247
        %v3249 = vmul.f32 %v3055, 1.442695
        %v3250 = vpow.pop %v3249
        %v3251 = vmul.f32 %v3056, 1.442695
        %v3252 = vpow.pop %v3251
        %v3253 = vmul.f32 %v3057, 1.442695
        %v3254 = vpow.pop %v3253
        %v3255 = vmul.f32 %v3058, 1.442695
        %v3256 = vpow.pop %v3255
        %v3257 = vmul.f32 %v3059, 1.442695
        %v3258 = vpow.pop %v3257
        %v3259 = vmul.f32 %v3060, 1.442695
        %v3260 = vpow.pop %v3259
        %v3261 = vmul.f32 %v3061, 1.442695
        %v3262 = vpow.pop %v3261
        %v3263 = vmul.f32 %v3062, 1.442695
        %v3264 = vpow.pop %v3263
        %v3265 = vmul.f32 %v3063, 1.442695
        %v3266 = vpow.pop %v3265
        %v3267 = vmul.f32 %v3064, 1.442695
        %v3268 = vpow.pop %v3267
        %v3269 = vmul.f32 %v3065, 1.442695
        %v3270 = vpow.pop %v3269
        %v3271 = vmul.f32 %v3066, 1.442695
        %v3272 = vpow.pop %v3271
        %v3273 = vmul.f32 %v3067, 1.442695
        %v3274 = vpow.pop %v3273
        %v3275 = vmul.f32 %v3068, 1.442695
        %v3276 = vpow.pop %v3275
        %v3277 = vmul.f32 %v3069, 1.442695
        %v3278 = vpow.pop %v3277
        %v3279 = vmul.f32 %v3070, 1.442695
        %v3280 = vpow.pop %v3279
        %v3281 = vmul.f32 %v3071, 1.442695
        %v3282 = vpow.pop %v3281
        %v3283 = vmul.f32 %v3072, 1.442695
        %v3284 = vpow.pop %v3283
        %v3285 = vmul.f32 %v3073, 1.442695
        %v3286 = vpow.pop %v3285
        %v3287 = vmul.f32 %v3074, 1.442695
        %v3288 = vpow.pop %v3287
        %v3289 = vmul.f32 %v3075, 1.442695
        %v3290 = vpow.pop %v3289
        %v3291 = vmul.f32 %v3076, 1.442695
        %v3292 = vpow.pop %v3291
        %v3293 = vmul.f32 %v3077, 1.442695
        %v3294 = vpow.pop %v3293
        %v3295 = vmul.f32 %v3078, 1.442695
        %v3296 = vpow.pop %v3295
        %v3297 = vmul.f32 %v3079, 1.442695
        %v3298 = vpow.pop %v3297
        %v3299 = vmul.f32 %v3080, 1.442695
        %v3300 = vpow.pop %v3299
        %v3301 = vmul.f32 %v3081, 1.442695
        %v3302 = vpow.pop %v3301
        %v3303 = vmul.f32 %v3082, 1.442695
        %v3304 = vpow.pop %v3303
        %v3305 = vmul.f32 %v3083, 1.442695
        %v3306 = vpow.pop %v3305
        %v3307 = vmul.f32 %v3084, 1.442695
        %v3308 = vpow.pop %v3307
        %v3309 = vmul.f32 %v3085, 1.442695
        %v3310 = vpow.pop %v3309
        %v3311 = vmul.f32 %v3086, 1.442695
        %v3312 = vpow.pop %v3311
        %v3313 = vmul.f32 %v3087, 1.442695
        %v3314 = vpow.pop %v3313
        %v3315 = vmul.f32 %v3088, 1.442695
        %v3316 = vpow.pop %v3315
        %v3317 = vmul.f32 %v3089, 1.442695
        %v3318 = vpow.pop %v3317
        %v3319 = vmul.f32 %v3090, 1.442695
        %v3320 = vpow.pop %v3319
        %v3321 = vmul.f32 %v3091, 1.442695
        %v3322 = vpow.pop %v3321
        %v3323 = vmul.f32 %v3092, 1.442695
        %v3324 = vpow.pop %v3323
        %v3325 = vmul.f32 %v3093, 1.442695
        %v3326 = vpow.pop %v3325
        %v3327 = vmul.f32 %v3094, 1.442695
        %v3328 = vpow.pop %v3327
        %v3329 = vmul.f32 %v3095, 1.442695
        %v3330 = vpow.pop %v3329
        %v3331 = vmul.f32 %v3096, 1.442695
        %v3332 = vpow.pop %v3331
        %v3333 = vmul.f32 %v3097, 1.442695
        %v3334 = vpow.pop %v3333
        %v3335 = vmul.f32 %v3098, 1.442695
        %v3336 = vpow.pop %v3335
        %v3337 = vmul.f32 %v3099, 1.442695
        %v3338 = vpow.pop %v3337
        %v3339 = vmul.f32 %v3100, 1.442695
        %v3340 = vpow.pop %v3339
        %v3341 = vmul.f32 %v3101, 1.442695
        %v3342 = vpow.pop %v3341
        %v3343 = vmul.f32 %v3102, 1.442695
        %v3344 = vpow.pop %v3343
        %v3345 = vmul.f32 %v3103, 1.442695
        %v3346 = vpow.pop %v3345
        %v3347 = vmul.f32 %v3104, 1.442695
        %v3348 = vpow.pop %v3347
        %v3349 = vmul.f32 %v3105, 1.442695
        %v3350 = vpow.pop %v3349
        %v3351 = vmul.f32 %v3106, 1.442695
        %v3352 = vpow.pop %v3351
        %v3353 = vmul.f32 %v3107, 1.442695
        %v3354 = vpow.pop %v3353
        %v3355 = vmul.f32 %v3108, 1.442695
        %v3356 = vpow.pop %v3355
        %v3357 = vmul.f32 %v3109, 1.442695
        %v3358 = vpow.pop %v3357
        %v3359 = vmul.f32 %v3110, 1.442695
        %v3360 = vpow.pop %v3359
        %v3361 = vmul.f32 %v3111, 1.442695
        %v3362 = vpow.pop %v3361
        %v3363 = vmul.f32 %v3112, 1.442695
        %v3364 = vpow.pop %v3363
        %v3365 = vmul.f32 %v3113, 1.442695
        %v3366 = vpow.pop %v3365
        %v3367 = vmul.f32 %v3114, 1.442695
        %v3368 = vpow.pop %v3367
        %v3369 = vmul.f32 %v3115, 1.442695
        %v3370 = vpow.pop %v3369
        %v3371 = vmul.f32 %v3116, 1.442695
        %v3372 = vpow.pop %v3371
        %3501 = vset.pattern.permute.xlu0 0
        %3502 = vperm.xlu0 %3501, %v3118
        %v3503 = vpop.permute.xlu0 %3502
        %3504 = vset.pattern.permute.xlu0 0
        %3505 = vperm.xlu0 %3504, %v3120
        %v3506 = vpop.permute.xlu0 %3505
        %3507 = vset.pattern.permute.xlu0 0
        %3508 = vperm.xlu0 %3507, %v3122
        %v3509 = vpop.permute.xlu0 %3508
        %3510 = vset.pattern.permute.xlu0 0
        %3511 = vperm.xlu0 %3510, %v3124
        %v3512 = vpop.permute.xlu0 %3511
        %3513 = vset.pattern.permute.xlu0 0
        %3514 = vperm.xlu0 %3513, %v3126
        %v3515 = vpop.permute.xlu0 %3514
        %3516 = vset.pattern.permute.xlu0 0
        %3517 = vperm.xlu0 %3516, %v3128
        %v3518 = vpop.permute.xlu0 %3517
        %3519 = vset.pattern.permute.xlu0 0
        %3520 = vperm.xlu0 %3519, %v3130
        %v3521 = vpop.permute.xlu0 %3520
        %3522 = vset.pattern.permute.xlu0 0
        %3523 = vperm.xlu0 %3522, %v3132
        %v3524 = vpop.permute.xlu0 %3523
        %3525 = vset.pattern.permute.xlu0 0
        %3526 = vperm.xlu0 %3525, %v3134
        %v3527 = vpop.permute.xlu0 %3526
        %3528 = vset.pattern.permute.xlu0 0
        %3529 = vperm.xlu0 %3528, %v3136
        %v3530 = vpop.permute.xlu0 %3529
        %3531 = vset.pattern.permute.xlu0 0
        %3532 = vperm.xlu0 %3531, %v3138
        %v3533 = vpop.permute.xlu0 %3532
        %3534 = vset.pattern.permute.xlu0 0
        %3535 = vperm.xlu0 %3534, %v3140
        %v3536 = vpop.permute.xlu0 %3535
        %3537 = vset.pattern.permute.xlu0 0
        %3538 = vperm.xlu0 %3537, %v3142
        %v3539 = vpop.permute.xlu0 %3538
        %3540 = vset.pattern.permute.xlu0 0
        %3541 = vperm.xlu0 %3540, %v3144
        %v3542 = vpop.permute.xlu0 %3541
        %3543 = vset.pattern.permute.xlu0 0
        %3544 = vperm.xlu0 %3543, %v3146
        %v3545 = vpop.permute.xlu0 %3544
        %3546 = vset.pattern.permute.xlu0 0
        %3547 = vperm.xlu0 %3546, %v3148
        %v3548 = vpop.permute.xlu0 %3547
        %3549 = vset.pattern.permute.xlu0 0
        %3550 = vperm.xlu0 %3549, %v3150
        %v3551 = vpop.permute.xlu0 %3550
        %3552 = vset.pattern.permute.xlu0 0
        %3553 = vperm.xlu0 %3552, %v3152
        %v3554 = vpop.permute.xlu0 %3553
        %3555 = vset.pattern.permute.xlu0 0
        %3556 = vperm.xlu0 %3555, %v3154
        %v3557 = vpop.permute.xlu0 %3556
        %3558 = vset.pattern.permute.xlu0 0
        %3559 = vperm.xlu0 %3558, %v3156
        %v3560 = vpop.permute.xlu0 %3559
        %3561 = vset.pattern.permute.xlu0 0
        %3562 = vperm.xlu0 %3561, %v3158
        %v3563 = vpop.permute.xlu0 %3562
        %3564 = vset.pattern.permute.xlu0 0
        %3565 = vperm.xlu0 %3564, %v3160
        %v3566 = vpop.permute.xlu0 %3565
        %3567 = vset.pattern.permute.xlu0 0
        %3568 = vperm.xlu0 %3567, %v3162
        %v3569 = vpop.permute.xlu0 %3568
        %3570 = vset.pattern.permute.xlu0 0
        %3571 = vperm.xlu0 %3570, %v3164
        %v3572 = vpop.permute.xlu0 %3571
        %3573 = vset.pattern.permute.xlu0 0
        %3574 = vperm.xlu0 %3573, %v3166
        %v3575 = vpop.permute.xlu0 %3574
        %3576 = vset.pattern.permute.xlu0 0
        %3577 = vperm.xlu0 %3576, %v3168
        %v3578 = vpop.permute.xlu0 %3577
        %3579 = vset.pattern.permute.xlu0 0
        %3580 = vperm.xlu0 %3579, %v3170
        %v3581 = vpop.permute.xlu0 %3580
        %3582 = vset.pattern.permute.xlu0 0
        %3583 = vperm.xlu0 %3582, %v3172
        %v3584 = vpop.permute.xlu0 %3583
        %3585 = vset.pattern.permute.xlu0 0
        %3586 = vperm.xlu0 %3585, %v3174
        %v3587 = vpop.permute.xlu0 %3586
        %3588 = vset.pattern.permute.xlu0 0
        %3589 = vperm.xlu0 %3588, %v3176
        %v3590 = vpop.permute.xlu0 %3589
        %3591 = vset.pattern.permute.xlu0 0
        %3592 = vperm.xlu0 %3591, %v3178
        %v3593 = vpop.permute.xlu0 %3592
        %3594 = vset.pattern.permute.xlu0 0
        %3595 = vperm.xlu0 %3594, %v3180
        %v3596 = vpop.permute.xlu0 %3595
        %3597 = vset.pattern.permute.xlu0 0
        %3598 = vperm.xlu0 %3597, %v3182
        %v3599 = vpop.permute.xlu0 %3598
        %3600 = vset.pattern.permute.xlu0 0
        %3601 = vperm.xlu0 %3600, %v3184
        %v3602 = vpop.permute.xlu0 %3601
        %3603 = vset.pattern.permute.xlu0 0
        %3604 = vperm.xlu0 %3603, %v3186
        %v3605 = vpop.permute.xlu0 %3604
        %3606 = vset.pattern.permute.xlu0 0
        %3607 = vperm.xlu0 %3606, %v3188
        %v3608 = vpop.permute.xlu0 %3607
        %3609 = vset.pattern.permute.xlu0 0
        %3610 = vperm.xlu0 %3609, %v3190
        %v3611 = vpop.permute.xlu0 %3610
        %3612 = vset.pattern.permute.xlu0 0
        %3613 = vperm.xlu0 %3612, %v3192
        %v3614 = vpop.permute.xlu0 %3613
        %3615 = vset.pattern.permute.xlu0 0
        %3616 = vperm.xlu0 %3615, %v3194
        %v3617 = vpop.permute.xlu0 %3616
        %3618 = vset.pattern.permute.xlu0 0
        %3619 = vperm.xlu0 %3618, %v3196
        %v3620 = vpop.permute.xlu0 %3619
        %3621 = vset.pattern.permute.xlu0 0
        %3622 = vperm.xlu0 %3621, %v3198
        %v3623 = vpop.permute.xlu0 %3622
        %3624 = vset.pattern.permute.xlu0 0
        %3625 = vperm.xlu0 %3624, %v3200
        %v3626 = vpop.permute.xlu0 %3625
        %3627 = vset.pattern.permute.xlu0 0
        %3628 = vperm.xlu0 %3627, %v3202
        %v3629 = vpop.permute.xlu0 %3628
        %3630 = vset.pattern.permute.xlu0 0
        %3631 = vperm.xlu0 %3630, %v3204
        %v3632 = vpop.permute.xlu0 %3631
        %3633 = vset.pattern.permute.xlu0 0
        %3634 = vperm.xlu0 %3633, %v3206
        %v3635 = vpop.permute.xlu0 %3634
        %3636 = vset.pattern.permute.xlu0 0
        %3637 = vperm.xlu0 %3636, %v3208
        %v3638 = vpop.permute.xlu0 %3637
        %3639 = vset.pattern.permute.xlu0 0
        %3640 = vperm.xlu0 %3639, %v3210
        %v3641 = vpop.permute.xlu0 %3640
        %3642 = vset.pattern.permute.xlu0 0
        %3643 = vperm.xlu0 %3642, %v3212
        %v3644 = vpop.permute.xlu0 %3643
        %3645 = vset.pattern.permute.xlu0 0
        %3646 = vperm.xlu0 %3645, %v3214
        %v3647 = vpop.permute.xlu0 %3646
        %3648 = vset.pattern.permute.xlu0 0
        %3649 = vperm.xlu0 %3648, %v3216
        %v3650 = vpop.permute.xlu0 %3649
        %3651 = vset.pattern.permute.xlu0 0
        %3652 = vperm.xlu0 %3651, %v3218
        %v3653 = vpop.permute.xlu0 %3652
        %3654 = vset.pattern.permute.xlu0 0
        %3655 = vperm.xlu0 %3654, %v3220
        %v3656 = vpop.permute.xlu0 %3655
        %3657 = vset.pattern.permute.xlu0 0
        %3658 = vperm.xlu0 %3657, %v3222
        %v3659 = vpop.permute.xlu0 %3658
        %3660 = vset.pattern.permute.xlu0 0
        %3661 = vperm.xlu0 %3660, %v3224
        %v3662 = vpop.permute.xlu0 %3661
        %3663 = vset.pattern.permute.xlu0 0
        %3664 = vperm.xlu0 %3663, %v3226
        %v3665 = vpop.permute.xlu0 %3664
        %3666 = vset.pattern.permute.xlu0 0
        %3667 = vperm.xlu0 %3666, %v3228
        %v3668 = vpop.permute.xlu0 %3667
        %3669 = vset.pattern.permute.xlu0 0
        %3670 = vperm.xlu0 %3669, %v3230
        %v3671 = vpop.permute.xlu0 %3670
        %3672 = vset.pattern.permute.xlu0 0
        %3673 = vperm.xlu0 %3672, %v3232
        %v3674 = vpop.permute.xlu0 %3673
        %3675 = vset.pattern.permute.xlu0 0
        %3676 = vperm.xlu0 %3675, %v3234
        %v3677 = vpop.permute.xlu0 %3676
        %3678 = vset.pattern.permute.xlu0 0
        %3679 = vperm.xlu0 %3678, %v3236
        %v3680 = vpop.permute.xlu0 %3679
        %3681 = vset.pattern.permute.xlu0 0
        %3682 = vperm.xlu0 %3681, %v3238
        %v3683 = vpop.permute.xlu0 %3682
        %3684 = vset.pattern.permute.xlu0 0
        %3685 = vperm.xlu0 %3684, %v3240
        %v3686 = vpop.permute.xlu0 %3685
        %3687 = vset.pattern.permute.xlu0 0
        %3688 = vperm.xlu0 %3687, %v3242
        %v3689 = vpop.permute.xlu0 %3688
        %3690 = vset.pattern.permute.xlu0 0
        %3691 = vperm.xlu0 %3690, %v3244
        %v3692 = vpop.permute.xlu0 %3691
        %3693 = vset.pattern.permute.xlu0 0
        %3694 = vperm.xlu0 %3693, %v3246
        %v3695 = vpop.permute.xlu0 %3694
        %3696 = vset.pattern.permute.xlu0 0
        %3697 = vperm.xlu0 %3696, %v3248
        %v3698 = vpop.permute.xlu0 %3697
        %3699 = vset.pattern.permute.xlu0 0
        %3700 = vperm.xlu0 %3699, %v3250
        %v3701 = vpop.permute.xlu0 %3700
        %3702 = vset.pattern.permute.xlu0 0
        %3703 = vperm.xlu0 %3702, %v3252
        %v3704 = vpop.permute.xlu0 %3703
        %3705 = vset.pattern.permute.xlu0 0
        %3706 = vperm.xlu0 %3705, %v3254
        %v3707 = vpop.permute.xlu0 %3706
        %3708 = vset.pattern.permute.xlu0 0
        %3709 = vperm.xlu0 %3708, %v3256
        %v3710 = vpop.permute.xlu0 %3709
        %3711 = vset.pattern.permute.xlu0 0
        %3712 = vperm.xlu0 %3711, %v3258
        %v3713 = vpop.permute.xlu0 %3712
        %3714 = vset.pattern.permute.xlu0 0
        %3715 = vperm.xlu0 %3714, %v3260
        %v3716 = vpop.permute.xlu0 %3715
        %3717 = vset.pattern.permute.xlu0 0
        %3718 = vperm.xlu0 %3717, %v3262
        %v3719 = vpop.permute.xlu0 %3718
        %3720 = vset.pattern.permute.xlu0 0
        %3721 = vperm.xlu0 %3720, %v3264
        %v3722 = vpop.permute.xlu0 %3721
        %3723 = vset.pattern.permute.xlu0 0
        %3724 = vperm.xlu0 %3723, %v3266
        %v3725 = vpop.permute.xlu0 %3724
        %3726 = vset.pattern.permute.xlu0 0
        %3727 = vperm.xlu0 %3726, %v3268
        %v3728 = vpop.permute.xlu0 %3727
        %3729 = vset.pattern.permute.xlu0 0
        %3730 = vperm.xlu0 %3729, %v3270
        %v3731 = vpop.permute.xlu0 %3730
        %3732 = vset.pattern.permute.xlu0 0
        %3733 = vperm.xlu0 %3732, %v3272
        %v3734 = vpop.permute.xlu0 %3733
        %3735 = vset.pattern.permute.xlu0 0
        %3736 = vperm.xlu0 %3735, %v3274
        %v3737 = vpop.permute.xlu0 %3736
        %3738 = vset.pattern.permute.xlu0 0
        %3739 = vperm.xlu0 %3738, %v3276
        %v3740 = vpop.permute.xlu0 %3739
        %3741 = vset.pattern.permute.xlu0 0
        %3742 = vperm.xlu0 %3741, %v3278
        %v3743 = vpop.permute.xlu0 %3742
        %3744 = vset.pattern.permute.xlu0 0
        %3745 = vperm.xlu0 %3744, %v3280
        %v3746 = vpop.permute.xlu0 %3745
        %3747 = vset.pattern.permute.xlu0 0
        %3748 = vperm.xlu0 %3747, %v3282
        %v3749 = vpop.permute.xlu0 %3748
        %3750 = vset.pattern.permute.xlu0 0
        %3751 = vperm.xlu0 %3750, %v3284
        %v3752 = vpop.permute.xlu0 %3751
        %3753 = vset.pattern.permute.xlu0 0
        %3754 = vperm.xlu0 %3753, %v3286
        %v3755 = vpop.permute.xlu0 %3754
        %3756 = vset.pattern.permute.xlu0 0
        %3757 = vperm.xlu0 %3756, %v3288
        %v3758 = vpop.permute.xlu0 %3757
        %3759 = vset.pattern.permute.xlu0 0
        %3760 = vperm.xlu0 %3759, %v3290
        %v3761 = vpop.permute.xlu0 %3760
        %3762 = vset.pattern.permute.xlu0 0
        %3763 = vperm.xlu0 %3762, %v3292
        %v3764 = vpop.permute.xlu0 %3763
        %3765 = vset.pattern.permute.xlu0 0
        %3766 = vperm.xlu0 %3765, %v3294
        %v3767 = vpop.permute.xlu0 %3766
        %3768 = vset.pattern.permute.xlu0 0
        %3769 = vperm.xlu0 %3768, %v3296
        %v3770 = vpop.permute.xlu0 %3769
        %3771 = vset.pattern.permute.xlu0 0
        %3772 = vperm.xlu0 %3771, %v3298
        %v3773 = vpop.permute.xlu0 %3772
        %3774 = vset.pattern.permute.xlu0 0
        %3775 = vperm.xlu0 %3774, %v3300
        %v3776 = vpop.permute.xlu0 %3775
        %3777 = vset.pattern.permute.xlu0 0
        %3778 = vperm.xlu0 %3777, %v3302
        %v3779 = vpop.permute.xlu0 %3778
        %3780 = vset.pattern.permute.xlu0 0
        %3781 = vperm.xlu0 %3780, %v3304
        %v3782 = vpop.permute.xlu0 %3781
        %3783 = vset.pattern.permute.xlu0 0
        %3784 = vperm.xlu0 %3783, %v3306
        %v3785 = vpop.permute.xlu0 %3784
        %3786 = vset.pattern.permute.xlu0 0
        %3787 = vperm.xlu0 %3786, %v3308
        %v3788 = vpop.permute.xlu0 %3787
        %3789 = vset.pattern.permute.xlu0 0
        %3790 = vperm.xlu0 %3789, %v3310
        %v3791 = vpop.permute.xlu0 %3790
        %3792 = vset.pattern.permute.xlu0 0
        %3793 = vperm.xlu0 %3792, %v3312
        %v3794 = vpop.permute.xlu0 %3793
        %3795 = vset.pattern.permute.xlu0 0
        %3796 = vperm.xlu0 %3795, %v3314
        %v3797 = vpop.permute.xlu0 %3796
        %3798 = vset.pattern.permute.xlu0 0
        %3799 = vperm.xlu0 %3798, %v3316
        %v3800 = vpop.permute.xlu0 %3799
        %3801 = vset.pattern.permute.xlu0 0
        %3802 = vperm.xlu0 %3801, %v3318
        %v3803 = vpop.permute.xlu0 %3802
        %3804 = vset.pattern.permute.xlu0 0
        %3805 = vperm.xlu0 %3804, %v3320
        %v3806 = vpop.permute.xlu0 %3805
        %3807 = vset.pattern.permute.xlu0 0
        %3808 = vperm.xlu0 %3807, %v3322
        %v3809 = vpop.permute.xlu0 %3808
        %3810 = vset.pattern.permute.xlu0 0
        %3811 = vperm.xlu0 %3810, %v3324
        %v3812 = vpop.permute.xlu0 %3811
        %3813 = vset.pattern.permute.xlu0 0
        %3814 = vperm.xlu0 %3813, %v3326
        %v3815 = vpop.permute.xlu0 %3814
        %3816 = vset.pattern.permute.xlu0 0
        %3817 = vperm.xlu0 %3816, %v3328
        %v3818 = vpop.permute.xlu0 %3817
        %3819 = vset.pattern.permute.xlu0 0
        %3820 = vperm.xlu0 %3819, %v3330
        %v3821 = vpop.permute.xlu0 %3820
        %3822 = vset.pattern.permute.xlu0 0
        %3823 = vperm.xlu0 %3822, %v3332
        %v3824 = vpop.permute.xlu0 %3823
        %3825 = vset.pattern.permute.xlu0 0
        %3826 = vperm.xlu0 %3825, %v3334
        %v3827 = vpop.permute.xlu0 %3826
        %3828 = vset.pattern.permute.xlu0 0
        %3829 = vperm.xlu0 %3828, %v3336
        %v3830 = vpop.permute.xlu0 %3829
        %3831 = vset.pattern.permute.xlu0 0
        %3832 = vperm.xlu0 %3831, %v3338
        %v3833 = vpop.permute.xlu0 %3832
        %3834 = vset.pattern.permute.xlu0 0
        %3835 = vperm.xlu0 %3834, %v3340
        %v3836 = vpop.permute.xlu0 %3835
        %3837 = vset.pattern.permute.xlu0 0
        %3838 = vperm.xlu0 %3837, %v3342
        %v3839 = vpop.permute.xlu0 %3838
        %3840 = vset.pattern.permute.xlu0 0
        %3841 = vperm.xlu0 %3840, %v3344
        %v3842 = vpop.permute.xlu0 %3841
        %3843 = vset.pattern.permute.xlu0 0
        %3844 = vperm.xlu0 %3843, %v3346
        %v3845 = vpop.permute.xlu0 %3844
        %3846 = vset.pattern.permute.xlu0 0
        %3847 = vperm.xlu0 %3846, %v3348
        %v3848 = vpop.permute.xlu0 %3847
        %3849 = vset.pattern.permute.xlu0 0
        %3850 = vperm.xlu0 %3849, %v3350
        %v3851 = vpop.permute.xlu0 %3850
        %3852 = vset.pattern.permute.xlu0 0
        %3853 = vperm.xlu0 %3852, %v3352
        %v3854 = vpop.permute.xlu0 %3853
        %3855 = vset.pattern.permute.xlu0 0
        %3856 = vperm.xlu0 %3855, %v3354
        %v3857 = vpop.permute.xlu0 %3856
        %3858 = vset.pattern.permute.xlu0 0
        %3859 = vperm.xlu0 %3858, %v3356
        %v3860 = vpop.permute.xlu0 %3859
        %3861 = vset.pattern.permute.xlu0 0
        %3862 = vperm.xlu0 %3861, %v3358
        %v3863 = vpop.permute.xlu0 %3862
        %3864 = vset.pattern.permute.xlu0 0
        %3865 = vperm.xlu0 %3864, %v3360
        %v3866 = vpop.permute.xlu0 %3865
        %3867 = vset.pattern.permute.xlu0 0
        %3868 = vperm.xlu0 %3867, %v3362
        %v3869 = vpop.permute.xlu0 %3868
        %3870 = vset.pattern.permute.xlu0 0
        %3871 = vperm.xlu0 %3870, %v3364
        %v3872 = vpop.permute.xlu0 %3871
        %3873 = vset.pattern.permute.xlu0 0
        %3874 = vperm.xlu0 %3873, %v3366
        %v3875 = vpop.permute.xlu0 %3874
        %3876 = vset.pattern.permute.xlu0 0
        %3877 = vperm.xlu0 %3876, %v3368
        %v3878 = vpop.permute.xlu0 %3877
        %3879 = vset.pattern.permute.xlu0 0
        %3880 = vperm.xlu0 %3879, %v3370
        %v3881 = vpop.permute.xlu0 %3880
        %3882 = vset.pattern.permute.xlu0 0
        %3883 = vperm.xlu0 %3882, %v3372
        %v3884 = vpop.permute.xlu0 %3883
        %v3885 = vlaneseq
        %v3886 = vshrl.u32 %v3885, 7
        %v3887 = vsub.s32 %v2268, %v3886
        %v3888 = vrot.slane %v3503, %v3887
        %v3889 = vlaneseq
        %v3890 = vshrl.u32 %v3889, 7
        %v3891 = vsub.s32 %v2273, %v3890
        %v3892 = vrot.slane %v3506, %v3891
        %v3893 = vsel %vm2278, %v3892, %v3888
        %v3894 = vlaneseq
        %v3895 = vshrl.u32 %v3894, 7
        %v3896 = vsub.s32 %v2280, %v3895
        %v3897 = vrot.slane %v3509, %v3896
        %v3898 = vsel %vm2285, %v3897, %v3893
        %v3899 = vlaneseq
        %v3900 = vshrl.u32 %v3899, 7
        %v3901 = vsub.s32 %v2287, %v3900
        %v3902 = vrot.slane %v3512, %v3901
        %v3903 = vsel %vm2292, %v3902, %v3898
        %v3904 = vlaneseq
        %v3905 = vshrl.u32 %v3904, 7
        %v3906 = vsub.s32 %v2294, %v3905
        %v3907 = vrot.slane %v3515, %v3906
        %v3908 = vsel %vm2299, %v3907, %v3903
        %v3909 = vlaneseq
        %v3910 = vshrl.u32 %v3909, 7
        %v3911 = vsub.s32 %v2301, %v3910
        %v3912 = vrot.slane %v3518, %v3911
        %v3913 = vsel %vm2306, %v3912, %v3908
        %v3914 = vlaneseq
        %v3915 = vshrl.u32 %v3914, 7
        %v3916 = vsub.s32 %v2308, %v3915
        %v3917 = vrot.slane %v3521, %v3916
        %v3918 = vsel %vm2313, %v3917, %v3913
        %v3919 = vlaneseq
        %v3920 = vshrl.u32 %v3919, 7
        %v3921 = vsub.s32 %v2315, %v3920
        %v3922 = vrot.slane %v3524, %v3921
        %v3923 = vsel %vm2320, %v3922, %v3918
        %v3924 = vlaneseq
        %v3925 = vshrl.u32 %v3924, 7
        %v3926 = vsub.s32 %v2322, %v3925
        %v3927 = vrot.slane %v3527, %v3926
        %v3928 = vsel %vm2327, %v3927, %v3923
        %v3929 = vlaneseq
        %v3930 = vshrl.u32 %v3929, 7
        %v3931 = vsub.s32 %v2329, %v3930
        %v3932 = vrot.slane %v3530, %v3931
        %v3933 = vsel %vm2334, %v3932, %v3928
        %v3934 = vlaneseq
        %v3935 = vshrl.u32 %v3934, 7
        %v3936 = vsub.s32 %v2336, %v3935
        %v3937 = vrot.slane %v3533, %v3936
        %v3938 = vsel %vm2341, %v3937, %v3933
        %v3939 = vlaneseq
        %v3940 = vshrl.u32 %v3939, 7
        %v3941 = vsub.s32 %v2343, %v3940
        %v3942 = vrot.slane %v3536, %v3941
        %v3943 = vsel %vm2348, %v3942, %v3938
        %v3944 = vlaneseq
        %v3945 = vshrl.u32 %v3944, 7
        %v3946 = vsub.s32 %v2350, %v3945
        %v3947 = vrot.slane %v3539, %v3946
        %v3948 = vsel %vm2355, %v3947, %v3943
        %v3949 = vlaneseq
        %v3950 = vshrl.u32 %v3949, 7
        %v3951 = vsub.s32 %v2357, %v3950
        %v3952 = vrot.slane %v3542, %v3951
        %v3953 = vsel %vm2362, %v3952, %v3948
        %v3954 = vlaneseq
        %v3955 = vshrl.u32 %v3954, 7
        %v3956 = vsub.s32 %v2364, %v3955
        %v3957 = vrot.slane %v3545, %v3956
        %v3958 = vsel %vm2369, %v3957, %v3953
        %v3959 = vlaneseq
        %v3960 = vshrl.u32 %v3959, 7
        %v3961 = vsub.s32 %v2371, %v3960
        %v3962 = vrot.slane %v3548, %v3961
        %v3963 = vsel %vm2376, %v3962, %v3958
        %v3964 = vlaneseq
        %v3965 = vshrl.u32 %v3964, 7
        %v3966 = vsub.s32 %v2268, %v3965
        %v3967 = vrot.slane %v3551, %v3966
        %v3968 = vlaneseq
        %v3969 = vshrl.u32 %v3968, 7
        %v3970 = vsub.s32 %v2273, %v3969
        %v3971 = vrot.slane %v3554, %v3970
        %v3972 = vsel %vm2278, %v3971, %v3967
        %v3973 = vlaneseq
        %v3974 = vshrl.u32 %v3973, 7
        %v3975 = vsub.s32 %v2280, %v3974
        %v3976 = vrot.slane %v3557, %v3975
        %v3977 = vsel %vm2285, %v3976, %v3972
        %v3978 = vlaneseq
        %v3979 = vshrl.u32 %v3978, 7
        %v3980 = vsub.s32 %v2287, %v3979
        %v3981 = vrot.slane %v3560, %v3980
        %v3982 = vsel %vm2292, %v3981, %v3977
        %v3983 = vlaneseq
        %v3984 = vshrl.u32 %v3983, 7
        %v3985 = vsub.s32 %v2294, %v3984
        %v3986 = vrot.slane %v3563, %v3985
        %v3987 = vsel %vm2299, %v3986, %v3982
        %v3988 = vlaneseq
        %v3989 = vshrl.u32 %v3988, 7
        %v3990 = vsub.s32 %v2301, %v3989
        %v3991 = vrot.slane %v3566, %v3990
        %v3992 = vsel %vm2306, %v3991, %v3987
        %v3993 = vlaneseq
        %v3994 = vshrl.u32 %v3993, 7
        %v3995 = vsub.s32 %v2308, %v3994
        %v3996 = vrot.slane %v3569, %v3995
        %v3997 = vsel %vm2313, %v3996, %v3992
        %v3998 = vlaneseq
        %v3999 = vshrl.u32 %v3998, 7
        %v4000 = vsub.s32 %v2315, %v3999
        %v4001 = vrot.slane %v3572, %v4000
        %v4002 = vsel %vm2320, %v4001, %v3997
        %v4003 = vlaneseq
        %v4004 = vshrl.u32 %v4003, 7
        %v4005 = vsub.s32 %v2322, %v4004
        %v4006 = vrot.slane %v3575, %v4005
        %v4007 = vsel %vm2327, %v4006, %v4002
        %v4008 = vlaneseq
        %v4009 = vshrl.u32 %v4008, 7
        %v4010 = vsub.s32 %v2329, %v4009
        %v4011 = vrot.slane %v3578, %v4010
        %v4012 = vsel %vm2334, %v4011, %v4007
        %v4013 = vlaneseq
        %v4014 = vshrl.u32 %v4013, 7
        %v4015 = vsub.s32 %v2336, %v4014
        %v4016 = vrot.slane %v3581, %v4015
        %v4017 = vsel %vm2341, %v4016, %v4012
        %v4018 = vlaneseq
        %v4019 = vshrl.u32 %v4018, 7
        %v4020 = vsub.s32 %v2343, %v4019
        %v4021 = vrot.slane %v3584, %v4020
        %v4022 = vsel %vm2348, %v4021, %v4017
        %v4023 = vlaneseq
        %v4024 = vshrl.u32 %v4023, 7
        %v4025 = vsub.s32 %v2350, %v4024
        %v4026 = vrot.slane %v3587, %v4025
        %v4027 = vsel %vm2355, %v4026, %v4022
        %v4028 = vlaneseq
        %v4029 = vshrl.u32 %v4028, 7
        %v4030 = vsub.s32 %v2357, %v4029
        %v4031 = vrot.slane %v3590, %v4030
        %v4032 = vsel %vm2362, %v4031, %v4027
        %v4033 = vlaneseq
        %v4034 = vshrl.u32 %v4033, 7
        %v4035 = vsub.s32 %v2364, %v4034
        %v4036 = vrot.slane %v3593, %v4035
        %v4037 = vsel %vm2369, %v4036, %v4032
        %v4038 = vlaneseq
        %v4039 = vshrl.u32 %v4038, 7
        %v4040 = vsub.s32 %v2371, %v4039
        %v4041 = vrot.slane %v3596, %v4040
        %v4042 = vsel %vm2376, %v4041, %v4037
        %v4043 = vlaneseq
        %v4044 = vshrl.u32 %v4043, 7
        %v4045 = vsub.s32 %v2268, %v4044
        %v4046 = vrot.slane %v3599, %v4045
        %v4047 = vlaneseq
        %v4048 = vshrl.u32 %v4047, 7
        %v4049 = vsub.s32 %v2273, %v4048
        %v4050 = vrot.slane %v3602, %v4049
        %v4051 = vsel %vm2278, %v4050, %v4046
        %v4052 = vlaneseq
        %v4053 = vshrl.u32 %v4052, 7
        %v4054 = vsub.s32 %v2280, %v4053
        %v4055 = vrot.slane %v3605, %v4054
        %v4056 = vsel %vm2285, %v4055, %v4051
        %v4057 = vlaneseq
        %v4058 = vshrl.u32 %v4057, 7
        %v4059 = vsub.s32 %v2287, %v4058
        %v4060 = vrot.slane %v3608, %v4059
        %v4061 = vsel %vm2292, %v4060, %v4056
        %v4062 = vlaneseq
        %v4063 = vshrl.u32 %v4062, 7
        %v4064 = vsub.s32 %v2294, %v4063
        %v4065 = vrot.slane %v3611, %v4064
        %v4066 = vsel %vm2299, %v4065, %v4061
        %v4067 = vlaneseq
        %v4068 = vshrl.u32 %v4067, 7
        %v4069 = vsub.s32 %v2301, %v4068
        %v4070 = vrot.slane %v3614, %v4069
        %v4071 = vsel %vm2306, %v4070, %v4066
        %v4072 = vlaneseq
        %v4073 = vshrl.u32 %v4072, 7
        %v4074 = vsub.s32 %v2308, %v4073
        %v4075 = vrot.slane %v3617, %v4074
        %v4076 = vsel %vm2313, %v4075, %v4071
        %v4077 = vlaneseq
        %v4078 = vshrl.u32 %v4077, 7
        %v4079 = vsub.s32 %v2315, %v4078
        %v4080 = vrot.slane %v3620, %v4079
        %v4081 = vsel %vm2320, %v4080, %v4076
        %v4082 = vlaneseq
        %v4083 = vshrl.u32 %v4082, 7
        %v4084 = vsub.s32 %v2322, %v4083
        %v4085 = vrot.slane %v3623, %v4084
        %v4086 = vsel %vm2327, %v4085, %v4081
        %v4087 = vlaneseq
        %v4088 = vshrl.u32 %v4087, 7
        %v4089 = vsub.s32 %v2329, %v4088
        %v4090 = vrot.slane %v3626, %v4089
        %v4091 = vsel %vm2334, %v4090, %v4086
        %v4092 = vlaneseq
        %v4093 = vshrl.u32 %v4092, 7
        %v4094 = vsub.s32 %v2336, %v4093
        %v4095 = vrot.slane %v3629, %v4094
        %v4096 = vsel %vm2341, %v4095, %v4091
        %v4097 = vlaneseq
        %v4098 = vshrl.u32 %v4097, 7
        %v4099 = vsub.s32 %v2343, %v4098
        %v4100 = vrot.slane %v3632, %v4099
        %v4101 = vsel %vm2348, %v4100, %v4096
        %v4102 = vlaneseq
        %v4103 = vshrl.u32 %v4102, 7
        %v4104 = vsub.s32 %v2350, %v4103
        %v4105 = vrot.slane %v3635, %v4104
        %v4106 = vsel %vm2355, %v4105, %v4101
        %v4107 = vlaneseq
        %v4108 = vshrl.u32 %v4107, 7
        %v4109 = vsub.s32 %v2357, %v4108
        %v4110 = vrot.slane %v3638, %v4109
        %v4111 = vsel %vm2362, %v4110, %v4106
        %v4112 = vlaneseq
        %v4113 = vshrl.u32 %v4112, 7
        %v4114 = vsub.s32 %v2364, %v4113
        %v4115 = vrot.slane %v3641, %v4114
        %v4116 = vsel %vm2369, %v4115, %v4111
        %v4117 = vlaneseq
        %v4118 = vshrl.u32 %v4117, 7
        %v4119 = vsub.s32 %v2371, %v4118
        %v4120 = vrot.slane %v3644, %v4119
        %v4121 = vsel %vm2376, %v4120, %v4116
        %v4122 = vlaneseq
        %v4123 = vshrl.u32 %v4122, 7
        %v4124 = vsub.s32 %v2268, %v4123
        %v4125 = vrot.slane %v3647, %v4124
        %v4126 = vlaneseq
        %v4127 = vshrl.u32 %v4126, 7
        %v4128 = vsub.s32 %v2273, %v4127
        %v4129 = vrot.slane %v3650, %v4128
        %v4130 = vsel %vm2278, %v4129, %v4125
        %v4131 = vlaneseq
        %v4132 = vshrl.u32 %v4131, 7
        %v4133 = vsub.s32 %v2280, %v4132
        %v4134 = vrot.slane %v3653, %v4133
        %v4135 = vsel %vm2285, %v4134, %v4130
        %v4136 = vlaneseq
        %v4137 = vshrl.u32 %v4136, 7
        %v4138 = vsub.s32 %v2287, %v4137
        %v4139 = vrot.slane %v3656, %v4138
        %v4140 = vsel %vm2292, %v4139, %v4135
        %v4141 = vlaneseq
        %v4142 = vshrl.u32 %v4141, 7
        %v4143 = vsub.s32 %v2294, %v4142
        %v4144 = vrot.slane %v3659, %v4143
        %v4145 = vsel %vm2299, %v4144, %v4140
        %v4146 = vlaneseq
        %v4147 = vshrl.u32 %v4146, 7
        %v4148 = vsub.s32 %v2301, %v4147
        %v4149 = vrot.slane %v3662, %v4148
        %v4150 = vsel %vm2306, %v4149, %v4145
        %v4151 = vlaneseq
        %v4152 = vshrl.u32 %v4151, 7
        %v4153 = vsub.s32 %v2308, %v4152
        %v4154 = vrot.slane %v3665, %v4153
        %v4155 = vsel %vm2313, %v4154, %v4150
        %v4156 = vlaneseq
        %v4157 = vshrl.u32 %v4156, 7
        %v4158 = vsub.s32 %v2315, %v4157
        %v4159 = vrot.slane %v3668, %v4158
        %v4160 = vsel %vm2320, %v4159, %v4155
        %v4161 = vlaneseq
        %v4162 = vshrl.u32 %v4161, 7
        %v4163 = vsub.s32 %v2322, %v4162
        %v4164 = vrot.slane %v3671, %v4163
        %v4165 = vsel %vm2327, %v4164, %v4160
        %v4166 = vlaneseq
        %v4167 = vshrl.u32 %v4166, 7
        %v4168 = vsub.s32 %v2329, %v4167
        %v4169 = vrot.slane %v3674, %v4168
        %v4170 = vsel %vm2334, %v4169, %v4165
        %v4171 = vlaneseq
        %v4172 = vshrl.u32 %v4171, 7
        %v4173 = vsub.s32 %v2336, %v4172
        %v4174 = vrot.slane %v3677, %v4173
        %v4175 = vsel %vm2341, %v4174, %v4170
        %v4176 = vlaneseq
        %v4177 = vshrl.u32 %v4176, 7
        %v4178 = vsub.s32 %v2343, %v4177
        %v4179 = vrot.slane %v3680, %v4178
        %v4180 = vsel %vm2348, %v4179, %v4175
        %v4181 = vlaneseq
        %v4182 = vshrl.u32 %v4181, 7
        %v4183 = vsub.s32 %v2350, %v4182
        %v4184 = vrot.slane %v3683, %v4183
        %v4185 = vsel %vm2355, %v4184, %v4180
        %v4186 = vlaneseq
        %v4187 = vshrl.u32 %v4186, 7
        %v4188 = vsub.s32 %v2357, %v4187
        %v4189 = vrot.slane %v3686, %v4188
        %v4190 = vsel %vm2362, %v4189, %v4185
        %v4191 = vlaneseq
        %v4192 = vshrl.u32 %v4191, 7
        %v4193 = vsub.s32 %v2364, %v4192
        %v4194 = vrot.slane %v3689, %v4193
        %v4195 = vsel %vm2369, %v4194, %v4190
        %v4196 = vlaneseq
        %v4197 = vshrl.u32 %v4196, 7
        %v4198 = vsub.s32 %v2371, %v4197
        %v4199 = vrot.slane %v3692, %v4198
        %v4200 = vsel %vm2376, %v4199, %v4195
        %v4201 = vlaneseq
        %v4202 = vshrl.u32 %v4201, 7
        %v4203 = vsub.s32 %v2268, %v4202
        %v4204 = vrot.slane %v3695, %v4203
        %v4205 = vlaneseq
        %v4206 = vshrl.u32 %v4205, 7
        %v4207 = vsub.s32 %v2273, %v4206
        %v4208 = vrot.slane %v3698, %v4207
        %v4209 = vsel %vm2278, %v4208, %v4204
        %v4210 = vlaneseq
        %v4211 = vshrl.u32 %v4210, 7
        %v4212 = vsub.s32 %v2280, %v4211
        %v4213 = vrot.slane %v3701, %v4212
        %v4214 = vsel %vm2285, %v4213, %v4209
        %v4215 = vlaneseq
        %v4216 = vshrl.u32 %v4215, 7
        %v4217 = vsub.s32 %v2287, %v4216
        %v4218 = vrot.slane %v3704, %v4217
        %v4219 = vsel %vm2292, %v4218, %v4214
        %v4220 = vlaneseq
        %v4221 = vshrl.u32 %v4220, 7
        %v4222 = vsub.s32 %v2294, %v4221
        %v4223 = vrot.slane %v3707, %v4222
        %v4224 = vsel %vm2299, %v4223, %v4219
        %v4225 = vlaneseq
        %v4226 = vshrl.u32 %v4225, 7
        %v4227 = vsub.s32 %v2301, %v4226
        %v4228 = vrot.slane %v3710, %v4227
        %v4229 = vsel %vm2306, %v4228, %v4224
        %v4230 = vlaneseq
        %v4231 = vshrl.u32 %v4230, 7
        %v4232 = vsub.s32 %v2308, %v4231
        %v4233 = vrot.slane %v3713, %v4232
        %v4234 = vsel %vm2313, %v4233, %v4229
        %v4235 = vlaneseq
        %v4236 = vshrl.u32 %v4235, 7
        %v4237 = vsub.s32 %v2315, %v4236
        %v4238 = vrot.slane %v3716, %v4237
        %v4239 = vsel %vm2320, %v4238, %v4234
        %v4240 = vlaneseq
        %v4241 = vshrl.u32 %v4240, 7
        %v4242 = vsub.s32 %v2322, %v4241
        %v4243 = vrot.slane %v3719, %v4242
        %v4244 = vsel %vm2327, %v4243, %v4239
        %v4245 = vlaneseq
        %v4246 = vshrl.u32 %v4245, 7
        %v4247 = vsub.s32 %v2329, %v4246
        %v4248 = vrot.slane %v3722, %v4247
        %v4249 = vsel %vm2334, %v4248, %v4244
        %v4250 = vlaneseq
        %v4251 = vshrl.u32 %v4250, 7
        %v4252 = vsub.s32 %v2336, %v4251
        %v4253 = vrot.slane %v3725, %v4252
        %v4254 = vsel %vm2341, %v4253, %v4249
        %v4255 = vlaneseq
        %v4256 = vshrl.u32 %v4255, 7
        %v4257 = vsub.s32 %v2343, %v4256
        %v4258 = vrot.slane %v3728, %v4257
        %v4259 = vsel %vm2348, %v4258, %v4254
        %v4260 = vlaneseq
        %v4261 = vshrl.u32 %v4260, 7
        %v4262 = vsub.s32 %v2350, %v4261
        %v4263 = vrot.slane %v3731, %v4262
        %v4264 = vsel %vm2355, %v4263, %v4259
        %v4265 = vlaneseq
        %v4266 = vshrl.u32 %v4265, 7
        %v4267 = vsub.s32 %v2357, %v4266
        %v4268 = vrot.slane %v3734, %v4267
        %v4269 = vsel %vm2362, %v4268, %v4264
        %v4270 = vlaneseq
        %v4271 = vshrl.u32 %v4270, 7
        %v4272 = vsub.s32 %v2364, %v4271
        %v4273 = vrot.slane %v3737, %v4272
        %v4274 = vsel %vm2369, %v4273, %v4269
        %v4275 = vlaneseq
        %v4276 = vshrl.u32 %v4275, 7
        %v4277 = vsub.s32 %v2371, %v4276
        %v4278 = vrot.slane %v3740, %v4277
        %v4279 = vsel %vm2376, %v4278, %v4274
        %v4280 = vlaneseq
        %v4281 = vshrl.u32 %v4280, 7
        %v4282 = vsub.s32 %v2268, %v4281
        %v4283 = vrot.slane %v3743, %v4282
        %v4284 = vlaneseq
        %v4285 = vshrl.u32 %v4284, 7
        %v4286 = vsub.s32 %v2273, %v4285
        %v4287 = vrot.slane %v3746, %v4286
        %v4288 = vsel %vm2278, %v4287, %v4283
        %v4289 = vlaneseq
        %v4290 = vshrl.u32 %v4289, 7
        %v4291 = vsub.s32 %v2280, %v4290
        %v4292 = vrot.slane %v3749, %v4291
        %v4293 = vsel %vm2285, %v4292, %v4288
        %v4294 = vlaneseq
        %v4295 = vshrl.u32 %v4294, 7
        %v4296 = vsub.s32 %v2287, %v4295
        %v4297 = vrot.slane %v3752, %v4296
        %v4298 = vsel %vm2292, %v4297, %v4293
        %v4299 = vlaneseq
        %v4300 = vshrl.u32 %v4299, 7
        %v4301 = vsub.s32 %v2294, %v4300
        %v4302 = vrot.slane %v3755, %v4301
        %v4303 = vsel %vm2299, %v4302, %v4298
        %v4304 = vlaneseq
        %v4305 = vshrl.u32 %v4304, 7
        %v4306 = vsub.s32 %v2301, %v4305
        %v4307 = vrot.slane %v3758, %v4306
        %v4308 = vsel %vm2306, %v4307, %v4303
        %v4309 = vlaneseq
        %v4310 = vshrl.u32 %v4309, 7
        %v4311 = vsub.s32 %v2308, %v4310
        %v4312 = vrot.slane %v3761, %v4311
        %v4313 = vsel %vm2313, %v4312, %v4308
        %v4314 = vlaneseq
        %v4315 = vshrl.u32 %v4314, 7
        %v4316 = vsub.s32 %v2315, %v4315
        %v4317 = vrot.slane %v3764, %v4316
        %v4318 = vsel %vm2320, %v4317, %v4313
        %v4319 = vlaneseq
        %v4320 = vshrl.u32 %v4319, 7
        %v4321 = vsub.s32 %v2322, %v4320
        %v4322 = vrot.slane %v3767, %v4321
        %v4323 = vsel %vm2327, %v4322, %v4318
        %v4324 = vlaneseq
        %v4325 = vshrl.u32 %v4324, 7
        %v4326 = vsub.s32 %v2329, %v4325
        %v4327 = vrot.slane %v3770, %v4326
        %v4328 = vsel %vm2334, %v4327, %v4323
        %v4329 = vlaneseq
        %v4330 = vshrl.u32 %v4329, 7
        %v4331 = vsub.s32 %v2336, %v4330
        %v4332 = vrot.slane %v3773, %v4331
        %v4333 = vsel %vm2341, %v4332, %v4328
        %v4334 = vlaneseq
        %v4335 = vshrl.u32 %v4334, 7
        %v4336 = vsub.s32 %v2343, %v4335
        %v4337 = vrot.slane %v3776, %v4336
        %v4338 = vsel %vm2348, %v4337, %v4333
        %v4339 = vlaneseq
        %v4340 = vshrl.u32 %v4339, 7
        %v4341 = vsub.s32 %v2350, %v4340
        %v4342 = vrot.slane %v3779, %v4341
        %v4343 = vsel %vm2355, %v4342, %v4338
        %v4344 = vlaneseq
        %v4345 = vshrl.u32 %v4344, 7
        %v4346 = vsub.s32 %v2357, %v4345
        %v4347 = vrot.slane %v3782, %v4346
        %v4348 = vsel %vm2362, %v4347, %v4343
        %v4349 = vlaneseq
        %v4350 = vshrl.u32 %v4349, 7
        %v4351 = vsub.s32 %v2364, %v4350
        %v4352 = vrot.slane %v3785, %v4351
        %v4353 = vsel %vm2369, %v4352, %v4348
        %v4354 = vlaneseq
        %v4355 = vshrl.u32 %v4354, 7
        %v4356 = vsub.s32 %v2371, %v4355
        %v4357 = vrot.slane %v3788, %v4356
        %v4358 = vsel %vm2376, %v4357, %v4353
        %v4359 = vlaneseq
        %v4360 = vshrl.u32 %v4359, 7
        %v4361 = vsub.s32 %v2268, %v4360
        %v4362 = vrot.slane %v3791, %v4361
        %v4363 = vlaneseq
        %v4364 = vshrl.u32 %v4363, 7
        %v4365 = vsub.s32 %v2273, %v4364
        %v4366 = vrot.slane %v3794, %v4365
        %v4367 = vsel %vm2278, %v4366, %v4362
        %v4368 = vlaneseq
        %v4369 = vshrl.u32 %v4368, 7
        %v4370 = vsub.s32 %v2280, %v4369
        %v4371 = vrot.slane %v3797, %v4370
        %v4372 = vsel %vm2285, %v4371, %v4367
        %v4373 = vlaneseq
        %v4374 = vshrl.u32 %v4373, 7
        %v4375 = vsub.s32 %v2287, %v4374
        %v4376 = vrot.slane %v3800, %v4375
        %v4377 = vsel %vm2292, %v4376, %v4372
        %v4378 = vlaneseq
        %v4379 = vshrl.u32 %v4378, 7
        %v4380 = vsub.s32 %v2294, %v4379
        %v4381 = vrot.slane %v3803, %v4380
        %v4382 = vsel %vm2299, %v4381, %v4377
        %v4383 = vlaneseq
        %v4384 = vshrl.u32 %v4383, 7
        %v4385 = vsub.s32 %v2301, %v4384
        %v4386 = vrot.slane %v3806, %v4385
        %v4387 = vsel %vm2306, %v4386, %v4382
        %v4388 = vlaneseq
        %v4389 = vshrl.u32 %v4388, 7
        %v4390 = vsub.s32 %v2308, %v4389
        %v4391 = vrot.slane %v3809, %v4390
        %v4392 = vsel %vm2313, %v4391, %v4387
        %v4393 = vlaneseq
        %v4394 = vshrl.u32 %v4393, 7
        %v4395 = vsub.s32 %v2315, %v4394
        %v4396 = vrot.slane %v3812, %v4395
        %v4397 = vsel %vm2320, %v4396, %v4392
        %v4398 = vlaneseq
        %v4399 = vshrl.u32 %v4398, 7
        %v4400 = vsub.s32 %v2322, %v4399
        %v4401 = vrot.slane %v3815, %v4400
        %v4402 = vsel %vm2327, %v4401, %v4397
        %v4403 = vlaneseq
        %v4404 = vshrl.u32 %v4403, 7
        %v4405 = vsub.s32 %v2329, %v4404
        %v4406 = vrot.slane %v3818, %v4405
        %v4407 = vsel %vm2334, %v4406, %v4402
        %v4408 = vlaneseq
        %v4409 = vshrl.u32 %v4408, 7
        %v4410 = vsub.s32 %v2336, %v4409
        %v4411 = vrot.slane %v3821, %v4410
        %v4412 = vsel %vm2341, %v4411, %v4407
        %v4413 = vlaneseq
        %v4414 = vshrl.u32 %v4413, 7
        %v4415 = vsub.s32 %v2343, %v4414
        %v4416 = vrot.slane %v3824, %v4415
        %v4417 = vsel %vm2348, %v4416, %v4412
        %v4418 = vlaneseq
        %v4419 = vshrl.u32 %v4418, 7
        %v4420 = vsub.s32 %v2350, %v4419
        %v4421 = vrot.slane %v3827, %v4420
        %v4422 = vsel %vm2355, %v4421, %v4417
        %v4423 = vlaneseq
        %v4424 = vshrl.u32 %v4423, 7
        %v4425 = vsub.s32 %v2357, %v4424
        %v4426 = vrot.slane %v3830, %v4425
        %v4427 = vsel %vm2362, %v4426, %v4422
        %v4428 = vlaneseq
        %v4429 = vshrl.u32 %v4428, 7
        %v4430 = vsub.s32 %v2364, %v4429
        %v4431 = vrot.slane %v3833, %v4430
        %v4432 = vsel %vm2369, %v4431, %v4427
        %v4433 = vlaneseq
        %v4434 = vshrl.u32 %v4433, 7
        %v4435 = vsub.s32 %v2371, %v4434
        %v4436 = vrot.slane %v3836, %v4435
        %v4437 = vsel %vm2376, %v4436, %v4432
        %v4438 = vlaneseq
        %v4439 = vshrl.u32 %v4438, 7
        %v4440 = vsub.s32 %v2268, %v4439
        %v4441 = vrot.slane %v3839, %v4440
        %v4442 = vlaneseq
        %v4443 = vshrl.u32 %v4442, 7
        %v4444 = vsub.s32 %v2273, %v4443
        %v4445 = vrot.slane %v3842, %v4444
        %v4446 = vsel %vm2278, %v4445, %v4441
        %v4447 = vlaneseq
        %v4448 = vshrl.u32 %v4447, 7
        %v4449 = vsub.s32 %v2280, %v4448
        %v4450 = vrot.slane %v3845, %v4449
        %v4451 = vsel %vm2285, %v4450, %v4446
        %v4452 = vlaneseq
        %v4453 = vshrl.u32 %v4452, 7
        %v4454 = vsub.s32 %v2287, %v4453
        %v4455 = vrot.slane %v3848, %v4454
        %v4456 = vsel %vm2292, %v4455, %v4451
        %v4457 = vlaneseq
        %v4458 = vshrl.u32 %v4457, 7
        %v4459 = vsub.s32 %v2294, %v4458
        %v4460 = vrot.slane %v3851, %v4459
        %v4461 = vsel %vm2299, %v4460, %v4456
        %v4462 = vlaneseq
        %v4463 = vshrl.u32 %v4462, 7
        %v4464 = vsub.s32 %v2301, %v4463
        %v4465 = vrot.slane %v3854, %v4464
        %v4466 = vsel %vm2306, %v4465, %v4461
        %v4467 = vlaneseq
        %v4468 = vshrl.u32 %v4467, 7
        %v4469 = vsub.s32 %v2308, %v4468
        %v4470 = vrot.slane %v3857, %v4469
        %v4471 = vsel %vm2313, %v4470, %v4466
        %v4472 = vlaneseq
        %v4473 = vshrl.u32 %v4472, 7
        %v4474 = vsub.s32 %v2315, %v4473
        %v4475 = vrot.slane %v3860, %v4474
        %v4476 = vsel %vm2320, %v4475, %v4471
        %v4477 = vlaneseq
        %v4478 = vshrl.u32 %v4477, 7
        %v4479 = vsub.s32 %v2322, %v4478
        %v4480 = vrot.slane %v3863, %v4479
        %v4481 = vsel %vm2327, %v4480, %v4476
        %v4482 = vlaneseq
        %v4483 = vshrl.u32 %v4482, 7
        %v4484 = vsub.s32 %v2329, %v4483
        %v4485 = vrot.slane %v3866, %v4484
        %v4486 = vsel %vm2334, %v4485, %v4481
        %v4487 = vlaneseq
        %v4488 = vshrl.u32 %v4487, 7
        %v4489 = vsub.s32 %v2336, %v4488
        %v4490 = vrot.slane %v3869, %v4489
        %v4491 = vsel %vm2341, %v4490, %v4486
        %v4492 = vlaneseq
        %v4493 = vshrl.u32 %v4492, 7
        %v4494 = vsub.s32 %v2343, %v4493
        %v4495 = vrot.slane %v3872, %v4494
        %v4496 = vsel %vm2348, %v4495, %v4491
        %v4497 = vlaneseq
        %v4498 = vshrl.u32 %v4497, 7
        %v4499 = vsub.s32 %v2350, %v4498
        %v4500 = vrot.slane %v3875, %v4499
        %v4501 = vsel %vm2355, %v4500, %v4496
        %v4502 = vlaneseq
        %v4503 = vshrl.u32 %v4502, 7
        %v4504 = vsub.s32 %v2357, %v4503
        %v4505 = vrot.slane %v3878, %v4504
        %v4506 = vsel %vm2362, %v4505, %v4501
        %v4507 = vlaneseq
        %v4508 = vshrl.u32 %v4507, 7
        %v4509 = vsub.s32 %v2364, %v4508
        %v4510 = vrot.slane %v3881, %v4509
        %v4511 = vsel %vm2369, %v4510, %v4506
        %v4512 = vlaneseq
        %v4513 = vshrl.u32 %v4512, 7
        %v4514 = vsub.s32 %v2371, %v4513
        %v4515 = vrot.slane %v3884, %v4514
        %v4516 = vsel %vm2376, %v4515, %v4511
        %v4517 = vsel %vm2931, %v4042, %v3963
        %v4518 = vsel %vm2933, %v4121, %v4517
        %v4519 = vsel %vm2935, %v4200, %v4518
        %v4520 = vsel %vm2937, %v4279, %v4519
        %v4521 = vsel %vm2939, %v4358, %v4520
        %v4522 = vsel %vm2941, %v4437, %v4521
        %v4523 = vsel %vm2943, %v4516, %v4522
        %4525 = vadd.xlane.f32.xlu0 %v4523
        %v4526 = vpop.xlane.xlu0 %4525
        %v4527 = vrcp.pop %v4526
        %v4529 = vlaneseq
        %v4530 = vshrl.u32 %v4529, 7
        %v4531 = vsub.s32 0, %v4530
        %v4532 = vrot.slane %v4527, %v4531
        %v4533 = vlaneseq
        %v4534 = vshrl.u32 %v4533, 7
        %v4535 = vsub.s32 1, %v4534
        %v4536 = vrot.slane %v4527, %v4535
        %v4537 = vlaneseq
        %v4538 = vshrl.u32 %v4537, 7
        %v4539 = vsub.s32 2, %v4538
        %v4540 = vrot.slane %v4527, %v4539
        %v4541 = vlaneseq
        %v4542 = vshrl.u32 %v4541, 7
        %v4543 = vsub.s32 3, %v4542
        %v4544 = vrot.slane %v4527, %v4543
        %v4545 = vlaneseq
        %v4546 = vshrl.u32 %v4545, 7
        %v4547 = vsub.s32 4, %v4546
        %v4548 = vrot.slane %v4527, %v4547
        %v4549 = vlaneseq
        %v4550 = vshrl.u32 %v4549, 7
        %v4551 = vsub.s32 5, %v4550
        %v4552 = vrot.slane %v4527, %v4551
        %v4553 = vlaneseq
        %v4554 = vshrl.u32 %v4553, 7
        %v4555 = vsub.s32 6, %v4554
        %v4556 = vrot.slane %v4527, %v4555
        %v4557 = vlaneseq
        %v4558 = vshrl.u32 %v4557, 7
        %v4559 = vsub.s32 7, %v4558
        %v4560 = vrot.slane %v4527, %v4559
        %v4569 = vmul.f32 %v3118, %v4532
        %v4570 = vmul.f32 %v3120, %v4532
        %v4571 = vmul.f32 %v3122, %v4532
        %v4572 = vmul.f32 %v3124, %v4532
        %v4573 = vmul.f32 %v3126, %v4532
        %v4574 = vmul.f32 %v3128, %v4532
        %v4575 = vmul.f32 %v3130, %v4532
        %v4576 = vmul.f32 %v3132, %v4532
        %v4577 = vmul.f32 %v3134, %v4532
        %v4578 = vmul.f32 %v3136, %v4532
        %v4579 = vmul.f32 %v3138, %v4532
        %v4580 = vmul.f32 %v3140, %v4532
        %v4581 = vmul.f32 %v3142, %v4532
        %v4582 = vmul.f32 %v3144, %v4532
        %v4583 = vmul.f32 %v3146, %v4532
        %v4584 = vmul.f32 %v3148, %v4532
        %v4585 = vmul.f32 %v3150, %v4536
        %v4586 = vmul.f32 %v3152, %v4536
        %v4587 = vmul.f32 %v3154, %v4536
        %v4588 = vmul.f32 %v3156, %v4536
        %v4589 = vmul.f32 %v3158, %v4536
        %v4590 = vmul.f32 %v3160, %v4536
        %v4591 = vmul.f32 %v3162, %v4536
        %v4592 = vmul.f32 %v3164, %v4536
        %v4593 = vmul.f32 %v3166, %v4536
        %v4594 = vmul.f32 %v3168, %v4536
        %v4595 = vmul.f32 %v3170, %v4536
        %v4596 = vmul.f32 %v3172, %v4536
        %v4597 = vmul.f32 %v3174, %v4536
        %v4598 = vmul.f32 %v3176, %v4536
        %v4599 = vmul.f32 %v3178, %v4536
        %v4600 = vmul.f32 %v3180, %v4536
        %v4601 = vmul.f32 %v3182, %v4540
        %v4602 = vmul.f32 %v3184, %v4540
        %v4603 = vmul.f32 %v3186, %v4540
        %v4604 = vmul.f32 %v3188, %v4540
        %v4605 = vmul.f32 %v3190, %v4540
        %v4606 = vmul.f32 %v3192, %v4540
        %v4607 = vmul.f32 %v3194, %v4540
        %v4608 = vmul.f32 %v3196, %v4540
        %v4609 = vmul.f32 %v3198, %v4540
        %v4610 = vmul.f32 %v3200, %v4540
        %v4611 = vmul.f32 %v3202, %v4540
        %v4612 = vmul.f32 %v3204, %v4540
        %v4613 = vmul.f32 %v3206, %v4540
        %v4614 = vmul.f32 %v3208, %v4540
        %v4615 = vmul.f32 %v3210, %v4540
        %v4616 = vmul.f32 %v3212, %v4540
        %v4617 = vmul.f32 %v3214, %v4544
        %v4618 = vmul.f32 %v3216, %v4544
        %v4619 = vmul.f32 %v3218, %v4544
        %v4620 = vmul.f32 %v3220, %v4544
        %v4621 = vmul.f32 %v3222, %v4544
        %v4622 = vmul.f32 %v3224, %v4544
        %v4623 = vmul.f32 %v3226, %v4544
        %v4624 = vmul.f32 %v3228, %v4544
        %v4625 = vmul.f32 %v3230, %v4544
        %v4626 = vmul.f32 %v3232, %v4544
        %v4627 = vmul.f32 %v3234, %v4544
        %v4628 = vmul.f32 %v3236, %v4544
        %v4629 = vmul.f32 %v3238, %v4544
        %v4630 = vmul.f32 %v3240, %v4544
        %v4631 = vmul.f32 %v3242, %v4544
        %v4632 = vmul.f32 %v3244, %v4544
        %v4633 = vmul.f32 %v3246, %v4548
        %v4634 = vmul.f32 %v3248, %v4548
        %v4635 = vmul.f32 %v3250, %v4548
        %v4636 = vmul.f32 %v3252, %v4548
        %v4637 = vmul.f32 %v3254, %v4548
        %v4638 = vmul.f32 %v3256, %v4548
        %v4639 = vmul.f32 %v3258, %v4548
        %v4640 = vmul.f32 %v3260, %v4548
        %v4641 = vmul.f32 %v3262, %v4548
        %v4642 = vmul.f32 %v3264, %v4548
        %v4643 = vmul.f32 %v3266, %v4548
        %v4644 = vmul.f32 %v3268, %v4548
        %v4645 = vmul.f32 %v3270, %v4548
        %v4646 = vmul.f32 %v3272, %v4548
        %v4647 = vmul.f32 %v3274, %v4548
        %v4648 = vmul.f32 %v3276, %v4548
        %v4649 = vmul.f32 %v3278, %v4552
        %v4650 = vmul.f32 %v3280, %v4552
        %v4651 = vmul.f32 %v3282, %v4552
        %v4652 = vmul.f32 %v3284, %v4552
        %v4653 = vmul.f32 %v3286, %v4552
        %v4654 = vmul.f32 %v3288, %v4552
        %v4655 = vmul.f32 %v3290, %v4552
        %v4656 = vmul.f32 %v3292, %v4552
        %v4657 = vmul.f32 %v3294, %v4552
        %v4658 = vmul.f32 %v3296, %v4552
        %v4659 = vmul.f32 %v3298, %v4552
        %v4660 = vmul.f32 %v3300, %v4552
        %v4661 = vmul.f32 %v3302, %v4552
        %v4662 = vmul.f32 %v3304, %v4552
        %v4663 = vmul.f32 %v3306, %v4552
        %v4664 = vmul.f32 %v3308, %v4552
        %v4665 = vmul.f32 %v3310, %v4556
        %v4666 = vmul.f32 %v3312, %v4556
        %v4667 = vmul.f32 %v3314, %v4556
        %v4668 = vmul.f32 %v3316, %v4556
        %v4669 = vmul.f32 %v3318, %v4556
        %v4670 = vmul.f32 %v3320, %v4556
        %v4671 = vmul.f32 %v3322, %v4556
        %v4672 = vmul.f32 %v3324, %v4556
        %v4673 = vmul.f32 %v3326, %v4556
        %v4674 = vmul.f32 %v3328, %v4556
        %v4675 = vmul.f32 %v3330, %v4556
        %v4676 = vmul.f32 %v3332, %v4556
        %v4677 = vmul.f32 %v3334, %v4556
        %v4678 = vmul.f32 %v3336, %v4556
        %v4679 = vmul.f32 %v3338, %v4556
        %v4680 = vmul.f32 %v3340, %v4556
        %v4681 = vmul.f32 %v3342, %v4560
        %v4682 = vmul.f32 %v3344, %v4560
        %v4683 = vmul.f32 %v3346, %v4560
        %v4684 = vmul.f32 %v3348, %v4560
        %v4685 = vmul.f32 %v3350, %v4560
        %v4686 = vmul.f32 %v3352, %v4560
        %v4687 = vmul.f32 %v3354, %v4560
        %v4688 = vmul.f32 %v3356, %v4560
        %v4689 = vmul.f32 %v3358, %v4560
        %v4690 = vmul.f32 %v3360, %v4560
        %v4691 = vmul.f32 %v3362, %v4560
        %v4692 = vmul.f32 %v3364, %v4560
        %v4693 = vmul.f32 %v3366, %v4560
        %v4694 = vmul.f32 %v3368, %v4560
        %v4695 = vmul.f32 %v3370, %v4560
        %v4696 = vmul.f32 %v3372, %v4560
        %4825 = vset.pattern.permute.xlu0 0
        %4826 = vperm.xlu0 %4825, %v4569
        %v4827 = vpop.permute.xlu0 %4826
        %4828 = vset.pattern.permute.xlu0 0
        %4829 = vperm.xlu0 %4828, %v4570
        %v4830 = vpop.permute.xlu0 %4829
        %4831 = vset.pattern.permute.xlu0 0
        %4832 = vperm.xlu0 %4831, %v4571
        %v4833 = vpop.permute.xlu0 %4832
        %4834 = vset.pattern.permute.xlu0 0
        %4835 = vperm.xlu0 %4834, %v4572
        %v4836 = vpop.permute.xlu0 %4835
        %4837 = vset.pattern.permute.xlu0 0
        %4838 = vperm.xlu0 %4837, %v4573
        %v4839 = vpop.permute.xlu0 %4838
        %4840 = vset.pattern.permute.xlu0 0
        %4841 = vperm.xlu0 %4840, %v4574
        %v4842 = vpop.permute.xlu0 %4841
        %4843 = vset.pattern.permute.xlu0 0
        %4844 = vperm.xlu0 %4843, %v4575
        %v4845 = vpop.permute.xlu0 %4844
        %4846 = vset.pattern.permute.xlu0 0
        %4847 = vperm.xlu0 %4846, %v4576
        %v4848 = vpop.permute.xlu0 %4847
        %4849 = vset.pattern.permute.xlu0 0
        %4850 = vperm.xlu0 %4849, %v4577
        %v4851 = vpop.permute.xlu0 %4850
        %4852 = vset.pattern.permute.xlu0 0
        %4853 = vperm.xlu0 %4852, %v4578
        %v4854 = vpop.permute.xlu0 %4853
        %4855 = vset.pattern.permute.xlu0 0
        %4856 = vperm.xlu0 %4855, %v4579
        %v4857 = vpop.permute.xlu0 %4856
        %4858 = vset.pattern.permute.xlu0 0
        %4859 = vperm.xlu0 %4858, %v4580
        %v4860 = vpop.permute.xlu0 %4859
        %4861 = vset.pattern.permute.xlu0 0
        %4862 = vperm.xlu0 %4861, %v4581
        %v4863 = vpop.permute.xlu0 %4862
        %4864 = vset.pattern.permute.xlu0 0
        %4865 = vperm.xlu0 %4864, %v4582
        %v4866 = vpop.permute.xlu0 %4865
        %4867 = vset.pattern.permute.xlu0 0
        %4868 = vperm.xlu0 %4867, %v4583
        %v4869 = vpop.permute.xlu0 %4868
        %4870 = vset.pattern.permute.xlu0 0
        %4871 = vperm.xlu0 %4870, %v4584
        %v4872 = vpop.permute.xlu0 %4871
        %4873 = vset.pattern.permute.xlu0 0
        %4874 = vperm.xlu0 %4873, %v4585
        %v4875 = vpop.permute.xlu0 %4874
        %4876 = vset.pattern.permute.xlu0 0
        %4877 = vperm.xlu0 %4876, %v4586
        %v4878 = vpop.permute.xlu0 %4877
        %4879 = vset.pattern.permute.xlu0 0
        %4880 = vperm.xlu0 %4879, %v4587
        %v4881 = vpop.permute.xlu0 %4880
        %4882 = vset.pattern.permute.xlu0 0
        %4883 = vperm.xlu0 %4882, %v4588
        %v4884 = vpop.permute.xlu0 %4883
        %4885 = vset.pattern.permute.xlu0 0
        %4886 = vperm.xlu0 %4885, %v4589
        %v4887 = vpop.permute.xlu0 %4886
        %4888 = vset.pattern.permute.xlu0 0
        %4889 = vperm.xlu0 %4888, %v4590
        %v4890 = vpop.permute.xlu0 %4889
        %4891 = vset.pattern.permute.xlu0 0
        %4892 = vperm.xlu0 %4891, %v4591
        %v4893 = vpop.permute.xlu0 %4892
        %4894 = vset.pattern.permute.xlu0 0
        %4895 = vperm.xlu0 %4894, %v4592
        %v4896 = vpop.permute.xlu0 %4895
        %4897 = vset.pattern.permute.xlu0 0
        %4898 = vperm.xlu0 %4897, %v4593
        %v4899 = vpop.permute.xlu0 %4898
        %4900 = vset.pattern.permute.xlu0 0
        %4901 = vperm.xlu0 %4900, %v4594
        %v4902 = vpop.permute.xlu0 %4901
        %4903 = vset.pattern.permute.xlu0 0
        %4904 = vperm.xlu0 %4903, %v4595
        %v4905 = vpop.permute.xlu0 %4904
        %4906 = vset.pattern.permute.xlu0 0
        %4907 = vperm.xlu0 %4906, %v4596
        %v4908 = vpop.permute.xlu0 %4907
        %4909 = vset.pattern.permute.xlu0 0
        %4910 = vperm.xlu0 %4909, %v4597
        %v4911 = vpop.permute.xlu0 %4910
        %4912 = vset.pattern.permute.xlu0 0
        %4913 = vperm.xlu0 %4912, %v4598
        %v4914 = vpop.permute.xlu0 %4913
        %4915 = vset.pattern.permute.xlu0 0
        %4916 = vperm.xlu0 %4915, %v4599
        %v4917 = vpop.permute.xlu0 %4916
        %4918 = vset.pattern.permute.xlu0 0
        %4919 = vperm.xlu0 %4918, %v4600
        %v4920 = vpop.permute.xlu0 %4919
        %4921 = vset.pattern.permute.xlu0 0
        %4922 = vperm.xlu0 %4921, %v4601
        %v4923 = vpop.permute.xlu0 %4922
        %4924 = vset.pattern.permute.xlu0 0
        %4925 = vperm.xlu0 %4924, %v4602
        %v4926 = vpop.permute.xlu0 %4925
        %4927 = vset.pattern.permute.xlu0 0
        %4928 = vperm.xlu0 %4927, %v4603
        %v4929 = vpop.permute.xlu0 %4928
        %4930 = vset.pattern.permute.xlu0 0
        %4931 = vperm.xlu0 %4930, %v4604
        %v4932 = vpop.permute.xlu0 %4931
        %4933 = vset.pattern.permute.xlu0 0
        %4934 = vperm.xlu0 %4933, %v4605
        %v4935 = vpop.permute.xlu0 %4934
        %4936 = vset.pattern.permute.xlu0 0
        %4937 = vperm.xlu0 %4936, %v4606
        %v4938 = vpop.permute.xlu0 %4937
        %4939 = vset.pattern.permute.xlu0 0
        %4940 = vperm.xlu0 %4939, %v4607
        %v4941 = vpop.permute.xlu0 %4940
        %4942 = vset.pattern.permute.xlu0 0
        %4943 = vperm.xlu0 %4942, %v4608
        %v4944 = vpop.permute.xlu0 %4943
        %4945 = vset.pattern.permute.xlu0 0
        %4946 = vperm.xlu0 %4945, %v4609
        %v4947 = vpop.permute.xlu0 %4946
        %4948 = vset.pattern.permute.xlu0 0
        %4949 = vperm.xlu0 %4948, %v4610
        %v4950 = vpop.permute.xlu0 %4949
        %4951 = vset.pattern.permute.xlu0 0
        %4952 = vperm.xlu0 %4951, %v4611
        %v4953 = vpop.permute.xlu0 %4952
        %4954 = vset.pattern.permute.xlu0 0
        %4955 = vperm.xlu0 %4954, %v4612
        %v4956 = vpop.permute.xlu0 %4955
        %4957 = vset.pattern.permute.xlu0 0
        %4958 = vperm.xlu0 %4957, %v4613
        %v4959 = vpop.permute.xlu0 %4958
        %4960 = vset.pattern.permute.xlu0 0
        %4961 = vperm.xlu0 %4960, %v4614
        %v4962 = vpop.permute.xlu0 %4961
        %4963 = vset.pattern.permute.xlu0 0
        %4964 = vperm.xlu0 %4963, %v4615
        %v4965 = vpop.permute.xlu0 %4964
        %4966 = vset.pattern.permute.xlu0 0
        %4967 = vperm.xlu0 %4966, %v4616
        %v4968 = vpop.permute.xlu0 %4967
        %4969 = vset.pattern.permute.xlu0 0
        %4970 = vperm.xlu0 %4969, %v4617
        %v4971 = vpop.permute.xlu0 %4970
        %4972 = vset.pattern.permute.xlu0 0
        %4973 = vperm.xlu0 %4972, %v4618
        %v4974 = vpop.permute.xlu0 %4973
        %4975 = vset.pattern.permute.xlu0 0
        %4976 = vperm.xlu0 %4975, %v4619
        %v4977 = vpop.permute.xlu0 %4976
        %4978 = vset.pattern.permute.xlu0 0
        %4979 = vperm.xlu0 %4978, %v4620
        %v4980 = vpop.permute.xlu0 %4979
        %4981 = vset.pattern.permute.xlu0 0
        %4982 = vperm.xlu0 %4981, %v4621
        %v4983 = vpop.permute.xlu0 %4982
        %4984 = vset.pattern.permute.xlu0 0
        %4985 = vperm.xlu0 %4984, %v4622
        %v4986 = vpop.permute.xlu0 %4985
        %4987 = vset.pattern.permute.xlu0 0
        %4988 = vperm.xlu0 %4987, %v4623
        %v4989 = vpop.permute.xlu0 %4988
        %4990 = vset.pattern.permute.xlu0 0
        %4991 = vperm.xlu0 %4990, %v4624
        %v4992 = vpop.permute.xlu0 %4991
        %4993 = vset.pattern.permute.xlu0 0
        %4994 = vperm.xlu0 %4993, %v4625
        %v4995 = vpop.permute.xlu0 %4994
        %4996 = vset.pattern.permute.xlu0 0
        %4997 = vperm.xlu0 %4996, %v4626
        %v4998 = vpop.permute.xlu0 %4997
        %4999 = vset.pattern.permute.xlu0 0
        %5000 = vperm.xlu0 %4999, %v4627
        %v5001 = vpop.permute.xlu0 %5000
        %5002 = vset.pattern.permute.xlu0 0
        %5003 = vperm.xlu0 %5002, %v4628
        %v5004 = vpop.permute.xlu0 %5003
        %5005 = vset.pattern.permute.xlu0 0
        %5006 = vperm.xlu0 %5005, %v4629
        %v5007 = vpop.permute.xlu0 %5006
        %5008 = vset.pattern.permute.xlu0 0
        %5009 = vperm.xlu0 %5008, %v4630
        %v5010 = vpop.permute.xlu0 %5009
        %5011 = vset.pattern.permute.xlu0 0
        %5012 = vperm.xlu0 %5011, %v4631
        %v5013 = vpop.permute.xlu0 %5012
        %5014 = vset.pattern.permute.xlu0 0
        %5015 = vperm.xlu0 %5014, %v4632
        %v5016 = vpop.permute.xlu0 %5015
        %5017 = vset.pattern.permute.xlu0 0
        %5018 = vperm.xlu0 %5017, %v4633
        %v5019 = vpop.permute.xlu0 %5018
        %5020 = vset.pattern.permute.xlu0 0
        %5021 = vperm.xlu0 %5020, %v4634
        %v5022 = vpop.permute.xlu0 %5021
        %5023 = vset.pattern.permute.xlu0 0
        %5024 = vperm.xlu0 %5023, %v4635
        %v5025 = vpop.permute.xlu0 %5024
        %5026 = vset.pattern.permute.xlu0 0
        %5027 = vperm.xlu0 %5026, %v4636
        %v5028 = vpop.permute.xlu0 %5027
        %5029 = vset.pattern.permute.xlu0 0
        %5030 = vperm.xlu0 %5029, %v4637
        %v5031 = vpop.permute.xlu0 %5030
        %5032 = vset.pattern.permute.xlu0 0
        %5033 = vperm.xlu0 %5032, %v4638
        %v5034 = vpop.permute.xlu0 %5033
        %5035 = vset.pattern.permute.xlu0 0
        %5036 = vperm.xlu0 %5035, %v4639
        %v5037 = vpop.permute.xlu0 %5036
        %5038 = vset.pattern.permute.xlu0 0
        %5039 = vperm.xlu0 %5038, %v4640
        %v5040 = vpop.permute.xlu0 %5039
        %5041 = vset.pattern.permute.xlu0 0
        %5042 = vperm.xlu0 %5041, %v4641
        %v5043 = vpop.permute.xlu0 %5042
        %5044 = vset.pattern.permute.xlu0 0
        %5045 = vperm.xlu0 %5044, %v4642
        %v5046 = vpop.permute.xlu0 %5045
        %5047 = vset.pattern.permute.xlu0 0
        %5048 = vperm.xlu0 %5047, %v4643
        %v5049 = vpop.permute.xlu0 %5048
        %5050 = vset.pattern.permute.xlu0 0
        %5051 = vperm.xlu0 %5050, %v4644
        %v5052 = vpop.permute.xlu0 %5051
        %5053 = vset.pattern.permute.xlu0 0
        %5054 = vperm.xlu0 %5053, %v4645
        %v5055 = vpop.permute.xlu0 %5054
        %5056 = vset.pattern.permute.xlu0 0
        %5057 = vperm.xlu0 %5056, %v4646
        %v5058 = vpop.permute.xlu0 %5057
        %5059 = vset.pattern.permute.xlu0 0
        %5060 = vperm.xlu0 %5059, %v4647
        %v5061 = vpop.permute.xlu0 %5060
        %5062 = vset.pattern.permute.xlu0 0
        %5063 = vperm.xlu0 %5062, %v4648
        %v5064 = vpop.permute.xlu0 %5063
        %5065 = vset.pattern.permute.xlu0 0
        %5066 = vperm.xlu0 %5065, %v4649
        %v5067 = vpop.permute.xlu0 %5066
        %5068 = vset.pattern.permute.xlu0 0
        %5069 = vperm.xlu0 %5068, %v4650
        %v5070 = vpop.permute.xlu0 %5069
        %5071 = vset.pattern.permute.xlu0 0
        %5072 = vperm.xlu0 %5071, %v4651
        %v5073 = vpop.permute.xlu0 %5072
        %5074 = vset.pattern.permute.xlu0 0
        %5075 = vperm.xlu0 %5074, %v4652
        %v5076 = vpop.permute.xlu0 %5075
        %5077 = vset.pattern.permute.xlu0 0
        %5078 = vperm.xlu0 %5077, %v4653
        %v5079 = vpop.permute.xlu0 %5078
        %5080 = vset.pattern.permute.xlu0 0
        %5081 = vperm.xlu0 %5080, %v4654
        %v5082 = vpop.permute.xlu0 %5081
        %5083 = vset.pattern.permute.xlu0 0
        %5084 = vperm.xlu0 %5083, %v4655
        %v5085 = vpop.permute.xlu0 %5084
        %5086 = vset.pattern.permute.xlu0 0
        %5087 = vperm.xlu0 %5086, %v4656
        %v5088 = vpop.permute.xlu0 %5087
        %5089 = vset.pattern.permute.xlu0 0
        %5090 = vperm.xlu0 %5089, %v4657
        %v5091 = vpop.permute.xlu0 %5090
        %5092 = vset.pattern.permute.xlu0 0
        %5093 = vperm.xlu0 %5092, %v4658
        %v5094 = vpop.permute.xlu0 %5093
        %5095 = vset.pattern.permute.xlu0 0
        %5096 = vperm.xlu0 %5095, %v4659
        %v5097 = vpop.permute.xlu0 %5096
        %5098 = vset.pattern.permute.xlu0 0
        %5099 = vperm.xlu0 %5098, %v4660
        %v5100 = vpop.permute.xlu0 %5099
        %5101 = vset.pattern.permute.xlu0 0
        %5102 = vperm.xlu0 %5101, %v4661
        %v5103 = vpop.permute.xlu0 %5102
        %5104 = vset.pattern.permute.xlu0 0
        %5105 = vperm.xlu0 %5104, %v4662
        %v5106 = vpop.permute.xlu0 %5105
        %5107 = vset.pattern.permute.xlu0 0
        %5108 = vperm.xlu0 %5107, %v4663
        %v5109 = vpop.permute.xlu0 %5108
        %5110 = vset.pattern.permute.xlu0 0
        %5111 = vperm.xlu0 %5110, %v4664
        %v5112 = vpop.permute.xlu0 %5111
        %5113 = vset.pattern.permute.xlu0 0
        %5114 = vperm.xlu0 %5113, %v4665
        %v5115 = vpop.permute.xlu0 %5114
        %5116 = vset.pattern.permute.xlu0 0
        %5117 = vperm.xlu0 %5116, %v4666
        %v5118 = vpop.permute.xlu0 %5117
        %5119 = vset.pattern.permute.xlu0 0
        %5120 = vperm.xlu0 %5119, %v4667
        %v5121 = vpop.permute.xlu0 %5120
        %5122 = vset.pattern.permute.xlu0 0
        %5123 = vperm.xlu0 %5122, %v4668
        %v5124 = vpop.permute.xlu0 %5123
        %5125 = vset.pattern.permute.xlu0 0
        %5126 = vperm.xlu0 %5125, %v4669
        %v5127 = vpop.permute.xlu0 %5126
        %5128 = vset.pattern.permute.xlu0 0
        %5129 = vperm.xlu0 %5128, %v4670
        %v5130 = vpop.permute.xlu0 %5129
        %5131 = vset.pattern.permute.xlu0 0
        %5132 = vperm.xlu0 %5131, %v4671
        %v5133 = vpop.permute.xlu0 %5132
        %5134 = vset.pattern.permute.xlu0 0
        %5135 = vperm.xlu0 %5134, %v4672
        %v5136 = vpop.permute.xlu0 %5135
        %5137 = vset.pattern.permute.xlu0 0
        %5138 = vperm.xlu0 %5137, %v4673
        %v5139 = vpop.permute.xlu0 %5138
        %5140 = vset.pattern.permute.xlu0 0
        %5141 = vperm.xlu0 %5140, %v4674
        %v5142 = vpop.permute.xlu0 %5141
        %5143 = vset.pattern.permute.xlu0 0
        %5144 = vperm.xlu0 %5143, %v4675
        %v5145 = vpop.permute.xlu0 %5144
        %5146 = vset.pattern.permute.xlu0 0
        %5147 = vperm.xlu0 %5146, %v4676
        %v5148 = vpop.permute.xlu0 %5147
        %5149 = vset.pattern.permute.xlu0 0
        %5150 = vperm.xlu0 %5149, %v4677
        %v5151 = vpop.permute.xlu0 %5150
        %5152 = vset.pattern.permute.xlu0 0
        %5153 = vperm.xlu0 %5152, %v4678
        %v5154 = vpop.permute.xlu0 %5153
        %5155 = vset.pattern.permute.xlu0 0
        %5156 = vperm.xlu0 %5155, %v4679
        %v5157 = vpop.permute.xlu0 %5156
        %5158 = vset.pattern.permute.xlu0 0
        %5159 = vperm.xlu0 %5158, %v4680
        %v5160 = vpop.permute.xlu0 %5159
        %5161 = vset.pattern.permute.xlu0 0
        %5162 = vperm.xlu0 %5161, %v4681
        %v5163 = vpop.permute.xlu0 %5162
        %5164 = vset.pattern.permute.xlu0 0
        %5165 = vperm.xlu0 %5164, %v4682
        %v5166 = vpop.permute.xlu0 %5165
        %5167 = vset.pattern.permute.xlu0 0
        %5168 = vperm.xlu0 %5167, %v4683
        %v5169 = vpop.permute.xlu0 %5168
        %5170 = vset.pattern.permute.xlu0 0
        %5171 = vperm.xlu0 %5170, %v4684
        %v5172 = vpop.permute.xlu0 %5171
        %5173 = vset.pattern.permute.xlu0 0
        %5174 = vperm.xlu0 %5173, %v4685
        %v5175 = vpop.permute.xlu0 %5174
        %5176 = vset.pattern.permute.xlu0 0
        %5177 = vperm.xlu0 %5176, %v4686
        %v5178 = vpop.permute.xlu0 %5177
        %5179 = vset.pattern.permute.xlu0 0
        %5180 = vperm.xlu0 %5179, %v4687
        %v5181 = vpop.permute.xlu0 %5180
        %5182 = vset.pattern.permute.xlu0 0
        %5183 = vperm.xlu0 %5182, %v4688
        %v5184 = vpop.permute.xlu0 %5183
        %5185 = vset.pattern.permute.xlu0 0
        %5186 = vperm.xlu0 %5185, %v4689
        %v5187 = vpop.permute.xlu0 %5186
        %5188 = vset.pattern.permute.xlu0 0
        %5189 = vperm.xlu0 %5188, %v4690
        %v5190 = vpop.permute.xlu0 %5189
        %5191 = vset.pattern.permute.xlu0 0
        %5192 = vperm.xlu0 %5191, %v4691
        %v5193 = vpop.permute.xlu0 %5192
        %5194 = vset.pattern.permute.xlu0 0
        %5195 = vperm.xlu0 %5194, %v4692
        %v5196 = vpop.permute.xlu0 %5195
        %5197 = vset.pattern.permute.xlu0 0
        %5198 = vperm.xlu0 %5197, %v4693
        %v5199 = vpop.permute.xlu0 %5198
        %5200 = vset.pattern.permute.xlu0 0
        %5201 = vperm.xlu0 %5200, %v4694
        %v5202 = vpop.permute.xlu0 %5201
        %5203 = vset.pattern.permute.xlu0 0
        %5204 = vperm.xlu0 %5203, %v4695
        %v5205 = vpop.permute.xlu0 %5204
        %5206 = vset.pattern.permute.xlu0 0
        %5207 = vperm.xlu0 %5206, %v4696
        %v5208 = vpop.permute.xlu0 %5207
        %v5209 = vlaneseq
        %v5210 = vshrl.u32 %v5209, 7
        %v5211 = vsub.s32 %v2268, %v5210
        %v5212 = vrot.slane %v4827, %v5211
        %v5213 = vlaneseq
        %v5214 = vshrl.u32 %v5213, 7
        %v5215 = vsub.s32 %v2273, %v5214
        %v5216 = vrot.slane %v4830, %v5215
        %v5217 = vsel %vm2278, %v5216, %v5212
        %v5218 = vlaneseq
        %v5219 = vshrl.u32 %v5218, 7
        %v5220 = vsub.s32 %v2280, %v5219
        %v5221 = vrot.slane %v4833, %v5220
        %v5222 = vsel %vm2285, %v5221, %v5217
        %v5223 = vlaneseq
        %v5224 = vshrl.u32 %v5223, 7
        %v5225 = vsub.s32 %v2287, %v5224
        %v5226 = vrot.slane %v4836, %v5225
        %v5227 = vsel %vm2292, %v5226, %v5222
        %v5228 = vlaneseq
        %v5229 = vshrl.u32 %v5228, 7
        %v5230 = vsub.s32 %v2294, %v5229
        %v5231 = vrot.slane %v4839, %v5230
        %v5232 = vsel %vm2299, %v5231, %v5227
        %v5233 = vlaneseq
        %v5234 = vshrl.u32 %v5233, 7
        %v5235 = vsub.s32 %v2301, %v5234
        %v5236 = vrot.slane %v4842, %v5235
        %v5237 = vsel %vm2306, %v5236, %v5232
        %v5238 = vlaneseq
        %v5239 = vshrl.u32 %v5238, 7
        %v5240 = vsub.s32 %v2308, %v5239
        %v5241 = vrot.slane %v4845, %v5240
        %v5242 = vsel %vm2313, %v5241, %v5237
        %v5243 = vlaneseq
        %v5244 = vshrl.u32 %v5243, 7
        %v5245 = vsub.s32 %v2315, %v5244
        %v5246 = vrot.slane %v4848, %v5245
        %v5247 = vsel %vm2320, %v5246, %v5242
        %v5248 = vlaneseq
        %v5249 = vshrl.u32 %v5248, 7
        %v5250 = vsub.s32 %v2322, %v5249
        %v5251 = vrot.slane %v4851, %v5250
        %v5252 = vsel %vm2327, %v5251, %v5247
        %v5253 = vlaneseq
        %v5254 = vshrl.u32 %v5253, 7
        %v5255 = vsub.s32 %v2329, %v5254
        %v5256 = vrot.slane %v4854, %v5255
        %v5257 = vsel %vm2334, %v5256, %v5252
        %v5258 = vlaneseq
        %v5259 = vshrl.u32 %v5258, 7
        %v5260 = vsub.s32 %v2336, %v5259
        %v5261 = vrot.slane %v4857, %v5260
        %v5262 = vsel %vm2341, %v5261, %v5257
        %v5263 = vlaneseq
        %v5264 = vshrl.u32 %v5263, 7
        %v5265 = vsub.s32 %v2343, %v5264
        %v5266 = vrot.slane %v4860, %v5265
        %v5267 = vsel %vm2348, %v5266, %v5262
        %v5268 = vlaneseq
        %v5269 = vshrl.u32 %v5268, 7
        %v5270 = vsub.s32 %v2350, %v5269
        %v5271 = vrot.slane %v4863, %v5270
        %v5272 = vsel %vm2355, %v5271, %v5267
        %v5273 = vlaneseq
        %v5274 = vshrl.u32 %v5273, 7
        %v5275 = vsub.s32 %v2357, %v5274
        %v5276 = vrot.slane %v4866, %v5275
        %v5277 = vsel %vm2362, %v5276, %v5272
        %v5278 = vlaneseq
        %v5279 = vshrl.u32 %v5278, 7
        %v5280 = vsub.s32 %v2364, %v5279
        %v5281 = vrot.slane %v4869, %v5280
        %v5282 = vsel %vm2369, %v5281, %v5277
        %v5283 = vlaneseq
        %v5284 = vshrl.u32 %v5283, 7
        %v5285 = vsub.s32 %v2371, %v5284
        %v5286 = vrot.slane %v4872, %v5285
        %v5287 = vsel %vm2376, %v5286, %v5282
        %v5288 = vlaneseq
        %v5289 = vshrl.u32 %v5288, 7
        %v5290 = vsub.s32 %v2268, %v5289
        %v5291 = vrot.slane %v4875, %v5290
        %v5292 = vlaneseq
        %v5293 = vshrl.u32 %v5292, 7
        %v5294 = vsub.s32 %v2273, %v5293
        %v5295 = vrot.slane %v4878, %v5294
        %v5296 = vsel %vm2278, %v5295, %v5291
        %v5297 = vlaneseq
        %v5298 = vshrl.u32 %v5297, 7
        %v5299 = vsub.s32 %v2280, %v5298
        %v5300 = vrot.slane %v4881, %v5299
        %v5301 = vsel %vm2285, %v5300, %v5296
        %v5302 = vlaneseq
        %v5303 = vshrl.u32 %v5302, 7
        %v5304 = vsub.s32 %v2287, %v5303
        %v5305 = vrot.slane %v4884, %v5304
        %v5306 = vsel %vm2292, %v5305, %v5301
        %v5307 = vlaneseq
        %v5308 = vshrl.u32 %v5307, 7
        %v5309 = vsub.s32 %v2294, %v5308
        %v5310 = vrot.slane %v4887, %v5309
        %v5311 = vsel %vm2299, %v5310, %v5306
        %v5312 = vlaneseq
        %v5313 = vshrl.u32 %v5312, 7
        %v5314 = vsub.s32 %v2301, %v5313
        %v5315 = vrot.slane %v4890, %v5314
        %v5316 = vsel %vm2306, %v5315, %v5311
        %v5317 = vlaneseq
        %v5318 = vshrl.u32 %v5317, 7
        %v5319 = vsub.s32 %v2308, %v5318
        %v5320 = vrot.slane %v4893, %v5319
        %v5321 = vsel %vm2313, %v5320, %v5316
        %v5322 = vlaneseq
        %v5323 = vshrl.u32 %v5322, 7
        %v5324 = vsub.s32 %v2315, %v5323
        %v5325 = vrot.slane %v4896, %v5324
        %v5326 = vsel %vm2320, %v5325, %v5321
        %v5327 = vlaneseq
        %v5328 = vshrl.u32 %v5327, 7
        %v5329 = vsub.s32 %v2322, %v5328
        %v5330 = vrot.slane %v4899, %v5329
        %v5331 = vsel %vm2327, %v5330, %v5326
        %v5332 = vlaneseq
        %v5333 = vshrl.u32 %v5332, 7
        %v5334 = vsub.s32 %v2329, %v5333
        %v5335 = vrot.slane %v4902, %v5334
        %v5336 = vsel %vm2334, %v5335, %v5331
        %v5337 = vlaneseq
        %v5338 = vshrl.u32 %v5337, 7
        %v5339 = vsub.s32 %v2336, %v5338
        %v5340 = vrot.slane %v4905, %v5339
        %v5341 = vsel %vm2341, %v5340, %v5336
        %v5342 = vlaneseq
        %v5343 = vshrl.u32 %v5342, 7
        %v5344 = vsub.s32 %v2343, %v5343
        %v5345 = vrot.slane %v4908, %v5344
        %v5346 = vsel %vm2348, %v5345, %v5341
        %v5347 = vlaneseq
        %v5348 = vshrl.u32 %v5347, 7
        %v5349 = vsub.s32 %v2350, %v5348
        %v5350 = vrot.slane %v4911, %v5349
        %v5351 = vsel %vm2355, %v5350, %v5346
        %v5352 = vlaneseq
        %v5353 = vshrl.u32 %v5352, 7
        %v5354 = vsub.s32 %v2357, %v5353
        %v5355 = vrot.slane %v4914, %v5354
        %v5356 = vsel %vm2362, %v5355, %v5351
        %v5357 = vlaneseq
        %v5358 = vshrl.u32 %v5357, 7
        %v5359 = vsub.s32 %v2364, %v5358
        %v5360 = vrot.slane %v4917, %v5359
        %v5361 = vsel %vm2369, %v5360, %v5356
        %v5362 = vlaneseq
        %v5363 = vshrl.u32 %v5362, 7
        %v5364 = vsub.s32 %v2371, %v5363
        %v5365 = vrot.slane %v4920, %v5364
        %v5366 = vsel %vm2376, %v5365, %v5361
        %v5367 = vlaneseq
        %v5368 = vshrl.u32 %v5367, 7
        %v5369 = vsub.s32 %v2268, %v5368
        %v5370 = vrot.slane %v4923, %v5369
        %v5371 = vlaneseq
        %v5372 = vshrl.u32 %v5371, 7
        %v5373 = vsub.s32 %v2273, %v5372
        %v5374 = vrot.slane %v4926, %v5373
        %v5375 = vsel %vm2278, %v5374, %v5370
        %v5376 = vlaneseq
        %v5377 = vshrl.u32 %v5376, 7
        %v5378 = vsub.s32 %v2280, %v5377
        %v5379 = vrot.slane %v4929, %v5378
        %v5380 = vsel %vm2285, %v5379, %v5375
        %v5381 = vlaneseq
        %v5382 = vshrl.u32 %v5381, 7
        %v5383 = vsub.s32 %v2287, %v5382
        %v5384 = vrot.slane %v4932, %v5383
        %v5385 = vsel %vm2292, %v5384, %v5380
        %v5386 = vlaneseq
        %v5387 = vshrl.u32 %v5386, 7
        %v5388 = vsub.s32 %v2294, %v5387
        %v5389 = vrot.slane %v4935, %v5388
        %v5390 = vsel %vm2299, %v5389, %v5385
        %v5391 = vlaneseq
        %v5392 = vshrl.u32 %v5391, 7
        %v5393 = vsub.s32 %v2301, %v5392
        %v5394 = vrot.slane %v4938, %v5393
        %v5395 = vsel %vm2306, %v5394, %v5390
        %v5396 = vlaneseq
        %v5397 = vshrl.u32 %v5396, 7
        %v5398 = vsub.s32 %v2308, %v5397
        %v5399 = vrot.slane %v4941, %v5398
        %v5400 = vsel %vm2313, %v5399, %v5395
        %v5401 = vlaneseq
        %v5402 = vshrl.u32 %v5401, 7
        %v5403 = vsub.s32 %v2315, %v5402
        %v5404 = vrot.slane %v4944, %v5403
        %v5405 = vsel %vm2320, %v5404, %v5400
        %v5406 = vlaneseq
        %v5407 = vshrl.u32 %v5406, 7
        %v5408 = vsub.s32 %v2322, %v5407
        %v5409 = vrot.slane %v4947, %v5408
        %v5410 = vsel %vm2327, %v5409, %v5405
        %v5411 = vlaneseq
        %v5412 = vshrl.u32 %v5411, 7
        %v5413 = vsub.s32 %v2329, %v5412
        %v5414 = vrot.slane %v4950, %v5413
        %v5415 = vsel %vm2334, %v5414, %v5410
        %v5416 = vlaneseq
        %v5417 = vshrl.u32 %v5416, 7
        %v5418 = vsub.s32 %v2336, %v5417
        %v5419 = vrot.slane %v4953, %v5418
        %v5420 = vsel %vm2341, %v5419, %v5415
        %v5421 = vlaneseq
        %v5422 = vshrl.u32 %v5421, 7
        %v5423 = vsub.s32 %v2343, %v5422
        %v5424 = vrot.slane %v4956, %v5423
        %v5425 = vsel %vm2348, %v5424, %v5420
        %v5426 = vlaneseq
        %v5427 = vshrl.u32 %v5426, 7
        %v5428 = vsub.s32 %v2350, %v5427
        %v5429 = vrot.slane %v4959, %v5428
        %v5430 = vsel %vm2355, %v5429, %v5425
        %v5431 = vlaneseq
        %v5432 = vshrl.u32 %v5431, 7
        %v5433 = vsub.s32 %v2357, %v5432
        %v5434 = vrot.slane %v4962, %v5433
        %v5435 = vsel %vm2362, %v5434, %v5430
        %v5436 = vlaneseq
        %v5437 = vshrl.u32 %v5436, 7
        %v5438 = vsub.s32 %v2364, %v5437
        %v5439 = vrot.slane %v4965, %v5438
        %v5440 = vsel %vm2369, %v5439, %v5435
        %v5441 = vlaneseq
        %v5442 = vshrl.u32 %v5441, 7
        %v5443 = vsub.s32 %v2371, %v5442
        %v5444 = vrot.slane %v4968, %v5443
        %v5445 = vsel %vm2376, %v5444, %v5440
        %v5446 = vlaneseq
        %v5447 = vshrl.u32 %v5446, 7
        %v5448 = vsub.s32 %v2268, %v5447
        %v5449 = vrot.slane %v4971, %v5448
        %v5450 = vlaneseq
        %v5451 = vshrl.u32 %v5450, 7
        %v5452 = vsub.s32 %v2273, %v5451
        %v5453 = vrot.slane %v4974, %v5452
        %v5454 = vsel %vm2278, %v5453, %v5449
        %v5455 = vlaneseq
        %v5456 = vshrl.u32 %v5455, 7
        %v5457 = vsub.s32 %v2280, %v5456
        %v5458 = vrot.slane %v4977, %v5457
        %v5459 = vsel %vm2285, %v5458, %v5454
        %v5460 = vlaneseq
        %v5461 = vshrl.u32 %v5460, 7
        %v5462 = vsub.s32 %v2287, %v5461
        %v5463 = vrot.slane %v4980, %v5462
        %v5464 = vsel %vm2292, %v5463, %v5459
        %v5465 = vlaneseq
        %v5466 = vshrl.u32 %v5465, 7
        %v5467 = vsub.s32 %v2294, %v5466
        %v5468 = vrot.slane %v4983, %v5467
        %v5469 = vsel %vm2299, %v5468, %v5464
        %v5470 = vlaneseq
        %v5471 = vshrl.u32 %v5470, 7
        %v5472 = vsub.s32 %v2301, %v5471
        %v5473 = vrot.slane %v4986, %v5472
        %v5474 = vsel %vm2306, %v5473, %v5469
        %v5475 = vlaneseq
        %v5476 = vshrl.u32 %v5475, 7
        %v5477 = vsub.s32 %v2308, %v5476
        %v5478 = vrot.slane %v4989, %v5477
        %v5479 = vsel %vm2313, %v5478, %v5474
        %v5480 = vlaneseq
        %v5481 = vshrl.u32 %v5480, 7
        %v5482 = vsub.s32 %v2315, %v5481
        %v5483 = vrot.slane %v4992, %v5482
        %v5484 = vsel %vm2320, %v5483, %v5479
        %v5485 = vlaneseq
        %v5486 = vshrl.u32 %v5485, 7
        %v5487 = vsub.s32 %v2322, %v5486
        %v5488 = vrot.slane %v4995, %v5487
        %v5489 = vsel %vm2327, %v5488, %v5484
        %v5490 = vlaneseq
        %v5491 = vshrl.u32 %v5490, 7
        %v5492 = vsub.s32 %v2329, %v5491
        %v5493 = vrot.slane %v4998, %v5492
        %v5494 = vsel %vm2334, %v5493, %v5489
        %v5495 = vlaneseq
        %v5496 = vshrl.u32 %v5495, 7
        %v5497 = vsub.s32 %v2336, %v5496
        %v5498 = vrot.slane %v5001, %v5497
        %v5499 = vsel %vm2341, %v5498, %v5494
        %v5500 = vlaneseq
        %v5501 = vshrl.u32 %v5500, 7
        %v5502 = vsub.s32 %v2343, %v5501
        %v5503 = vrot.slane %v5004, %v5502
        %v5504 = vsel %vm2348, %v5503, %v5499
        %v5505 = vlaneseq
        %v5506 = vshrl.u32 %v5505, 7
        %v5507 = vsub.s32 %v2350, %v5506
        %v5508 = vrot.slane %v5007, %v5507
        %v5509 = vsel %vm2355, %v5508, %v5504
        %v5510 = vlaneseq
        %v5511 = vshrl.u32 %v5510, 7
        %v5512 = vsub.s32 %v2357, %v5511
        %v5513 = vrot.slane %v5010, %v5512
        %v5514 = vsel %vm2362, %v5513, %v5509
        %v5515 = vlaneseq
        %v5516 = vshrl.u32 %v5515, 7
        %v5517 = vsub.s32 %v2364, %v5516
        %v5518 = vrot.slane %v5013, %v5517
        %v5519 = vsel %vm2369, %v5518, %v5514
        %v5520 = vlaneseq
        %v5521 = vshrl.u32 %v5520, 7
        %v5522 = vsub.s32 %v2371, %v5521
        %v5523 = vrot.slane %v5016, %v5522
        %v5524 = vsel %vm2376, %v5523, %v5519
        %v5525 = vlaneseq
        %v5526 = vshrl.u32 %v5525, 7
        %v5527 = vsub.s32 %v2268, %v5526
        %v5528 = vrot.slane %v5019, %v5527
        %v5529 = vlaneseq
        %v5530 = vshrl.u32 %v5529, 7
        %v5531 = vsub.s32 %v2273, %v5530
        %v5532 = vrot.slane %v5022, %v5531
        %v5533 = vsel %vm2278, %v5532, %v5528
        %v5534 = vlaneseq
        %v5535 = vshrl.u32 %v5534, 7
        %v5536 = vsub.s32 %v2280, %v5535
        %v5537 = vrot.slane %v5025, %v5536
        %v5538 = vsel %vm2285, %v5537, %v5533
        %v5539 = vlaneseq
        %v5540 = vshrl.u32 %v5539, 7
        %v5541 = vsub.s32 %v2287, %v5540
        %v5542 = vrot.slane %v5028, %v5541
        %v5543 = vsel %vm2292, %v5542, %v5538
        %v5544 = vlaneseq
        %v5545 = vshrl.u32 %v5544, 7
        %v5546 = vsub.s32 %v2294, %v5545
        %v5547 = vrot.slane %v5031, %v5546
        %v5548 = vsel %vm2299, %v5547, %v5543
        %v5549 = vlaneseq
        %v5550 = vshrl.u32 %v5549, 7
        %v5551 = vsub.s32 %v2301, %v5550
        %v5552 = vrot.slane %v5034, %v5551
        %v5553 = vsel %vm2306, %v5552, %v5548
        %v5554 = vlaneseq
        %v5555 = vshrl.u32 %v5554, 7
        %v5556 = vsub.s32 %v2308, %v5555
        %v5557 = vrot.slane %v5037, %v5556
        %v5558 = vsel %vm2313, %v5557, %v5553
        %v5559 = vlaneseq
        %v5560 = vshrl.u32 %v5559, 7
        %v5561 = vsub.s32 %v2315, %v5560
        %v5562 = vrot.slane %v5040, %v5561
        %v5563 = vsel %vm2320, %v5562, %v5558
        %v5564 = vlaneseq
        %v5565 = vshrl.u32 %v5564, 7
        %v5566 = vsub.s32 %v2322, %v5565
        %v5567 = vrot.slane %v5043, %v5566
        %v5568 = vsel %vm2327, %v5567, %v5563
        %v5569 = vlaneseq
        %v5570 = vshrl.u32 %v5569, 7
        %v5571 = vsub.s32 %v2329, %v5570
        %v5572 = vrot.slane %v5046, %v5571
        %v5573 = vsel %vm2334, %v5572, %v5568
        %v5574 = vlaneseq
        %v5575 = vshrl.u32 %v5574, 7
        %v5576 = vsub.s32 %v2336, %v5575
        %v5577 = vrot.slane %v5049, %v5576
        %v5578 = vsel %vm2341, %v5577, %v5573
        %v5579 = vlaneseq
        %v5580 = vshrl.u32 %v5579, 7
        %v5581 = vsub.s32 %v2343, %v5580
        %v5582 = vrot.slane %v5052, %v5581
        %v5583 = vsel %vm2348, %v5582, %v5578
        %v5584 = vlaneseq
        %v5585 = vshrl.u32 %v5584, 7
        %v5586 = vsub.s32 %v2350, %v5585
        %v5587 = vrot.slane %v5055, %v5586
        %v5588 = vsel %vm2355, %v5587, %v5583
        %v5589 = vlaneseq
        %v5590 = vshrl.u32 %v5589, 7
        %v5591 = vsub.s32 %v2357, %v5590
        %v5592 = vrot.slane %v5058, %v5591
        %v5593 = vsel %vm2362, %v5592, %v5588
        %v5594 = vlaneseq
        %v5595 = vshrl.u32 %v5594, 7
        %v5596 = vsub.s32 %v2364, %v5595
        %v5597 = vrot.slane %v5061, %v5596
        %v5598 = vsel %vm2369, %v5597, %v5593
        %v5599 = vlaneseq
        %v5600 = vshrl.u32 %v5599, 7
        %v5601 = vsub.s32 %v2371, %v5600
        %v5602 = vrot.slane %v5064, %v5601
        %v5603 = vsel %vm2376, %v5602, %v5598
        %v5604 = vlaneseq
        %v5605 = vshrl.u32 %v5604, 7
        %v5606 = vsub.s32 %v2268, %v5605
        %v5607 = vrot.slane %v5067, %v5606
        %v5608 = vlaneseq
        %v5609 = vshrl.u32 %v5608, 7
        %v5610 = vsub.s32 %v2273, %v5609
        %v5611 = vrot.slane %v5070, %v5610
        %v5612 = vsel %vm2278, %v5611, %v5607
        %v5613 = vlaneseq
        %v5614 = vshrl.u32 %v5613, 7
        %v5615 = vsub.s32 %v2280, %v5614
        %v5616 = vrot.slane %v5073, %v5615
        %v5617 = vsel %vm2285, %v5616, %v5612
        %v5618 = vlaneseq
        %v5619 = vshrl.u32 %v5618, 7
        %v5620 = vsub.s32 %v2287, %v5619
        %v5621 = vrot.slane %v5076, %v5620
        %v5622 = vsel %vm2292, %v5621, %v5617
        %v5623 = vlaneseq
        %v5624 = vshrl.u32 %v5623, 7
        %v5625 = vsub.s32 %v2294, %v5624
        %v5626 = vrot.slane %v5079, %v5625
        %v5627 = vsel %vm2299, %v5626, %v5622
        %v5628 = vlaneseq
        %v5629 = vshrl.u32 %v5628, 7
        %v5630 = vsub.s32 %v2301, %v5629
        %v5631 = vrot.slane %v5082, %v5630
        %v5632 = vsel %vm2306, %v5631, %v5627
        %v5633 = vlaneseq
        %v5634 = vshrl.u32 %v5633, 7
        %v5635 = vsub.s32 %v2308, %v5634
        %v5636 = vrot.slane %v5085, %v5635
        %v5637 = vsel %vm2313, %v5636, %v5632
        %v5638 = vlaneseq
        %v5639 = vshrl.u32 %v5638, 7
        %v5640 = vsub.s32 %v2315, %v5639
        %v5641 = vrot.slane %v5088, %v5640
        %v5642 = vsel %vm2320, %v5641, %v5637
        %v5643 = vlaneseq
        %v5644 = vshrl.u32 %v5643, 7
        %v5645 = vsub.s32 %v2322, %v5644
        %v5646 = vrot.slane %v5091, %v5645
        %v5647 = vsel %vm2327, %v5646, %v5642
        %v5648 = vlaneseq
        %v5649 = vshrl.u32 %v5648, 7
        %v5650 = vsub.s32 %v2329, %v5649
        %v5651 = vrot.slane %v5094, %v5650
        %v5652 = vsel %vm2334, %v5651, %v5647
        %v5653 = vlaneseq
        %v5654 = vshrl.u32 %v5653, 7
        %v5655 = vsub.s32 %v2336, %v5654
        %v5656 = vrot.slane %v5097, %v5655
        %v5657 = vsel %vm2341, %v5656, %v5652
        %v5658 = vlaneseq
        %v5659 = vshrl.u32 %v5658, 7
        %v5660 = vsub.s32 %v2343, %v5659
        %v5661 = vrot.slane %v5100, %v5660
        %v5662 = vsel %vm2348, %v5661, %v5657
        %v5663 = vlaneseq
        %v5664 = vshrl.u32 %v5663, 7
        %v5665 = vsub.s32 %v2350, %v5664
        %v5666 = vrot.slane %v5103, %v5665
        %v5667 = vsel %vm2355, %v5666, %v5662
        %v5668 = vlaneseq
        %v5669 = vshrl.u32 %v5668, 7
        %v5670 = vsub.s32 %v2357, %v5669
        %v5671 = vrot.slane %v5106, %v5670
        %v5672 = vsel %vm2362, %v5671, %v5667
        %v5673 = vlaneseq
        %v5674 = vshrl.u32 %v5673, 7
        %v5675 = vsub.s32 %v2364, %v5674
        %v5676 = vrot.slane %v5109, %v5675
        %v5677 = vsel %vm2369, %v5676, %v5672
        %v5678 = vlaneseq
        %v5679 = vshrl.u32 %v5678, 7
        %v5680 = vsub.s32 %v2371, %v5679
        %v5681 = vrot.slane %v5112, %v5680
        %v5682 = vsel %vm2376, %v5681, %v5677
        %v5683 = vlaneseq
        %v5684 = vshrl.u32 %v5683, 7
        %v5685 = vsub.s32 %v2268, %v5684
        %v5686 = vrot.slane %v5115, %v5685
        %v5687 = vlaneseq
        %v5688 = vshrl.u32 %v5687, 7
        %v5689 = vsub.s32 %v2273, %v5688
        %v5690 = vrot.slane %v5118, %v5689
        %v5691 = vsel %vm2278, %v5690, %v5686
        %v5692 = vlaneseq
        %v5693 = vshrl.u32 %v5692, 7
        %v5694 = vsub.s32 %v2280, %v5693
        %v5695 = vrot.slane %v5121, %v5694
        %v5696 = vsel %vm2285, %v5695, %v5691
        %v5697 = vlaneseq
        %v5698 = vshrl.u32 %v5697, 7
        %v5699 = vsub.s32 %v2287, %v5698
        %v5700 = vrot.slane %v5124, %v5699
        %v5701 = vsel %vm2292, %v5700, %v5696
        %v5702 = vlaneseq
        %v5703 = vshrl.u32 %v5702, 7
        %v5704 = vsub.s32 %v2294, %v5703
        %v5705 = vrot.slane %v5127, %v5704
        %v5706 = vsel %vm2299, %v5705, %v5701
        %v5707 = vlaneseq
        %v5708 = vshrl.u32 %v5707, 7
        %v5709 = vsub.s32 %v2301, %v5708
        %v5710 = vrot.slane %v5130, %v5709
        %v5711 = vsel %vm2306, %v5710, %v5706
        %v5712 = vlaneseq
        %v5713 = vshrl.u32 %v5712, 7
        %v5714 = vsub.s32 %v2308, %v5713
        %v5715 = vrot.slane %v5133, %v5714
        %v5716 = vsel %vm2313, %v5715, %v5711
        %v5717 = vlaneseq
        %v5718 = vshrl.u32 %v5717, 7
        %v5719 = vsub.s32 %v2315, %v5718
        %v5720 = vrot.slane %v5136, %v5719
        %v5721 = vsel %vm2320, %v5720, %v5716
        %v5722 = vlaneseq
        %v5723 = vshrl.u32 %v5722, 7
        %v5724 = vsub.s32 %v2322, %v5723
        %v5725 = vrot.slane %v5139, %v5724
        %v5726 = vsel %vm2327, %v5725, %v5721
        %v5727 = vlaneseq
        %v5728 = vshrl.u32 %v5727, 7
        %v5729 = vsub.s32 %v2329, %v5728
        %v5730 = vrot.slane %v5142, %v5729
        %v5731 = vsel %vm2334, %v5730, %v5726
        %v5732 = vlaneseq
        %v5733 = vshrl.u32 %v5732, 7
        %v5734 = vsub.s32 %v2336, %v5733
        %v5735 = vrot.slane %v5145, %v5734
        %v5736 = vsel %vm2341, %v5735, %v5731
        %v5737 = vlaneseq
        %v5738 = vshrl.u32 %v5737, 7
        %v5739 = vsub.s32 %v2343, %v5738
        %v5740 = vrot.slane %v5148, %v5739
        %v5741 = vsel %vm2348, %v5740, %v5736
        %v5742 = vlaneseq
        %v5743 = vshrl.u32 %v5742, 7
        %v5744 = vsub.s32 %v2350, %v5743
        %v5745 = vrot.slane %v5151, %v5744
        %v5746 = vsel %vm2355, %v5745, %v5741
        %v5747 = vlaneseq
        %v5748 = vshrl.u32 %v5747, 7
        %v5749 = vsub.s32 %v2357, %v5748
        %v5750 = vrot.slane %v5154, %v5749
        %v5751 = vsel %vm2362, %v5750, %v5746
        %v5752 = vlaneseq
        %v5753 = vshrl.u32 %v5752, 7
        %v5754 = vsub.s32 %v2364, %v5753
        %v5755 = vrot.slane %v5157, %v5754
        %v5756 = vsel %vm2369, %v5755, %v5751
        %v5757 = vlaneseq
        %v5758 = vshrl.u32 %v5757, 7
        %v5759 = vsub.s32 %v2371, %v5758
        %v5760 = vrot.slane %v5160, %v5759
        %v5761 = vsel %vm2376, %v5760, %v5756
        %v5762 = vlaneseq
        %v5763 = vshrl.u32 %v5762, 7
        %v5764 = vsub.s32 %v2268, %v5763
        %v5765 = vrot.slane %v5163, %v5764
        %v5766 = vlaneseq
        %v5767 = vshrl.u32 %v5766, 7
        %v5768 = vsub.s32 %v2273, %v5767
        %v5769 = vrot.slane %v5166, %v5768
        %v5770 = vsel %vm2278, %v5769, %v5765
        %v5771 = vlaneseq
        %v5772 = vshrl.u32 %v5771, 7
        %v5773 = vsub.s32 %v2280, %v5772
        %v5774 = vrot.slane %v5169, %v5773
        %v5775 = vsel %vm2285, %v5774, %v5770
        %v5776 = vlaneseq
        %v5777 = vshrl.u32 %v5776, 7
        %v5778 = vsub.s32 %v2287, %v5777
        %v5779 = vrot.slane %v5172, %v5778
        %v5780 = vsel %vm2292, %v5779, %v5775
        %v5781 = vlaneseq
        %v5782 = vshrl.u32 %v5781, 7
        %v5783 = vsub.s32 %v2294, %v5782
        %v5784 = vrot.slane %v5175, %v5783
        %v5785 = vsel %vm2299, %v5784, %v5780
        %v5786 = vlaneseq
        %v5787 = vshrl.u32 %v5786, 7
        %v5788 = vsub.s32 %v2301, %v5787
        %v5789 = vrot.slane %v5178, %v5788
        %v5790 = vsel %vm2306, %v5789, %v5785
        %v5791 = vlaneseq
        %v5792 = vshrl.u32 %v5791, 7
        %v5793 = vsub.s32 %v2308, %v5792
        %v5794 = vrot.slane %v5181, %v5793
        %v5795 = vsel %vm2313, %v5794, %v5790
        %v5796 = vlaneseq
        %v5797 = vshrl.u32 %v5796, 7
        %v5798 = vsub.s32 %v2315, %v5797
        %v5799 = vrot.slane %v5184, %v5798
        %v5800 = vsel %vm2320, %v5799, %v5795
        %v5801 = vlaneseq
        %v5802 = vshrl.u32 %v5801, 7
        %v5803 = vsub.s32 %v2322, %v5802
        %v5804 = vrot.slane %v5187, %v5803
        %v5805 = vsel %vm2327, %v5804, %v5800
        %v5806 = vlaneseq
        %v5807 = vshrl.u32 %v5806, 7
        %v5808 = vsub.s32 %v2329, %v5807
        %v5809 = vrot.slane %v5190, %v5808
        %v5810 = vsel %vm2334, %v5809, %v5805
        %v5811 = vlaneseq
        %v5812 = vshrl.u32 %v5811, 7
        %v5813 = vsub.s32 %v2336, %v5812
        %v5814 = vrot.slane %v5193, %v5813
        %v5815 = vsel %vm2341, %v5814, %v5810
        %v5816 = vlaneseq
        %v5817 = vshrl.u32 %v5816, 7
        %v5818 = vsub.s32 %v2343, %v5817
        %v5819 = vrot.slane %v5196, %v5818
        %v5820 = vsel %vm2348, %v5819, %v5815
        %v5821 = vlaneseq
        %v5822 = vshrl.u32 %v5821, 7
        %v5823 = vsub.s32 %v2350, %v5822
        %v5824 = vrot.slane %v5199, %v5823
        %v5825 = vsel %vm2355, %v5824, %v5820
        %v5826 = vlaneseq
        %v5827 = vshrl.u32 %v5826, 7
        %v5828 = vsub.s32 %v2357, %v5827
        %v5829 = vrot.slane %v5202, %v5828
        %v5830 = vsel %vm2362, %v5829, %v5825
        %v5831 = vlaneseq
        %v5832 = vshrl.u32 %v5831, 7
        %v5833 = vsub.s32 %v2364, %v5832
        %v5834 = vrot.slane %v5205, %v5833
        %v5835 = vsel %vm2369, %v5834, %v5830
        %v5836 = vlaneseq
        %v5837 = vshrl.u32 %v5836, 7
        %v5838 = vsub.s32 %v2371, %v5837
        %v5839 = vrot.slane %v5208, %v5838
        %v5840 = vsel %vm2376, %v5839, %v5835
        %v5841 = vsel %vm2931, %v5366, %v5287
        %v5842 = vsel %vm2933, %v5445, %v5841
        %v5843 = vsel %vm2935, %v5524, %v5842
        %v5844 = vsel %vm2937, %v5603, %v5843
        %v5845 = vsel %vm2939, %v5682, %v5844
        %v5846 = vsel %vm2941, %v5761, %v5845
        %v5847 = vsel %vm2943, %v5840, %v5846
        %5849 = vst [vmem:[%s563] sm:$0xff] %v5847
        %v5850 = vld [vmem:[%s486] sm:$0xff]
        %v5851 = vld [vmem:[%s486 + $0x8] sm:$0xff]
        %v5852 = vld [vmem:[%s486 + $0x10] sm:$0xff]
        %v5853 = vld [vmem:[%s486 + $0x18] sm:$0xff]
        %v5854 = vld [vmem:[%s486 + $0x20] sm:$0xff]
        %v5855 = vld [vmem:[%s486 + $0x28] sm:$0xff]
        %v5856 = vld [vmem:[%s486 + $0x30] sm:$0xff]
        %v5857 = vld [vmem:[%s486 + $0x38] sm:$0xff]
        %v5858 = vld [vmem:[%s486 + $0x40] sm:$0xff]
        %v5859 = vld [vmem:[%s486 + $0x48] sm:$0xff]
        %v5860 = vld [vmem:[%s486 + $0x50] sm:$0xff]
        %v5861 = vld [vmem:[%s486 + $0x58] sm:$0xff]
        %v5862 = vld [vmem:[%s486 + $0x60] sm:$0xff]
        %v5863 = vld [vmem:[%s486 + $0x68] sm:$0xff]
        %v5864 = vld [vmem:[%s486 + $0x70] sm:$0xff]
        %v5865 = vld [vmem:[%s486 + $0x78] sm:$0xff]
        %5866 = vmatprep.subr.mxu0 0.0
        %5867 = vmatpush1.msra.mxu0 %v5865
        %5868 = vmatprep.subr.mxu0 0.0
        %5869 = vmatpush1.msra.mxu0 %v5864
        %5870 = vmatprep.subr.mxu0 0.0
        %5871 = vmatpush1.msra.mxu0 %v5863
        %5872 = vmatprep.subr.mxu0 0.0
        %5873 = vmatpush1.msra.mxu0 %v5862
        %5874 = vmatprep.subr.mxu0 0.0
        %5875 = vmatpush1.msra.mxu0 %v5861
        %5876 = vmatprep.subr.mxu0 0.0
        %5877 = vmatpush1.msra.mxu0 %v5860
        %5878 = vmatprep.subr.mxu0 0.0
        %5879 = vmatpush1.msra.mxu0 %v5859
        %5880 = vmatprep.subr.mxu0 0.0
        %5881 = vmatpush1.msra.mxu0 %v5858
        %5882 = vmatprep.subr.mxu0 0.0
        %5883 = vmatpush1.msra.mxu0 %v5857
        %5884 = vmatprep.subr.mxu0 0.0
        %5885 = vmatpush1.msra.mxu0 %v5856
        %5886 = vmatprep.subr.mxu0 0.0
        %5887 = vmatpush1.msra.mxu0 %v5855
        %5888 = vmatprep.subr.mxu0 0.0
        %5889 = vmatpush1.msra.mxu0 %v5854
        %5890 = vmatprep.subr.mxu0 0.0
        %5891 = vmatpush1.msra.mxu0 %v5853
        %5892 = vmatprep.subr.mxu0 0.0
        %5893 = vmatpush1.msra.mxu0 %v5852
        %5894 = vmatprep.subr.mxu0 0.0
        %5895 = vmatpush1.msra.mxu0 %v5851
        %5896 = vmatprep.subr.mxu0 0.0
        %5897 = vmatpush1.msra.mxu0 %v5850
        %5898 = vmatprep.subr.mxu0 0.0
        %5899 = vmatpush2.msra.mxu0 0.0
        %5900 = vmatprep.subr.mxu0 0.0
        %5901 = vmatpush2.msra.mxu0 0.0
        %5902 = vmatprep.subr.mxu0 0.0
        %5903 = vmatpush2.msra.mxu0 0.0
        %5904 = vmatprep.subr.mxu0 0.0
        %5905 = vmatpush2.msra.mxu0 0.0
        %5906 = vmatprep.subr.mxu0 0.0
        %5907 = vmatpush2.msra.mxu0 0.0
        %5908 = vmatprep.subr.mxu0 0.0
        %5909 = vmatpush2.msra.mxu0 0.0
        %5910 = vmatprep.subr.mxu0 0.0
        %5911 = vmatpush2.msra.mxu0 0.0
        %5912 = vmatprep.subr.mxu0 0.0
        %5913 = vmatpush2.msra.mxu0 0.0
        %5914 = vmatprep.subr.mxu0 0.0
        %5915 = vmatpush2.msra.mxu0 0.0
        %5916 = vmatprep.subr.mxu0 0.0
        %5917 = vmatpush2.msra.mxu0 0.0
        %5918 = vmatprep.subr.mxu0 0.0
        %5919 = vmatpush2.msra.mxu0 0.0
        %5920 = vmatprep.subr.mxu0 0.0
        %5921 = vmatpush2.msra.mxu0 0.0
        %5922 = vmatprep.subr.mxu0 0.0
        %5923 = vmatpush2.msra.mxu0 0.0
        %5924 = vmatprep.subr.mxu0 0.0
        %5925 = vmatpush2.msra.mxu0 0.0
        %5926 = vmatprep.subr.mxu0 0.0
        %5927 = vmatpush2.msra.mxu0 0.0
        %5928 = vmatprep.subr.mxu0 0.0
        %5929 = vmatpush2.msra.mxu0 0.0
        %5930 = vmatprep.mubr.f32.mxu0 0.0
        %5931 = vmatmul.mubr.f32.gmra.mxu0 %v5847
        %v5932 = vpop.f32.mrf.mxu0
        %v5933 = vadd.f32 0.0, %v5932
        %v5934 = vpop.f32.mrf.mxu0
        %5935 = vdwg.mxu0
        %v5936 = vld [vmem:[#allocation11] sm:$0xff]
        %v5937 = vld [vmem:[#allocation11 + $0x8] sm:$0xff]
        %v5938 = vld [vmem:[#allocation11 + $0x10] sm:$0xff]
        %v5939 = vld [vmem:[#allocation11 + $0x18] sm:$0xff]
        %v5940 = vld [vmem:[#allocation11 + $0x20] sm:$0xff]
        %v5941 = vld [vmem:[#allocation11 + $0x28] sm:$0xff]
        %v5942 = vld [vmem:[#allocation11 + $0x30] sm:$0xff]
        %v5943 = vld [vmem:[#allocation11 + $0x38] sm:$0xff]
        %v5944 = vld [vmem:[#allocation11 + $0x40] sm:$0xff]
        %v5945 = vld [vmem:[#allocation11 + $0x48] sm:$0xff]
        %v5946 = vld [vmem:[#allocation11 + $0x50] sm:$0xff]
        %v5947 = vld [vmem:[#allocation11 + $0x58] sm:$0xff]
        %v5948 = vld [vmem:[#allocation11 + $0x60] sm:$0xff]
        %v5949 = vld [vmem:[#allocation11 + $0x68] sm:$0xff]
        %v5950 = vld [vmem:[#allocation11 + $0x70] sm:$0xff]
        %v5951 = vld [vmem:[#allocation11 + $0x78] sm:$0xff]
        %v5952 = vld [vmem:[#allocation12] sm:$0xff]
        %v5953 = vld [vmem:[#allocation12 + $0x8] sm:$0xff]
        %v5954 = vld [vmem:[#allocation12 + $0x10] sm:$0xff]
        %v5955 = vld [vmem:[#allocation12 + $0x18] sm:$0xff]
        %v5956 = vld [vmem:[#allocation12 + $0x20] sm:$0xff]
        %v5957 = vld [vmem:[#allocation12 + $0x28] sm:$0xff]
        %v5958 = vld [vmem:[#allocation12 + $0x30] sm:$0xff]
        %v5959 = vld [vmem:[#allocation12 + $0x38] sm:$0xff]
        %v5960 = vld [vmem:[#allocation12 + $0x40] sm:$0xff]
        %v5961 = vld [vmem:[#allocation12 + $0x48] sm:$0xff]
        %v5962 = vld [vmem:[#allocation12 + $0x50] sm:$0xff]
        %v5963 = vld [vmem:[#allocation12 + $0x58] sm:$0xff]
        %v5964 = vld [vmem:[#allocation12 + $0x60] sm:$0xff]
        %v5965 = vld [vmem:[#allocation12 + $0x68] sm:$0xff]
        %v5966 = vld [vmem:[#allocation12 + $0x70] sm:$0xff]
        %v5967 = vld [vmem:[#allocation12 + $0x78] sm:$0xff]
        %5968 = vmatprep.subr.mxu0 0.0
        %5969 = vmatpush1.msra.mxu0 %v5967
        %5970 = vmatprep.subr.mxu0 0.0
        %5971 = vmatpush1.msra.mxu0 %v5966
        %5972 = vmatprep.subr.mxu0 0.0
        %5973 = vmatpush1.msra.mxu0 %v5965
        %5974 = vmatprep.subr.mxu0 0.0
        %5975 = vmatpush1.msra.mxu0 %v5964
        %5976 = vmatprep.subr.mxu0 0.0
        %5977 = vmatpush1.msra.mxu0 %v5963
        %5978 = vmatprep.subr.mxu0 0.0
        %5979 = vmatpush1.msra.mxu0 %v5962
        %5980 = vmatprep.subr.mxu0 0.0
        %5981 = vmatpush1.msra.mxu0 %v5961
        %5982 = vmatprep.subr.mxu0 0.0
        %5983 = vmatpush1.msra.mxu0 %v5960
        %5984 = vmatprep.subr.mxu0 0.0
        %5985 = vmatpush1.msra.mxu0 %v5959
        %5986 = vmatprep.subr.mxu0 0.0
        %5987 = vmatpush1.msra.mxu0 %v5958
        %5988 = vmatprep.subr.mxu0 0.0
        %5989 = vmatpush1.msra.mxu0 %v5957
        %5990 = vmatprep.subr.mxu0 0.0
        %5991 = vmatpush1.msra.mxu0 %v5956
        %5992 = vmatprep.subr.mxu0 0.0
        %5993 = vmatpush1.msra.mxu0 %v5955
        %5994 = vmatprep.subr.mxu0 0.0
        %5995 = vmatpush1.msra.mxu0 %v5954
        %5996 = vmatprep.subr.mxu0 0.0
        %5997 = vmatpush1.msra.mxu0 %v5953
        %5998 = vmatprep.subr.mxu0 0.0
        %5999 = vmatpush1.msra.mxu0 %v5952
        %6000 = vmatprep.subr.mxu0 0.0
        %6001 = vmatpush2.msra.mxu0 0.0
        %6002 = vmatprep.subr.mxu0 0.0
        %6003 = vmatpush2.msra.mxu0 0.0
        %6004 = vmatprep.subr.mxu0 0.0
        %6005 = vmatpush2.msra.mxu0 0.0
        %6006 = vmatprep.subr.mxu0 0.0
        %6007 = vmatpush2.msra.mxu0 0.0
        %6008 = vmatprep.subr.mxu0 0.0
        %6009 = vmatpush2.msra.mxu0 0.0
        %6010 = vmatprep.subr.mxu0 0.0
        %6011 = vmatpush2.msra.mxu0 0.0
        %6012 = vmatprep.subr.mxu0 0.0
        %6013 = vmatpush2.msra.mxu0 0.0
        %6014 = vmatprep.subr.mxu0 0.0
        %6015 = vmatpush2.msra.mxu0 0.0
        %6016 = vmatprep.subr.mxu0 0.0
        %6017 = vmatpush2.msra.mxu0 0.0
        %6018 = vmatprep.subr.mxu0 0.0
        %6019 = vmatpush2.msra.mxu0 0.0
        %6020 = vmatprep.subr.mxu0 0.0
        %6021 = vmatpush2.msra.mxu0 0.0
        %6022 = vmatprep.subr.mxu0 0.0
        %6023 = vmatpush2.msra.mxu0 0.0
        %6024 = vmatprep.subr.mxu0 0.0
        %6025 = vmatpush2.msra.mxu0 0.0
        %6026 = vmatprep.subr.mxu0 0.0
        %6027 = vmatpush2.msra.mxu0 0.0
        %6028 = vmatprep.subr.mxu0 0.0
        %6029 = vmatpush2.msra.mxu0 0.0
        %6030 = vmatprep.subr.mxu0 0.0
        %6031 = vmatpush2.msra.mxu0 0.0
        %6032 = vmatprep.mubr.f32.mxu0 0.0
        %6033 = vmatmul.mubr.f32.gmra.mxu0 %v567
        %v6034 = vpop.f32.mrf.mxu0
        %v6035 = vadd.f32 0.0, %v6034
        %v6036 = vpop.f32.mrf.mxu0
        %6037 = vdwg.mxu0
        %6038 = vmatprep.subr.mxu0 0.0
        %6039 = vmatpush1.msra.mxu0 %v5951
        %6040 = vmatprep.subr.mxu0 0.0
        %6041 = vmatpush1.msra.mxu0 %v5950
        %6042 = vmatprep.subr.mxu0 0.0
        %6043 = vmatpush1.msra.mxu0 %v5949
        %6044 = vmatprep.subr.mxu0 0.0
        %6045 = vmatpush1.msra.mxu0 %v5948
        %6046 = vmatprep.subr.mxu0 0.0
        %6047 = vmatpush1.msra.mxu0 %v5947
        %6048 = vmatprep.subr.mxu0 0.0
        %6049 = vmatpush1.msra.mxu0 %v5946
        %6050 = vmatprep.subr.mxu0 0.0
        %6051 = vmatpush1.msra.mxu0 %v5945
        %6052 = vmatprep.subr.mxu0 0.0
        %6053 = vmatpush1.msra.mxu0 %v5944
        %6054 = vmatprep.subr.mxu0 0.0
        %6055 = vmatpush1.msra.mxu0 %v5943
        %6056 = vmatprep.subr.mxu0 0.0
        %6057 = vmatpush1.msra.mxu0 %v5942
        %6058 = vmatprep.subr.mxu0 0.0
        %6059 = vmatpush1.msra.mxu0 %v5941
        %6060 = vmatprep.subr.mxu0 0.0
        %6061 = vmatpush1.msra.mxu0 %v5940
        %6062 = vmatprep.subr.mxu0 0.0
        %6063 = vmatpush1.msra.mxu0 %v5939
        %6064 = vmatprep.subr.mxu0 0.0
        %6065 = vmatpush1.msra.mxu0 %v5938
        %6066 = vmatprep.subr.mxu0 0.0
        %6067 = vmatpush1.msra.mxu0 %v5937
        %6068 = vmatprep.subr.mxu0 0.0
        %6069 = vmatpush1.msra.mxu0 %v5936
        %6070 = vmatprep.subr.mxu0 0.0
        %6071 = vmatpush2.msra.mxu0 0.0
        %6072 = vmatprep.subr.mxu0 0.0
        %6073 = vmatpush2.msra.mxu0 0.0
        %6074 = vmatprep.subr.mxu0 0.0
        %6075 = vmatpush2.msra.mxu0 0.0
        %6076 = vmatprep.subr.mxu0 0.0
        %6077 = vmatpush2.msra.mxu0 0.0
        %6078 = vmatprep.subr.mxu0 0.0
        %6079 = vmatpush2.msra.mxu0 0.0
        %6080 = vmatprep.subr.mxu0 0.0
        %6081 = vmatpush2.msra.mxu0 0.0
        %6082 = vmatprep.subr.mxu0 0.0
        %6083 = vmatpush2.msra.mxu0 0.0
        %6084 = vmatprep.subr.mxu0 0.0
        %6085 = vmatpush2.msra.mxu0 0.0
        %6086 = vmatprep.subr.mxu0 0.0
        %6087 = vmatpush2.msra.mxu0 0.0
        %6088 = vmatprep.subr.mxu0 0.0
        %6089 = vmatpush2.msra.mxu0 0.0
        %6090 = vmatprep.subr.mxu0 0.0
        %6091 = vmatpush2.msra.mxu0 0.0
        %6092 = vmatprep.subr.mxu0 0.0
        %6093 = vmatpush2.msra.mxu0 0.0
        %6094 = vmatprep.subr.mxu0 0.0
        %6095 = vmatpush2.msra.mxu0 0.0
        %6096 = vmatprep.subr.mxu0 0.0
        %6097 = vmatpush2.msra.mxu0 0.0
        %6098 = vmatprep.subr.mxu0 0.0
        %6099 = vmatpush2.msra.mxu0 0.0
        %6100 = vmatprep.subr.mxu0 0.0
        %6101 = vmatpush2.msra.mxu0 0.0
        %6102 = vmatprep.mubr.f32.mxu0 0.0
        %6103 = vmatmul.mubr.f32.gmra.mxu0 %v5933
        %v6104 = vpop.f32.mrf.mxu0
        %v6105 = vadd.f32 %v6035, %v6104
        %v6106 = vpop.f32.mrf.mxu0
        %6107 = vdwg.mxu0
        %v6108 = vld [vmem:[%s9] sm:$0x1]
        %v6110 = vlaneseq
        %v6111 = vshrl.u32 %v6110, 7
        %v6112 = vsub.s32 0, %v6111
        %v6113 = vrot.slane %v6108, %v6112
        %v6115 = vadd.f32 %v6105, %v6113
        %6116 = vst [vmem:[%s556] sm:$0xff] %v6115
        %s6117 = sand.u32 %s291, 1
        %s6118 = scalar_lea.sflag [#allocation5], %s6117
        %s6119 = sand.u32 %s291, 1
        %s6120 = smul.addr %s6119, 8
        %s6121 = scalar_lea.vmem [#allocation14], %s6120
        %s6122 = sand.u32 %s319, 1
        %s6123 = scalar_lea.sflag [#allocation16], %s6122
        %s6124 = sand.u32 %s319, 1
        %s6125 = smul.addr %s6124, 8
        %s6126 = scalar_lea.vmem [#allocation15], %s6125
        // Predicated region
        $region85: #{tpu_custom_call.1} parent=59 // pred_check
          %p6127 = pneg %p301
        $region86: #{tpu_custom_call.1} parent=59 // pred_check_branch
          %6129 = sbr.rel (%p6127) target = $region88
        $region87: #{tpu_custom_call.1} parent=59 // pred_region
          %s6131 = ssub.s32 128, 128
          %6132 = vsyncadd %s6118, %s6131
          %s6133 = sadd.s32 %s42, %s41
          %s6134 = smul.addr %s6133, 128
          %s6135 = scalar_lea.hbm %s10, %s6134
          %s6137 = sshll.u32 %s6121, 4
          %s6138 = int_to_ptr.vmem [resolvable:$true] %s6137
          %6140 = dma.vmem_to_hbm [thread:$0]  %s6138, 128, %s6135, %s6118
        $region88: #{tpu_custom_call.1} parent=59 // pred_fallthru
          _
        // Predicated region
        $region89: #{tpu_custom_call.1} parent=59 // pred_check
          %p6141 = pneg %p329
        $region90: #{tpu_custom_call.1} parent=59 // pred_check_branch
          %6143 = sbr.rel (%p6141) target = $region92
        $region91: #{tpu_custom_call.1} parent=59 // pred_region
          %s6145 = ssub.s32 128, 128
          %6146 = vsyncadd %s6123, %s6145
          %s6147 = sadd.s32 %s42, %s41
          %s6148 = smul.addr %s6147, 128
          %s6149 = scalar_lea.hbm %s11, %s6148
          %s6151 = sshll.u32 %s6126, 4
          %s6152 = int_to_ptr.vmem [resolvable:$true] %s6151
          %6154 = dma.vmem_to_hbm [thread:$0]  %s6152, 128, %s6149, %s6123
        $region92: #{tpu_custom_call.1} parent=59 // pred_fallthru
          _
      $region60: #{tpu_custom_call.1} parent=5 // pred_fallthru
        _
      %p6155 = scmp.le.s32.totalorder 2, %s32
      // Predicated region
      $region93: #{tpu_custom_call.1} parent=5 // pred_check
        %p6156 = pneg %p6155
      $region94: #{tpu_custom_call.1} parent=5 // pred_check_branch
        %6158 = sbr.rel (%p6156) target = $region96
      $region95: #{tpu_custom_call.1} parent=5 // pred_region
        %s6159 = ssub.s32 %s32, 2
        // Predicated region
        $region97: #{tpu_custom_call.1} parent=95 // pred_check
          %p6160 = pneg %p307
        $region98: #{tpu_custom_call.1} parent=95 // pred_check_branch
          %6162 = sbr.rel (%p6160) target = $region100
        $region99: #{tpu_custom_call.1} parent=95 // pred_region
          %s6163 = sand.u32 %s292, 1
          %s6164 = scalar_lea.sflag [#allocation5], %s6163
          %s6165 = sand.u32 %s292, 1
          %s6166 = smul.addr %s6165, 8
          %s6167 = scalar_lea.vmem [#allocation14], %s6166
          %6168 = dma.done %s6164, 128
        $region100: #{tpu_custom_call.1} parent=95 // pred_fallthru
          _
        // Predicated region
        $region101: #{tpu_custom_call.1} parent=95 // pred_check
          %p6169 = pneg %p335
        $region102: #{tpu_custom_call.1} parent=95 // pred_check_branch
          %6171 = sbr.rel (%p6169) target = $region104
        $region103: #{tpu_custom_call.1} parent=95 // pred_region
          %s6172 = sand.u32 %s320, 1
          %s6173 = scalar_lea.sflag [#allocation16], %s6172
          %s6174 = sand.u32 %s320, 1
          %s6175 = smul.addr %s6174, 8
          %s6176 = scalar_lea.vmem [#allocation15], %s6175
          %6177 = dma.done %s6173, 128
        $region104: #{tpu_custom_call.1} parent=95 // pred_fallthru
          _
      $region96: #{tpu_custom_call.1} parent=5 // pred_fallthru
        _
    $region6: #{tpu_custom_call.1} parent=1 // loop_footer
      %s36 = sadd.s32 1, %s32
    $region7: #{tpu_custom_call.1} parent=1 // loop_footer_branch
      %31 = sbr.rel target = $region3
    $region8: #{tpu_custom_call.1} parent=1 // loop_exit
      _
    %6178 = vsyncpa [#allocation4], 1
    %s6179 = scalar_lea.sflag [#allocation4], 1
    %6180 = vsyncpa %s6179, 1
    %6181 = vsyncpa [#allocation7], 1
    %s6182 = scalar_lea.sflag [#allocation7], 1
    %6183 = vsyncpa %s6182, 1
    %6184 = vsyncpa [#allocation10], 1
    %6185 = vsyncpa [#allocation13], 1
    %6186 = vsyncpa [#allocation5], 1
    %s6187 = scalar_lea.sflag [#allocation5], 1
    %6188 = vsyncpa %s6187, 1
    %6189 = vsyncpa [#allocation16], 1
    %s6190 = scalar_lea.sflag [#allocation16], 1
    %6191 = vsyncpa %s6190, 1

</llo_original>
